<compile_context>
chip_gen: v7x
topology: tpu7x:2x2x1
jax: 0.10.0
libtpu: 0.0.40
codegen_flags: <defaults>
</compile_context>

<pallas_src>
import numpy as np

import jax
import jax.numpy as jnp
from jax.experimental import pallas as pl
from jax.experimental.pallas import tpu as pltpu

_SELU_ALPHA = 1.6732632423543772
_SELU_SCALE = 1.0507009873554805
_NEG_FILL = -1e30  # not -inf: keeps 0 * fill == 0 finite in the selection matmul


def _selu(x):
    # exp(min(x,0)) - 1 instead of expm1 (guaranteed Mosaic lowering); the precision
    # difference near 0 is ~1e-8, far below the test tolerance.
    neg = _SELU_ALPHA * (jnp.exp(jnp.minimum(x, 0.0)) - 1.0)
    return _SELU_SCALE * jnp.where(x > 0, x, neg)


# ----------------------------------------------------------------------------
# Fused kernel: [sepconv+SELU]*L -> (maxpool) -> (shortcut+add+SELU) -> store
# ----------------------------------------------------------------------------
def _make_fused_kernel(K, H, W, chans, Cout, pool, short, Hout, Wout, Hd, Wd):
    num_layers = len(chans)
    pc = K // 2

    def kernel(*refs):
        it = iter(refs)
        x_ref = next(it)
        layer_refs = [(next(it), next(it)) for _ in range(num_layers)]
        spool_ref = next(it) if pool else None
        sx_ref = next(it) if (pool and short) else None
        ws_ref = next(it) if short else None
        o_ref = next(it)
        pad_scr = next(it)      # (H+2*pc, W+2*pc, Cmax) padded activation buffer
        col_scr = next(it)      # (H*W, K*K*Cmax) im2col buffer

        f32 = jnp.float32

        # Zero the conv halo once; every conv layer only rewrites the interior.
        pad_scr[...] = jnp.zeros(pad_scr.shape, f32)

        a = x_ref[...].astype(f32)                       # (H, W, chans[0])
        y = None
        for l, (wc_ref, bc_ref) in enumerate(layer_refs):
            C = chans[l]
            pad_scr[pc:pc + H, pc:pc + W, :C] = a
            xp = pad_scr[...]                            # (Hc, Wc, Cmax)
            for kh in range(K):                          # static, unrolled im2col build
                for kw in range(K):
                    j = kh * K + kw
                    col_scr[:, j * C:(j + 1) * C] = (
                        xp[kh:kh + H, kw:kw + W, :C].reshape(H * W, C))
            # one fused depthwise+pointwise matmul (M=H*W, K=K*K*C, N=Cout)
            y = jnp.dot(col_scr[:, :K * K * C], wc_ref[...],
                        preferred_element_type=f32)
            y = _selu(y + bc_ref[...])                   # (H*W, Cout)
            a = y.reshape(H, W, Cout)

        if pool:
            # MaxPool(K, stride=2, pad=1): -BIG halo, dense stride-1 window max,
            # then stride-2 selection via a constant 0/1 matmul.
            pad_scr[0:H + 2, 0:W + 2, :Cout] = jnp.full((H + 2, W + 2, Cout),
                                                        _NEG_FILL, f32)
            pad_scr[1:1 + H, 1:1 + W, :Cout] = a
            pp = pad_scr[...]
            m = pp[0:Hd, 0:Wd, :Cout]
            for dh in range(K):
                for dw in range(K):
                    if dh == 0 and dw == 0:
                        continue
                    m = jnp.maximum(m, pp[dh:dh + Hd, dw:dw + Wd, :Cout])
            out_val = jnp.dot(spool_ref[...], m.reshape(Hd * Wd, Cout),
                              preferred_element_type=f32)    # (Hout*Wout, Cout)
        else:
            out_val = y                                       # (H*W, Cout)

        if short:
            x_flat = x_ref[...].reshape(H * W, chans[0]).astype(f32)
            xs = (jnp.dot(sx_ref[...], x_flat, preferred_element_type=f32)
                  if pool else x_flat)                        # stride-2 row select
            sc = jnp.dot(xs, ws_ref[...], preferred_element_type=f32)
            out_val = _selu(out_val + sc)

        o_ref[...] = out_val.astype(o_ref.dtype)

    return kernel


# ----------------------------------------------------------------------------
# Wrapper: weight folding, selection matrices, pallas_call
# ----------------------------------------------------------------------------
def _combine_sepconv_weights(layers):
    combined = []
    for (dw_w, dw_b, pw_w, pw_b) in layers:
        Kk, _, C = dw_w.shape
        Cout = pw_w.shape[1]
        wcomb = jnp.einsum("hwc,co->hwco", dw_w, pw_w).reshape(Kk * Kk * C, Cout)
        bcomb = dw_b.reshape(1, C) @ pw_w + pw_b.reshape(1, Cout)
        combined.append((wcomb.astype(jnp.float32), bcomb.astype(jnp.float32)))
    return combined


def _sel_matrix(Hout, Wout, Hs, Ws):
    """0/1 matrix selecting element (2*ho, 2*wo) from an (Hs, Ws) grid (row-major flat)."""
    S = np.zeros((Hout * Wout, Hs * Ws), np.float32)
    for ho in range(Hout):
        for wo in range(Wout):
            S[ho * Wout + wo, (2 * ho) * Ws + 2 * wo] = 1.0
    return jnp.asarray(S)


def residual_block_forward(x_nchw, layers, ws, K, pool, short):
    assert K % 2 == 1 and K >= 3, "odd kernel_size >= 3 assumed"
    x = jnp.transpose(x_nchw, (0, 2, 3, 1))                  # NCHW -> NHWC (glue)
    N, H, W, Cin = x.shape
    assert H % 2 == 0 and W % 2 == 0
    Cout = layers[0][2].shape[1]
    num_layers = len(layers)
    chans = [Cin] + [Cout] * (num_layers - 1)                # per-layer input channels
    Cmax = max(chans + [Cout])
    pc = K // 2
    Hc, Wc = H + 2 * pc, W + 2 * pc

    if pool:
        Hout = (H + 2 - K) // 2 + 1
        Wout = (W + 2 - K) // 2 + 1
        Hd, Wd = H + 3 - K, W + 3 - K                        # dense stride-1 max extent
        if short:
            assert Hout == H // 2 and Wout == W // 2, "pool/shortcut spatial mismatch"
    else:
        Hout, Wout = H, W
        Hd = Wd = 0

    combined = _combine_sepconv_weights(layers)

    args = [x]
    in_specs = [pl.BlockSpec((None, H, W, Cin), lambda n: (n, 0, 0, 0))]
    for (wc, bc) in combined:
        args += [wc, bc]
        in_specs += [pl.BlockSpec(wc.shape, lambda n: (0, 0)),
                     pl.BlockSpec(bc.shape, lambda n: (0, 0))]
    if pool:
        spool = _sel_matrix(Hout, Wout, Hd, Wd)
        args.append(spool)
        in_specs.append(pl.BlockSpec(spool.shape, lambda n: (0, 0)))
    if short:
        if pool:
            sx = _sel_matrix(Hout, Wout, H, W)
            args.append(sx)
            in_specs.append(pl.BlockSpec(sx.shape, lambda n: (0, 0)))
        ws_f = ws.astype(jnp.float32)
        args.append(ws_f)
        in_specs.append(pl.BlockSpec(ws_f.shape, lambda n: (0, 0)))

    kernel = _make_fused_kernel(K, H, W, chans, Cout, pool, short,
                                Hout, Wout, Hd, Wd)

    # NOTE: for large H/W/C this whole-image-per-grid-step layout should be row-tiled
    # (halo in the index_map) to bound double-buffered VMEM, esp. on v7x (64 MiB VMEM).
    out_flat = pl.pallas_call(
        kernel,
        out_shape=jax.ShapeDtypeStruct((N, Hout * Wout, Cout), x.dtype),
        grid=(N,),
        in_specs=in_specs,
        out_specs=pl.BlockSpec((None, Hout * Wout, Cout), lambda n: (n, 0, 0)),
        scratch_shapes=[pltpu.VMEM((Hc, Wc, Cmax), jnp.float32),
                        pltpu.VMEM((H * W, K * K * Cmax), jnp.float32)],
        compiler_params=pltpu.CompilerParams(dimension_semantics=("parallel",)),
    )(*args)

    # glue: (N, Hout*Wout, Cout) -> NCHW
    return jnp.transpose(out_flat.reshape(N, Hout, Wout, Cout), (0, 3, 1, 2))


# ----------------------------------------------------------------------------
# Parameter init (same conventions as before)
# ----------------------------------------------------------------------------
def init_params(key, Cin, Cout, K, num_layers):
    keys = jax.random.split(key, 4 * num_layers + 1)
    layers = []
    c_in, idx = Cin, 0
    for _ in range(num_layers):
        dw_w = jax.random.normal(keys[idx], (K, K, c_in), jnp.float32) * 0.2; idx += 1
        dw_b = jax.random.normal(keys[idx], (1, c_in), jnp.float32) * 0.1;    idx += 1
        pw_w = jax.random.normal(keys[idx], (c_in, Cout), jnp.float32) * 0.2; idx += 1
        pw_b = jax.random.normal(keys[idx], (1, Cout), jnp.float32) * 0.1;    idx += 1
        layers.append((dw_w, dw_b, pw_w, pw_b))
        c_in = Cout
    ws = jax.random.normal(keys[idx], (Cin, Cout), jnp.float32) * 0.2
    return layers, ws


# ----------------------------------------------------------------------------
# Pure-JAX reference (same semantics as the PyTorch module), NCHW in/out
# ----------------------------------------------------------------------------
def _ref_sepconv_selu(x, dw_w, dw_b, pw_w, pw_b, K):
    N, H, W, Cin = x.shape
    p = K // 2
    w_dw = dw_w.reshape(K, K, 1, Cin)
    y = jax.lax.conv_general_dilated(
        x, w_dw, (1, 1), [(p, p), (p, p)],
        dimension_numbers=("NHWC", "HWIO", "NHWC"),
        feature_group_count=Cin)
    y = y + dw_b.reshape(1, 1, 1, Cin)
    y = jnp.einsum("nhwc,cd->nhwd", y, pw_w) + pw_b.reshape(1, 1, 1, -1)
    return jax.nn.selu(y)


def ref_forward(x_nchw, layers, ws, K, pool, short):
    x = jnp.transpose(x_nchw, (0, 2, 3, 1))
    out = x
    for (dw_w, dw_b, pw_w, pw_b) in layers:
        out = _ref_sepconv_selu(out, dw_w, dw_b, pw_w, pw_b, K)
    if pool:
        out = jax.lax.reduce_window(
            out, -jnp.inf, jax.lax.max,
            (1, K, K, 1), (1, 2, 2, 1),
            [(0, 0), (1, 1), (1, 1), (0, 0)])
    if short:
        xs = x[:, ::2, ::2, :] if pool else x
        sc = jnp.einsum("nhwc,cd->nhwd", xs, ws)
        out = jax.nn.selu(out + sc)
    return jnp.transpose(out, (0, 3, 1, 2))


if __name__ == "__main__":
    N, Cin, Cout, H, W = 2, 4, 8, 16, 16
    K, num_layers, pool, short = 3, 2, True, True

    key = jax.random.PRNGKey(0)
    kx, kp = jax.random.split(key)
    x = jax.random.normal(kx, (N, Cin, H, W), jnp.float32)   # NCHW like the PyTorch module
    layers, ws = init_params(kp, Cin, Cout, K, num_layers)

    out = residual_block_forward(x, layers, ws, K, pool, short)
    out = jax.block_until_ready(out)

    ref = ref_forward(x, layers, ws, K, pool, short)
    np.testing.assert_allclose(np.asarray(out), np.asarray(ref), rtol=2e-2, atol=2e-2)

    print("KERNEL_OK")
</pallas_src>

<mosaic_0001>
module attributes {stable_mosaic.version = 11 : i64} {
  func.func @kernel(%arg0: i32, %arg1: memref<1x16x16x4xf32, #tpu.memory_space<vmem>>, %arg2: memref<36x8xf32, #tpu.memory_space<vmem>>, %arg3: memref<1x8xf32, #tpu.memory_space<vmem>>, %arg4: memref<72x8xf32, #tpu.memory_space<vmem>>, %arg5: memref<1x8xf32, #tpu.memory_space<vmem>>, %arg6: memref<64x256xf32, #tpu.memory_space<vmem>>, %arg7: memref<64x256xf32, #tpu.memory_space<vmem>>, %arg8: memref<4x8xf32, #tpu.memory_space<vmem>>, %arg9: memref<1x64x8xf32, #tpu.memory_space<vmem>>, %arg10: memref<18x18x8xf32, #tpu.memory_space<vmem>>, %arg11: memref<256x72xf32, #tpu.memory_space<vmem>>) attributes {dimension_semantics = [#tpu.dimension_semantics<parallel>], iteration_bounds = array<i64: 2>, scalar_prefetch = 0 : i64, scratch_operands = 2 : i64, tpu.core_type = #tpu.core_type<tc>, window_params = [{transform_indices = @transform_0, window_bounds = array<i64: 1, 16, 16, 4>}, {pipeline_mode = #tpu.pipeline_mode<synchronous>, transform_indices = @transform_1, window_bounds = array<i64: 36, 8>}, {pipeline_mode = #tpu.pipeline_mode<synchronous>, transform_indices = @transform_2, window_bounds = array<i64: 1, 8>}, {pipeline_mode = #tpu.pipeline_mode<synchronous>, transform_indices = @transform_3, window_bounds = array<i64: 72, 8>}, {pipeline_mode = #tpu.pipeline_mode<synchronous>, transform_indices = @transform_4, window_bounds = array<i64: 1, 8>}, {pipeline_mode = #tpu.pipeline_mode<synchronous>, transform_indices = @transform_5, window_bounds = array<i64: 64, 256>}, {pipeline_mode = #tpu.pipeline_mode<synchronous>, transform_indices = @transform_6, window_bounds = array<i64: 64, 256>}, {pipeline_mode = #tpu.pipeline_mode<synchronous>, transform_indices = @transform_7, window_bounds = array<i64: 4, 8>}, {transform_indices = @transform_8, window_bounds = array<i64: 1, 64, 8>}]} {
    %cst = arith.constant 0.000000e+00 : f32
    %0 = vector.broadcast %cst : f32 to vector<18x18x8xf32>
    %c0 = arith.constant 0 : index
    %c0_0 = arith.constant 0 : index
    %c0_1 = arith.constant 0 : index
    %1 = vector.load %arg10[%c0, %c0_0, %c0_1] : memref<18x18x8xf32, #tpu.memory_space<vmem>>, vector<18x18x8xf32>
    tpu.vector_store %arg10[%c0, %c0_0, %c0_1], %0 {strides = array<i32>} : memref<18x18x8xf32, #tpu.memory_space<vmem>>, vector<18x18x8xf32>,
    %c0_2 = arith.constant 0 : index
    %c0_3 = arith.constant 0 : index
    %c0_4 = arith.constant 0 : index
    %c0_5 = arith.constant 0 : index
    %2 = vector.load %arg1[%c0_2, %c0_3, %c0_4, %c0_5] : memref<1x16x16x4xf32, #tpu.memory_space<vmem>>, vector<1x16x16x4xf32>
    %3 = vector.shape_cast %2 : vector<1x16x16x4xf32> to vector<16x16x4xf32>
    %c1 = arith.constant 1 : index
    %c1_6 = arith.constant 1 : index
    %c0_7 = arith.constant 0 : index
    %4 = vector.load %arg10[%c1, %c1_6, %c0_7] : memref<18x18x8xf32, #tpu.memory_space<vmem>>, vector<16x16x4xf32>
    tpu.vector_store %arg10[%c1, %c1_6, %c0_7], %3 {strides = array<i32>} : memref<18x18x8xf32, #tpu.memory_space<vmem>>, vector<16x16x4xf32>,
    %c0_8 = arith.constant 0 : index
    %c0_9 = arith.constant 0 : index
    %c0_10 = arith.constant 0 : index
    %5 = vector.load %arg10[%c0_8, %c0_9, %c0_10] : memref<18x18x8xf32, #tpu.memory_space<vmem>>, vector<18x18x8xf32>
    %6 = vector.extract_strided_slice %5 {offsets = [0, 0, 0], sizes = [16, 16, 4], strides = [1, 1, 1]} : vector<18x18x8xf32> to vector<16x16x4xf32>
    %7 = vector.shape_cast %6 : vector<16x16x4xf32> to vector<256x4xf32>
    %c0_11 = arith.constant 0 : index
    %c0_12 = arith.constant 0 : index
    %8 = vector.load %arg11[%c0_11, %c0_12] : memref<256x72xf32, #tpu.memory_space<vmem>>, vector<256x4xf32>
    tpu.vector_store %arg11[%c0_11, %c0_12], %7 {strides = array<i32>} : memref<256x72xf32, #tpu.memory_space<vmem>>, vector<256x4xf32>,
    %9 = vector.extract_strided_slice %5 {offsets = [0, 1, 0], sizes = [16, 16, 4], strides = [1, 1, 1]} : vector<18x18x8xf32> to vector<16x16x4xf32>
    %10 = vector.shape_cast %9 : vector<16x16x4xf32> to vector<256x4xf32>
    %c0_13 = arith.constant 0 : index
    %c4 = arith.constant 4 : index
    %11 = vector.load %arg11[%c0_13, %c4] : memref<256x72xf32, #tpu.memory_space<vmem>>, vector<256x4xf32>
    tpu.vector_store %arg11[%c0_13, %c4], %10 {strides = array<i32>} : memref<256x72xf32, #tpu.memory_space<vmem>>, vector<256x4xf32>,
    %12 = vector.extract_strided_slice %5 {offsets = [0, 2, 0], sizes = [16, 16, 4], strides = [1, 1, 1]} : vector<18x18x8xf32> to vector<16x16x4xf32>
    %13 = vector.shape_cast %12 : vector<16x16x4xf32> to vector<256x4xf32>
    %c0_14 = arith.constant 0 : index
    %c8 = arith.constant 8 : index
    %14 = vector.load %arg11[%c0_14, %c8] : memref<256x72xf32, #tpu.memory_space<vmem>>, vector<256x4xf32>
    tpu.vector_store %arg11[%c0_14, %c8], %13 {strides = array<i32>} : memref<256x72xf32, #tpu.memory_space<vmem>>, vector<256x4xf32>,
    %15 = vector.extract_strided_slice %5 {offsets = [1, 0, 0], sizes = [16, 16, 4], strides = [1, 1, 1]} : vector<18x18x8xf32> to vector<16x16x4xf32>
    %16 = vector.shape_cast %15 : vector<16x16x4xf32> to vector<256x4xf32>
    %c0_15 = arith.constant 0 : index
    %c12 = arith.constant 12 : index
    %17 = vector.load %arg11[%c0_15, %c12] : memref<256x72xf32, #tpu.memory_space<vmem>>, vector<256x4xf32>
    tpu.vector_store %arg11[%c0_15, %c12], %16 {strides = array<i32>} : memref<256x72xf32, #tpu.memory_space<vmem>>, vector<256x4xf32>,
    %18 = vector.extract_strided_slice %5 {offsets = [1, 1, 0], sizes = [16, 16, 4], strides = [1, 1, 1]} : vector<18x18x8xf32> to vector<16x16x4xf32>
    %19 = vector.shape_cast %18 : vector<16x16x4xf32> to vector<256x4xf32>
    %c0_16 = arith.constant 0 : index
    %c16 = arith.constant 16 : index
    %20 = vector.load %arg11[%c0_16, %c16] : memref<256x72xf32, #tpu.memory_space<vmem>>, vector<256x4xf32>
    tpu.vector_store %arg11[%c0_16, %c16], %19 {strides = array<i32>} : memref<256x72xf32, #tpu.memory_space<vmem>>, vector<256x4xf32>,
    %21 = vector.extract_strided_slice %5 {offsets = [1, 2, 0], sizes = [16, 16, 4], strides = [1, 1, 1]} : vector<18x18x8xf32> to vector<16x16x4xf32>
    %22 = vector.shape_cast %21 : vector<16x16x4xf32> to vector<256x4xf32>
    %c0_17 = arith.constant 0 : index
    %c20 = arith.constant 20 : index
    %23 = vector.load %arg11[%c0_17, %c20] : memref<256x72xf32, #tpu.memory_space<vmem>>, vector<256x4xf32>
    tpu.vector_store %arg11[%c0_17, %c20], %22 {strides = array<i32>} : memref<256x72xf32, #tpu.memory_space<vmem>>, vector<256x4xf32>,
    %24 = vector.extract_strided_slice %5 {offsets = [2, 0, 0], sizes = [16, 16, 4], strides = [1, 1, 1]} : vector<18x18x8xf32> to vector<16x16x4xf32>
    %25 = vector.shape_cast %24 : vector<16x16x4xf32> to vector<256x4xf32>
    %c0_18 = arith.constant 0 : index
    %c24 = arith.constant 24 : index
    %26 = vector.load %arg11[%c0_18, %c24] : memref<256x72xf32, #tpu.memory_space<vmem>>, vector<256x4xf32>
    tpu.vector_store %arg11[%c0_18, %c24], %25 {strides = array<i32>} : memref<256x72xf32, #tpu.memory_space<vmem>>, vector<256x4xf32>,
    %27 = vector.extract_strided_slice %5 {offsets = [2, 1, 0], sizes = [16, 16, 4], strides = [1, 1, 1]} : vector<18x18x8xf32> to vector<16x16x4xf32>
    %28 = vector.shape_cast %27 : vector<16x16x4xf32> to vector<256x4xf32>
    %c0_19 = arith.constant 0 : index
    %c28 = arith.constant 28 : index
    %29 = vector.load %arg11[%c0_19, %c28] : memref<256x72xf32, #tpu.memory_space<vmem>>, vector<256x4xf32>
    tpu.vector_store %arg11[%c0_19, %c28], %28 {strides = array<i32>} : memref<256x72xf32, #tpu.memory_space<vmem>>, vector<256x4xf32>,
    %30 = vector.extract_strided_slice %5 {offsets = [2, 2, 0], sizes = [16, 16, 4], strides = [1, 1, 1]} : vector<18x18x8xf32> to vector<16x16x4xf32>
    %31 = vector.shape_cast %30 : vector<16x16x4xf32> to vector<256x4xf32>
    %c0_20 = arith.constant 0 : index
    %c32 = arith.constant 32 : index
    %32 = vector.load %arg11[%c0_20, %c32] : memref<256x72xf32, #tpu.memory_space<vmem>>, vector<256x4xf32>
    tpu.vector_store %arg11[%c0_20, %c32], %31 {strides = array<i32>} : memref<256x72xf32, #tpu.memory_space<vmem>>, vector<256x4xf32>,
    %c0_21 = arith.constant 0 : index
    %c0_22 = arith.constant 0 : index
    %33 = vector.load %arg11[%c0_21, %c0_22] : memref<256x72xf32, #tpu.memory_space<vmem>>, vector<256x36xf32>
    %c0_23 = arith.constant 0 : index
    %c0_24 = arith.constant 0 : index
    %34 = vector.load %arg2[%c0_23, %c0_24] : memref<36x8xf32, #tpu.memory_space<vmem>>, vector<36x8xf32>
    %cst_25 = arith.constant dense<0.000000e+00> : vector<256x8xf32>
    %35 = tpu.matmul %33, %34, %cst_25 {dimension_numbers = #tpu.dot_dimension_numbers<[1], [0], [0], [1], [0, 0, 1, 1], [], []>} : vector<256x36xf32>, vector<36x8xf32>, vector<256x8xf32> -> vector<256x8xf32>
    %c0_26 = arith.constant 0 : index
    %c0_27 = arith.constant 0 : index
    %36 = vector.load %arg3[%c0_26, %c0_27] : memref<1x8xf32, #tpu.memory_space<vmem>>, vector<1x8xf32>
    %37 = vector.broadcast %36 : vector<1x8xf32> to vector<256x8xf32>
    %38 = arith.addf %35, %37 : vector<256x8xf32>
    %cst_28 = arith.constant 0.000000e+00 : f32
    %39 = vector.broadcast %cst_28 : f32 to vector<256x8xf32>
    %40 = arith.minimumf %38, %39 : vector<256x8xf32>
    %41 = math.exp %40 : vector<256x8xf32>
    %cst_29 = arith.constant 1.000000e+00 : f32
    %42 = vector.broadcast %cst_29 : f32 to vector<256x8xf32>
    %43 = arith.subf %41, %42 : vector<256x8xf32>
    %cst_30 = arith.constant 1.67326319 : f32
    %44 = vector.broadcast %cst_30 : f32 to vector<256x8xf32>
    %45 = arith.mulf %44, %43 : vector<256x8xf32>
    %cst_31 = arith.constant 0.000000e+00 : f32
    %46 = vector.broadcast %cst_31 : f32 to vector<256x8xf32>
    %47 = arith.cmpf ogt, %38, %46 : vector<256x8xf32>
    %48 = arith.select %47, %38, %45 : vector<256x8xi1>, vector<256x8xf32>
    %cst_32 = arith.constant 1.05070102 : f32
    %49 = vector.broadcast %cst_32 : f32 to vector<256x8xf32>
    %50 = arith.mulf %49, %48 : vector<256x8xf32>
    %51 = vector.shape_cast %50 : vector<256x8xf32> to vector<16x16x8xf32>
    %c1_33 = arith.constant 1 : index
    %c1_34 = arith.constant 1 : index
    %c0_35 = arith.constant 0 : index
    %52 = vector.load %arg10[%c1_33, %c1_34, %c0_35] : memref<18x18x8xf32, #tpu.memory_space<vmem>>, vector<16x16x8xf32>
    tpu.vector_store %arg10[%c1_33, %c1_34, %c0_35], %51 {strides = array<i32>} : memref<18x18x8xf32, #tpu.memory_space<vmem>>, vector<16x16x8xf32>,
    %c0_36 = arith.constant 0 : index
    %c0_37 = arith.constant 0 : index
    %c0_38 = arith.constant 0 : index
    %53 = vector.load %arg10[%c0_36, %c0_37, %c0_38] : memref<18x18x8xf32, #tpu.memory_space<vmem>>, vector<18x18x8xf32>
    %54 = vector.extract_strided_slice %53 {offsets = [0, 0, 0], sizes = [16, 16, 8], strides = [1, 1, 1]} : vector<18x18x8xf32> to vector<16x16x8xf32>
    %55 = vector.shape_cast %54 : vector<16x16x8xf32> to vector<256x8xf32>
    %c0_39 = arith.constant 0 : index
    %c0_40 = arith.constant 0 : index
    %56 = vector.load %arg11[%c0_39, %c0_40] : memref<256x72xf32, #tpu.memory_space<vmem>>, vector<256x8xf32>
    tpu.vector_store %arg11[%c0_39, %c0_40], %55 {strides = array<i32>} : memref<256x72xf32, #tpu.memory_space<vmem>>, vector<256x8xf32>,
    %57 = vector.extract_strided_slice %53 {offsets = [0, 1, 0], sizes = [16, 16, 8], strides = [1, 1, 1]} : vector<18x18x8xf32> to vector<16x16x8xf32>
    %58 = vector.shape_cast %57 : vector<16x16x8xf32> to vector<256x8xf32>
    %c0_41 = arith.constant 0 : index
    %c8_42 = arith.constant 8 : index
    %59 = vector.load %arg11[%c0_41, %c8_42] : memref<256x72xf32, #tpu.memory_space<vmem>>, vector<256x8xf32>
    tpu.vector_store %arg11[%c0_41, %c8_42], %58 {strides = array<i32>} : memref<256x72xf32, #tpu.memory_space<vmem>>, vector<256x8xf32>,
    %60 = vector.extract_strided_slice %53 {offsets = [0, 2, 0], sizes = [16, 16, 8], strides = [1, 1, 1]} : vector<18x18x8xf32> to vector<16x16x8xf32>
    %61 = vector.shape_cast %60 : vector<16x16x8xf32> to vector<256x8xf32>
    %c0_43 = arith.constant 0 : index
    %c16_44 = arith.constant 16 : index
    %62 = vector.load %arg11[%c0_43, %c16_44] : memref<256x72xf32, #tpu.memory_space<vmem>>, vector<256x8xf32>
    tpu.vector_store %arg11[%c0_43, %c16_44], %61 {strides = array<i32>} : memref<256x72xf32, #tpu.memory_space<vmem>>, vector<256x8xf32>,
    %63 = vector.extract_strided_slice %53 {offsets = [1, 0, 0], sizes = [16, 16, 8], strides = [1, 1, 1]} : vector<18x18x8xf32> to vector<16x16x8xf32>
    %64 = vector.shape_cast %63 : vector<16x16x8xf32> to vector<256x8xf32>
    %c0_45 = arith.constant 0 : index
    %c24_46 = arith.constant 24 : index
    %65 = vector.load %arg11[%c0_45, %c24_46] : memref<256x72xf32, #tpu.memory_space<vmem>>, vector<256x8xf32>
    tpu.vector_store %arg11[%c0_45, %c24_46], %64 {strides = array<i32>} : memref<256x72xf32, #tpu.memory_space<vmem>>, vector<256x8xf32>,
    %66 = vector.extract_strided_slice %53 {offsets = [1, 1, 0], sizes = [16, 16, 8], strides = [1, 1, 1]} : vector<18x18x8xf32> to vector<16x16x8xf32>
    %67 = vector.shape_cast %66 : vector<16x16x8xf32> to vector<256x8xf32>
    %c0_47 = arith.constant 0 : index
    %c32_48 = arith.constant 32 : index
    %68 = vector.load %arg11[%c0_47, %c32_48] : memref<256x72xf32, #tpu.memory_space<vmem>>, vector<256x8xf32>
    tpu.vector_store %arg11[%c0_47, %c32_48], %67 {strides = array<i32>} : memref<256x72xf32, #tpu.memory_space<vmem>>, vector<256x8xf32>,
    %69 = vector.extract_strided_slice %53 {offsets = [1, 2, 0], sizes = [16, 16, 8], strides = [1, 1, 1]} : vector<18x18x8xf32> to vector<16x16x8xf32>
    %70 = vector.shape_cast %69 : vector<16x16x8xf32> to vector<256x8xf32>
    %c0_49 = arith.constant 0 : index
    %c40 = arith.constant 40 : index
    %71 = vector.load %arg11[%c0_49, %c40] : memref<256x72xf32, #tpu.memory_space<vmem>>, vector<256x8xf32>
    tpu.vector_store %arg11[%c0_49, %c40], %70 {strides = array<i32>} : memref<256x72xf32, #tpu.memory_space<vmem>>, vector<256x8xf32>,
    %72 = vector.extract_strided_slice %53 {offsets = [2, 0, 0], sizes = [16, 16, 8], strides = [1, 1, 1]} : vector<18x18x8xf32> to vector<16x16x8xf32>
    %73 = vector.shape_cast %72 : vector<16x16x8xf32> to vector<256x8xf32>
    %c0_50 = arith.constant 0 : index
    %c48 = arith.constant 48 : index
    %74 = vector.load %arg11[%c0_50, %c48] : memref<256x72xf32, #tpu.memory_space<vmem>>, vector<256x8xf32>
    tpu.vector_store %arg11[%c0_50, %c48], %73 {strides = array<i32>} : memref<256x72xf32, #tpu.memory_space<vmem>>, vector<256x8xf32>,
    %75 = vector.extract_strided_slice %53 {offsets = [2, 1, 0], sizes = [16, 16, 8], strides = [1, 1, 1]} : vector<18x18x8xf32> to vector<16x16x8xf32>
    %76 = vector.shape_cast %75 : vector<16x16x8xf32> to vector<256x8xf32>
    %c0_51 = arith.constant 0 : index
    %c56 = arith.constant 56 : index
    %77 = vector.load %arg11[%c0_51, %c56] : memref<256x72xf32, #tpu.memory_space<vmem>>, vector<256x8xf32>
    tpu.vector_store %arg11[%c0_51, %c56], %76 {strides = array<i32>} : memref<256x72xf32, #tpu.memory_space<vmem>>, vector<256x8xf32>,
    %78 = vector.extract_strided_slice %53 {offsets = [2, 2, 0], sizes = [16, 16, 8], strides = [1, 1, 1]} : vector<18x18x8xf32> to vector<16x16x8xf32>
    %79 = vector.shape_cast %78 : vector<16x16x8xf32> to vector<256x8xf32>
    %c0_52 = arith.constant 0 : index
    %c64 = arith.constant 64 : index
    %80 = vector.load %arg11[%c0_52, %c64] : memref<256x72xf32, #tpu.memory_space<vmem>>, vector<256x8xf32>
    tpu.vector_store %arg11[%c0_52, %c64], %79 {strides = array<i32>} : memref<256x72xf32, #tpu.memory_space<vmem>>, vector<256x8xf32>,
    %c0_53 = arith.constant 0 : index
    %c0_54 = arith.constant 0 : index
    %81 = vector.load %arg11[%c0_53, %c0_54] : memref<256x72xf32, #tpu.memory_space<vmem>>, vector<256x72xf32>
    %c0_55 = arith.constant 0 : index
    %c0_56 = arith.constant 0 : index
    %82 = vector.load %arg4[%c0_55, %c0_56] : memref<72x8xf32, #tpu.memory_space<vmem>>, vector<72x8xf32>
    %cst_57 = arith.constant dense<0.000000e+00> : vector<256x8xf32>
    %83 = tpu.matmul %81, %82, %cst_57 {dimension_numbers = #tpu.dot_dimension_numbers<[1], [0], [0], [1], [0, 0, 1, 1], [], []>} : vector<256x72xf32>, vector<72x8xf32>, vector<256x8xf32> -> vector<256x8xf32>
    %c0_58 = arith.constant 0 : index
    %c0_59 = arith.constant 0 : index
    %84 = vector.load %arg5[%c0_58, %c0_59] : memref<1x8xf32, #tpu.memory_space<vmem>>, vector<1x8xf32>
    %85 = vector.broadcast %84 : vector<1x8xf32> to vector<256x8xf32>
    %86 = arith.addf %83, %85 : vector<256x8xf32>
    %cst_60 = arith.constant 0.000000e+00 : f32
    %87 = vector.broadcast %cst_60 : f32 to vector<256x8xf32>
    %88 = arith.minimumf %86, %87 : vector<256x8xf32>
    %89 = math.exp %88 : vector<256x8xf32>
    %cst_61 = arith.constant 1.000000e+00 : f32
    %90 = vector.broadcast %cst_61 : f32 to vector<256x8xf32>
    %91 = arith.subf %89, %90 : vector<256x8xf32>
    %cst_62 = arith.constant 1.67326319 : f32
    %92 = vector.broadcast %cst_62 : f32 to vector<256x8xf32>
    %93 = arith.mulf %92, %91 : vector<256x8xf32>
    %cst_63 = arith.constant 0.000000e+00 : f32
    %94 = vector.broadcast %cst_63 : f32 to vector<256x8xf32>
    %95 = arith.cmpf ogt, %86, %94 : vector<256x8xf32>
    %96 = arith.select %95, %86, %93 : vector<256x8xi1>, vector<256x8xf32>
    %cst_64 = arith.constant 1.05070102 : f32
    %97 = vector.broadcast %cst_64 : f32 to vector<256x8xf32>
    %98 = arith.mulf %97, %96 : vector<256x8xf32>
    %99 = vector.shape_cast %98 : vector<256x8xf32> to vector<16x16x8xf32>
    %cst_65 = arith.constant -1.000000e+30 : f32
    %100 = vector.broadcast %cst_65 : f32 to vector<18x18x8xf32>
    %c0_66 = arith.constant 0 : index
    %c0_67 = arith.constant 0 : index
    %c0_68 = arith.constant 0 : index
    %101 = vector.load %arg10[%c0_66, %c0_67, %c0_68] : memref<18x18x8xf32, #tpu.memory_space<vmem>>, vector<18x18x8xf32>
    tpu.vector_store %arg10[%c0_66, %c0_67, %c0_68], %100 {strides = array<i32>} : memref<18x18x8xf32, #tpu.memory_space<vmem>>, vector<18x18x8xf32>,
    %c1_69 = arith.constant 1 : index
    %c1_70 = arith.constant 1 : index
    %c0_71 = arith.constant 0 : index
    %102 = vector.load %arg10[%c1_69, %c1_70, %c0_71] : memref<18x18x8xf32, #tpu.memory_space<vmem>>, vector<16x16x8xf32>
    tpu.vector_store %arg10[%c1_69, %c1_70, %c0_71], %99 {strides = array<i32>} : memref<18x18x8xf32, #tpu.memory_space<vmem>>, vector<16x16x8xf32>,
    %c0_72 = arith.constant 0 : index
    %c0_73 = arith.constant 0 : index
    %c0_74 = arith.constant 0 : index
    %103 = vector.load %arg10[%c0_72, %c0_73, %c0_74] : memref<18x18x8xf32, #tpu.memory_space<vmem>>, vector<18x18x8xf32>
    %104 = vector.extract_strided_slice %103 {offsets = [0, 0, 0], sizes = [16, 16, 8], strides = [1, 1, 1]} : vector<18x18x8xf32> to vector<16x16x8xf32>
    %105 = vector.extract_strided_slice %103 {offsets = [0, 1, 0], sizes = [16, 16, 8], strides = [1, 1, 1]} : vector<18x18x8xf32> to vector<16x16x8xf32>
    %106 = arith.maximumf %104, %105 : vector<16x16x8xf32>
    %107 = vector.extract_strided_slice %103 {offsets = [0, 2, 0], sizes = [16, 16, 8], strides = [1, 1, 1]} : vector<18x18x8xf32> to vector<16x16x8xf32>
    %108 = arith.maximumf %106, %107 : vector<16x16x8xf32>
    %109 = vector.extract_strided_slice %103 {offsets = [1, 0, 0], sizes = [16, 16, 8], strides = [1, 1, 1]} : vector<18x18x8xf32> to vector<16x16x8xf32>
    %110 = arith.maximumf %108, %109 : vector<16x16x8xf32>
    %111 = vector.extract_strided_slice %103 {offsets = [1, 1, 0], sizes = [16, 16, 8], strides = [1, 1, 1]} : vector<18x18x8xf32> to vector<16x16x8xf32>
    %112 = arith.maximumf %110, %111 : vector<16x16x8xf32>
    %113 = vector.extract_strided_slice %103 {offsets = [1, 2, 0], sizes = [16, 16, 8], strides = [1, 1, 1]} : vector<18x18x8xf32> to vector<16x16x8xf32>
    %114 = arith.maximumf %112, %113 : vector<16x16x8xf32>
    %115 = vector.extract_strided_slice %103 {offsets = [2, 0, 0], sizes = [16, 16, 8], strides = [1, 1, 1]} : vector<18x18x8xf32> to vector<16x16x8xf32>
    %116 = arith.maximumf %114, %115 : vector<16x16x8xf32>
    %117 = vector.extract_strided_slice %103 {offsets = [2, 1, 0], sizes = [16, 16, 8], strides = [1, 1, 1]} : vector<18x18x8xf32> to vector<16x16x8xf32>
    %118 = arith.maximumf %116, %117 : vector<16x16x8xf32>
    %119 = vector.extract_strided_slice %103 {offsets = [2, 2, 0], sizes = [16, 16, 8], strides = [1, 1, 1]} : vector<18x18x8xf32> to vector<16x16x8xf32>
    %120 = arith.maximumf %118, %119 : vector<16x16x8xf32>
    %c0_75 = arith.constant 0 : index
    %c0_76 = arith.constant 0 : index
    %121 = vector.load %arg6[%c0_75, %c0_76] : memref<64x256xf32, #tpu.memory_space<vmem>>, vector<64x256xf32>
    %122 = vector.shape_cast %120 : vector<16x16x8xf32> to vector<256x8xf32>
    %cst_77 = arith.constant dense<0.000000e+00> : vector<64x8xf32>
    %123 = tpu.matmul %121, %122, %cst_77 {dimension_numbers = #tpu.dot_dimension_numbers<[1], [0], [0], [1], [0, 0, 1, 1], [], []>} : vector<64x256xf32>, vector<256x8xf32>, vector<64x8xf32> -> vector<64x8xf32>
    %c0_78 = arith.constant 0 : index
    %c0_79 = arith.constant 0 : index
    %c0_80 = arith.constant 0 : index
    %c0_81 = arith.constant 0 : index
    %124 = vector.load %arg1[%c0_78, %c0_79, %c0_80, %c0_81] : memref<1x16x16x4xf32, #tpu.memory_space<vmem>>, vector<1x16x16x4xf32>
    %125 = vector.shape_cast %124 : vector<1x16x16x4xf32> to vector<16x16x4xf32>
    %126 = vector.shape_cast %125 : vector<16x16x4xf32> to vector<256x4xf32>
    %c0_82 = arith.constant 0 : index
    %c0_83 = arith.constant 0 : index
    %127 = vector.load %arg7[%c0_82, %c0_83] : memref<64x256xf32, #tpu.memory_space<vmem>>, vector<64x256xf32>
    %cst_84 = arith.constant dense<0.000000e+00> : vector<64x4xf32>
    %128 = tpu.matmul %127, %126, %cst_84 {dimension_numbers = #tpu.dot_dimension_numbers<[1], [0], [0], [1], [0, 0, 1, 1], [], []>} : vector<64x256xf32>, vector<256x4xf32>, vector<64x4xf32> -> vector<64x4xf32>
    %c0_85 = arith.constant 0 : index
    %c0_86 = arith.constant 0 : index
    %129 = vector.load %arg8[%c0_85, %c0_86] : memref<4x8xf32, #tpu.memory_space<vmem>>, vector<4x8xf32>
    %cst_87 = arith.constant dense<0.000000e+00> : vector<64x8xf32>
    %130 = tpu.matmul %128, %129, %cst_87 {dimension_numbers = #tpu.dot_dimension_numbers<[1], [0], [0], [1], [0, 0, 1, 1], [], []>} : vector<64x4xf32>, vector<4x8xf32>, vector<64x8xf32> -> vector<64x8xf32>
    %131 = arith.addf %123, %130 : vector<64x8xf32>
    %cst_88 = arith.constant 0.000000e+00 : f32
    %132 = vector.broadcast %cst_88 : f32 to vector<64x8xf32>
    %133 = arith.minimumf %131, %132 : vector<64x8xf32>
    %134 = math.exp %133 : vector<64x8xf32>
    %cst_89 = arith.constant 1.000000e+00 : f32
    %135 = vector.broadcast %cst_89 : f32 to vector<64x8xf32>
    %136 = arith.subf %134, %135 : vector<64x8xf32>
    %cst_90 = arith.constant 1.67326319 : f32
    %137 = vector.broadcast %cst_90 : f32 to vector<64x8xf32>
    %138 = arith.mulf %137, %136 : vector<64x8xf32>
    %cst_91 = arith.constant 0.000000e+00 : f32
    %139 = vector.broadcast %cst_91 : f32 to vector<64x8xf32>
    %140 = arith.cmpf ogt, %131, %139 : vector<64x8xf32>
    %141 = arith.select %140, %131, %138 : vector<64x8xi1>, vector<64x8xf32>
    %cst_92 = arith.constant 1.05070102 : f32
    %142 = vector.broadcast %cst_92 : f32 to vector<64x8xf32>
    %143 = arith.mulf %142, %141 : vector<64x8xf32>
    %c0_93 = arith.constant 0 : index
    %c0_94 = arith.constant 0 : index
    %c0_95 = arith.constant 0 : index
    %144 = vector.load %arg9[%c0_93, %c0_94, %c0_95] : memref<1x64x8xf32, #tpu.memory_space<vmem>>, vector<1x64x8xf32>
    %145 = vector.shape_cast %144 : vector<1x64x8xf32> to vector<64x8xf32>
    %146 = vector.shape_cast %143 : vector<64x8xf32> to vector<1x64x8xf32>
    tpu.vector_store %arg9[%c0_93, %c0_94, %c0_95], %146 {strides = array<i32>} : memref<1x64x8xf32, #tpu.memory_space<vmem>>, vector<1x64x8xf32>,
    return
  }
  func.func @transform_0(%arg0: i32) -> (i32, i32, i32, i32) {
    %c0_i32 = arith.constant 0 : i32
    %c0_i32_0 = arith.constant 0 : i32
    %c0_i32_1 = arith.constant 0 : i32
    %c0_i32_2 = arith.constant 0 : i32
    return %arg0, %c0_i32, %c0_i32_0, %c0_i32_1 : i32, i32, i32, i32
  }
  func.func @transform_1(%arg0: i32) -> (i32, i32) {
    %c0_i32 = arith.constant 0 : i32
    %c0_i32_0 = arith.constant 0 : i32
    %c0_i32_1 = arith.constant 0 : i32
    return %c0_i32, %c0_i32_0 : i32, i32
  }
  func.func @transform_2(%arg0: i32) -> (i32, i32) {
    %c0_i32 = arith.constant 0 : i32
    %c0_i32_0 = arith.constant 0 : i32
    %c0_i32_1 = arith.constant 0 : i32
    return %c0_i32, %c0_i32_0 : i32, i32
  }
  func.func @transform_3(%arg0: i32) -> (i32, i32) {
    %c0_i32 = arith.constant 0 : i32
    %c0_i32_0 = arith.constant 0 : i32
    %c0_i32_1 = arith.constant 0 : i32
    return %c0_i32, %c0_i32_0 : i32, i32
  }
  func.func @transform_4(%arg0: i32) -> (i32, i32) {
    %c0_i32 = arith.constant 0 : i32
    %c0_i32_0 = arith.constant 0 : i32
    %c0_i32_1 = arith.constant 0 : i32
    return %c0_i32, %c0_i32_0 : i32, i32
  }
  func.func @transform_5(%arg0: i32) -> (i32, i32) {
    %c0_i32 = arith.constant 0 : i32
    %c0_i32_0 = arith.constant 0 : i32
    %c0_i32_1 = arith.constant 0 : i32
    return %c0_i32, %c0_i32_0 : i32, i32
  }
  func.func @transform_6(%arg0: i32) -> (i32, i32) {
    %c0_i32 = arith.constant 0 : i32
    %c0_i32_0 = arith.constant 0 : i32
    %c0_i32_1 = arith.constant 0 : i32
    return %c0_i32, %c0_i32_0 : i32, i32
  }
  func.func @transform_7(%arg0: i32) -> (i32, i32) {
    %c0_i32 = arith.constant 0 : i32
    %c0_i32_0 = arith.constant 0 : i32
    %c0_i32_1 = arith.constant 0 : i32
    return %c0_i32, %c0_i32_0 : i32, i32
  }
  func.func @transform_8(%arg0: i32) -> (i32, i32, i32) {
    %c0_i32 = arith.constant 0 : i32
    %c0_i32_0 = arith.constant 0 : i32
    %c0_i32_1 = arith.constant 0 : i32
    return %arg0, %c0_i32, %c0_i32_0 : i32, i32, i32
  }
}

</mosaic_0001>

<llo_original>
// kernel: tpu_custom_call.1
$region0: #{tpu_custom_call.1}
  #allocation0 [shape = 'u32[]', space=smem, size = 0x4, offset = 0x4, fixed_abs, tag = 'smem constant byte address 0x4 - core index']
  #allocation1 [shape = 'u32[144,128]{1,0:T(1,128)}', space=vmem, size = 0x12000, scoped, tag = 'internal scratch']
  #allocation2 [shape = 'f32[18,18,8]{2,1,0:T(8,128)}', space=vmem, size = 0x36000, scoped, tag = 'scratch operand']
  #allocation3 [shape = 'f32[256,72]{1,0:T(8,128)}', space=vmem, size = 0x20000, scoped, tag = 'scratch operand']
  %s0 = inlined_call_operand.vmem [shape: f32[2,16,16,4], index: 0, kind: input, shape index: {}]
  %s1 = inlined_call_operand.vmem [shape: f32[36,8], index: 1, kind: input, shape index: {}]
  %s2 = inlined_call_operand.vmem [shape: f32[1,8], index: 2, kind: input, shape index: {}]
  %s3 = inlined_call_operand.vmem [shape: f32[72,8], index: 3, kind: input, shape index: {}]
  %s4 = inlined_call_operand.vmem [shape: f32[1,8], index: 4, kind: input, shape index: {}]
  %s5 = inlined_call_operand.vmem [shape: f32[64,256], index: 5, kind: input, shape index: {}]
  %s6 = inlined_call_operand.vmem [shape: f32[64,256], index: 6, kind: input, shape index: {}]
  %s7 = inlined_call_operand.vmem [shape: f32[4,8], index: 7, kind: input, shape index: {}]
  %s8 = inlined_call_operand.vmem [shape: f32[2,64,8], index: 8, kind: output, shape index: {}]
  %s9 = sld [smem:[#allocation0]]
  $region65: #{tpu_custom_call.1} parent=0
    _
  %s11 = ssub.s32 1, %s9
  %s12 = scalar_select 0, %s11, %s9
  loop: start=0, step=1, limit=4
  $region2: #{tpu_custom_call.1} parent=0 // loop_pre_header
    _
  $region3: #{tpu_custom_call.1} parent=0 // loop_header
    %s14 = sphi 0, %s18
    %p15 = scmp.ge.s32.totalorder %s14, 4
    %s24 = sphi 0, %s26
    %s27 = sphi 0, %s24
    %s28 = sphi 0, %s27
    %s44 = sphi 0, %s28
    %s48 = sphi 0, %s48
    %s50 = sphi 0, %s48
    %s51 = sphi 0, %s50
    %s65 = sphi 0, %s51
    %s69 = sphi 0, %s69
    %s71 = sphi 0, %s69
    %s72 = sphi 0, %s71
    %s86 = sphi 0, %s72
    %s90 = sphi 0, %s90
    %s92 = sphi 0, %s90
    %s93 = sphi 0, %s92
    %s107 = sphi 0, %s93
    %s111 = sphi 0, %s111
    %s113 = sphi 0, %s111
    %s114 = sphi 0, %s113
    %s128 = sphi 0, %s114
    %s132 = sphi 0, %s132
    %s134 = sphi 0, %s132
    %s135 = sphi 0, %s134
    %s149 = sphi 0, %s135
    %s153 = sphi 0, %s153
    %s155 = sphi 0, %s153
    %s156 = sphi 0, %s155
    %s170 = sphi 0, %s156
    %s174 = sphi 0, %s174
    %s176 = sphi 0, %s174
    %s177 = sphi 0, %s176
    %s191 = sphi 0, %s177
    %s197 = sphi 0, %s199
    %s200 = sphi 0, %s197
    %s201 = sphi 0, %s200
    %s217 = sphi 0, %s201
  $region4: #{tpu_custom_call.1} parent=0 // loop_header_branch
    %17 = sbr.rel (%p15) target = $region8
  $region5: #{tpu_custom_call.1} parent=0 // loop_body
    %s19 = ssub.s32 %s14, 1
    %s20 = ssub.s32 %s14, 2
    %s21 = sadd.s32 %s14, 1
    %s22 = ssub.s32 %s14, %s21
    %p23 = scmp.eq.s32.totalorder %s22, 0
    %s25 = sadd.s32 %s24, 1
    %s26 = scalar_select %p23, %s24, %s25
    %p29 = pneg %p23
    %p30 = scmp.eq.s32.totalorder %s14, 1
    %p31 = por %p29, %p30
    %p32 = scmp.ne.s32.totalorder %s24, %s27
    %p33 = scmp.eq.s32.totalorder %s14, 0
    %p34 = por %p32, %p33
    %p35 = scmp.ne.s32.totalorder %s24, %s27
    %p36 = scmp.eq.s32.totalorder %s19, 1
    %p37 = por %p35, %p36
    %p38 = scmp.ne.s32.totalorder %s27, %s28
    %p39 = scmp.eq.s32.totalorder %s19, 0
    %p40 = por %p38, %p39
    %p41 = scmp.ne.s32.totalorder %s27, %s28
    %p42 = scmp.eq.s32.totalorder %s20, 1
    %p43 = por %p41, %p42
    %p45 = scmp.ne.s32.totalorder %s28, %s44
    %p46 = scmp.eq.s32.totalorder %s20, 0
    %p47 = por %p45, %p46
    %s49 = sadd.s32 %s48, 1
    %p52 = scmp.eq.s32.totalorder %s14, 1
    %p53 = scmp.ne.s32.totalorder %s48, %s50
    %p54 = scmp.eq.s32.totalorder %s14, 0
    %p55 = por %p53, %p54
    %p56 = scmp.ne.s32.totalorder %s48, %s50
    %p57 = scmp.eq.s32.totalorder %s19, 1
    %p58 = por %p56, %p57
    %p59 = scmp.ne.s32.totalorder %s50, %s51
    %p60 = scmp.eq.s32.totalorder %s19, 0
    %p61 = por %p59, %p60
    %p62 = scmp.ne.s32.totalorder %s50, %s51
    %p63 = scmp.eq.s32.totalorder %s20, 1
    %p64 = por %p62, %p63
    %p66 = scmp.ne.s32.totalorder %s51, %s65
    %p67 = scmp.eq.s32.totalorder %s20, 0
    %p68 = por %p66, %p67
    %s70 = sadd.s32 %s69, 1
    %p73 = scmp.eq.s32.totalorder %s14, 1
    %p74 = scmp.ne.s32.totalorder %s69, %s71
    %p75 = scmp.eq.s32.totalorder %s14, 0
    %p76 = por %p74, %p75
    %p77 = scmp.ne.s32.totalorder %s69, %s71
    %p78 = scmp.eq.s32.totalorder %s19, 1
    %p79 = por %p77, %p78
    %p80 = scmp.ne.s32.totalorder %s71, %s72
    %p81 = scmp.eq.s32.totalorder %s19, 0
    %p82 = por %p80, %p81
    %p83 = scmp.ne.s32.totalorder %s71, %s72
    %p84 = scmp.eq.s32.totalorder %s20, 1
    %p85 = por %p83, %p84
    %p87 = scmp.ne.s32.totalorder %s72, %s86
    %p88 = scmp.eq.s32.totalorder %s20, 0
    %p89 = por %p87, %p88
    %s91 = sadd.s32 %s90, 1
    %p94 = scmp.eq.s32.totalorder %s14, 1
    %p95 = scmp.ne.s32.totalorder %s90, %s92
    %p96 = scmp.eq.s32.totalorder %s14, 0
    %p97 = por %p95, %p96
    %p98 = scmp.ne.s32.totalorder %s90, %s92
    %p99 = scmp.eq.s32.totalorder %s19, 1
    %p100 = por %p98, %p99
    %p101 = scmp.ne.s32.totalorder %s92, %s93
    %p102 = scmp.eq.s32.totalorder %s19, 0
    %p103 = por %p101, %p102
    %p104 = scmp.ne.s32.totalorder %s92, %s93
    %p105 = scmp.eq.s32.totalorder %s20, 1
    %p106 = por %p104, %p105
    %p108 = scmp.ne.s32.totalorder %s93, %s107
    %p109 = scmp.eq.s32.totalorder %s20, 0
    %p110 = por %p108, %p109
    %s112 = sadd.s32 %s111, 1
    %p115 = scmp.eq.s32.totalorder %s14, 1
    %p116 = scmp.ne.s32.totalorder %s111, %s113
    %p117 = scmp.eq.s32.totalorder %s14, 0
    %p118 = por %p116, %p117
    %p119 = scmp.ne.s32.totalorder %s111, %s113
    %p120 = scmp.eq.s32.totalorder %s19, 1
    %p121 = por %p119, %p120
    %p122 = scmp.ne.s32.totalorder %s113, %s114
    %p123 = scmp.eq.s32.totalorder %s19, 0
    %p124 = por %p122, %p123
    %p125 = scmp.ne.s32.totalorder %s113, %s114
    %p126 = scmp.eq.s32.totalorder %s20, 1
    %p127 = por %p125, %p126
    %p129 = scmp.ne.s32.totalorder %s114, %s128
    %p130 = scmp.eq.s32.totalorder %s20, 0
    %p131 = por %p129, %p130
    %s133 = sadd.s32 %s132, 1
    %p136 = scmp.eq.s32.totalorder %s14, 1
    %p137 = scmp.ne.s32.totalorder %s132, %s134
    %p138 = scmp.eq.s32.totalorder %s14, 0
    %p139 = por %p137, %p138
    %p140 = scmp.ne.s32.totalorder %s132, %s134
    %p141 = scmp.eq.s32.totalorder %s19, 1
    %p142 = por %p140, %p141
    %p143 = scmp.ne.s32.totalorder %s134, %s135
    %p144 = scmp.eq.s32.totalorder %s19, 0
    %p145 = por %p143, %p144
    %p146 = scmp.ne.s32.totalorder %s134, %s135
    %p147 = scmp.eq.s32.totalorder %s20, 1
    %p148 = por %p146, %p147
    %p150 = scmp.ne.s32.totalorder %s135, %s149
    %p151 = scmp.eq.s32.totalorder %s20, 0
    %p152 = por %p150, %p151
    %s154 = sadd.s32 %s153, 1
    %p157 = scmp.eq.s32.totalorder %s14, 1
    %p158 = scmp.ne.s32.totalorder %s153, %s155
    %p159 = scmp.eq.s32.totalorder %s14, 0
    %p160 = por %p158, %p159
    %p161 = scmp.ne.s32.totalorder %s153, %s155
    %p162 = scmp.eq.s32.totalorder %s19, 1
    %p163 = por %p161, %p162
    %p164 = scmp.ne.s32.totalorder %s155, %s156
    %p165 = scmp.eq.s32.totalorder %s19, 0
    %p166 = por %p164, %p165
    %p167 = scmp.ne.s32.totalorder %s155, %s156
    %p168 = scmp.eq.s32.totalorder %s20, 1
    %p169 = por %p167, %p168
    %p171 = scmp.ne.s32.totalorder %s156, %s170
    %p172 = scmp.eq.s32.totalorder %s20, 0
    %p173 = por %p171, %p172
    %s175 = sadd.s32 %s174, 1
    %p178 = scmp.eq.s32.totalorder %s14, 1
    %p179 = scmp.ne.s32.totalorder %s174, %s176
    %p180 = scmp.eq.s32.totalorder %s14, 0
    %p181 = por %p179, %p180
    %p182 = scmp.ne.s32.totalorder %s174, %s176
    %p183 = scmp.eq.s32.totalorder %s19, 1
    %p184 = por %p182, %p183
    %p185 = scmp.ne.s32.totalorder %s176, %s177
    %p186 = scmp.eq.s32.totalorder %s19, 0
    %p187 = por %p185, %p186
    %p188 = scmp.ne.s32.totalorder %s176, %s177
    %p189 = scmp.eq.s32.totalorder %s20, 1
    %p190 = por %p188, %p189
    %p192 = scmp.ne.s32.totalorder %s177, %s191
    %p193 = scmp.eq.s32.totalorder %s20, 0
    %p194 = por %p192, %p193
    %s195 = ssub.s32 %s14, %s21
    %p196 = scmp.eq.s32.totalorder %s195, 0
    %s198 = sadd.s32 %s197, 1
    %s199 = scalar_select %p196, %s197, %s198
    %p202 = pneg %p196
    %p203 = scmp.eq.s32.totalorder %s14, 1
    %p204 = por %p202, %p203
    %p205 = scmp.ne.s32.totalorder %s197, %s200
    %p206 = scmp.eq.s32.totalorder %s14, 0
    %p207 = por %p205, %p206
    %p208 = scmp.ne.s32.totalorder %s197, %s200
    %p209 = scmp.eq.s32.totalorder %s19, 1
    %p210 = por %p208, %p209
    %p211 = scmp.ne.s32.totalorder %s200, %s201
    %p212 = scmp.eq.s32.totalorder %s19, 0
    %p213 = por %p211, %p212
    %p214 = scmp.ne.s32.totalorder %s200, %s201
    %p215 = scmp.eq.s32.totalorder %s20, 1
    %p216 = por %p214, %p215
    %p218 = scmp.ne.s32.totalorder %s201, %s217
    %p219 = scmp.eq.s32.totalorder %s20, 0
    %p220 = por %p218, %p219
    %p221 = scmp.le.s32.totalorder 1, %s14
    %p222 = scmp.lt.s32.totalorder %s14, 3
    %p223 = pnand %p221, %p222
    %p224 = pneg %p223
    // Predicated region
    $region9: #{tpu_custom_call.1} parent=5 // pred_check
      _
    $region10: #{tpu_custom_call.1} parent=5 // pred_check_branch
      %226 = sbr.rel (%p223) target = $region12
    $region11: #{tpu_custom_call.1} parent=5 // pred_region
      %s227 = ssub.s32 %s14, 1
      // Predicated region
      $region13: #{tpu_custom_call.1} parent=11 // pred_check
        %p228 = pneg %p61
      $region14: #{tpu_custom_call.1} parent=11 // pred_check_branch
        %230 = sbr.rel (%p228) target = $region16
      $region15: #{tpu_custom_call.1} parent=11 // pred_region
        _
      $region16: #{tpu_custom_call.1} parent=11 // pred_fallthru
        _
      // Predicated region
      $region17: #{tpu_custom_call.1} parent=11 // pred_check
        %p231 = pneg %p82
      $region18: #{tpu_custom_call.1} parent=11 // pred_check_branch
        %233 = sbr.rel (%p231) target = $region20
      $region19: #{tpu_custom_call.1} parent=11 // pred_region
        _
      $region20: #{tpu_custom_call.1} parent=11 // pred_fallthru
        _
      // Predicated region
      $region21: #{tpu_custom_call.1} parent=11 // pred_check
        %p234 = pneg %p103
      $region22: #{tpu_custom_call.1} parent=11 // pred_check_branch
        %236 = sbr.rel (%p234) target = $region24
      $region23: #{tpu_custom_call.1} parent=11 // pred_region
        _
      $region24: #{tpu_custom_call.1} parent=11 // pred_fallthru
        _
      // Predicated region
      $region25: #{tpu_custom_call.1} parent=11 // pred_check
        %p237 = pneg %p124
      $region26: #{tpu_custom_call.1} parent=11 // pred_check_branch
        %239 = sbr.rel (%p237) target = $region28
      $region27: #{tpu_custom_call.1} parent=11 // pred_region
        _
      $region28: #{tpu_custom_call.1} parent=11 // pred_fallthru
        _
      // Predicated region
      $region29: #{tpu_custom_call.1} parent=11 // pred_check
        %p240 = pneg %p145
      $region30: #{tpu_custom_call.1} parent=11 // pred_check_branch
        %242 = sbr.rel (%p240) target = $region32
      $region31: #{tpu_custom_call.1} parent=11 // pred_region
        _
      $region32: #{tpu_custom_call.1} parent=11 // pred_fallthru
        _
      // Predicated region
      $region33: #{tpu_custom_call.1} parent=11 // pred_check
        %p243 = pneg %p166
      $region34: #{tpu_custom_call.1} parent=11 // pred_check_branch
        %245 = sbr.rel (%p243) target = $region36
      $region35: #{tpu_custom_call.1} parent=11 // pred_region
        _
      $region36: #{tpu_custom_call.1} parent=11 // pred_fallthru
        _
      // Predicated region
      $region37: #{tpu_custom_call.1} parent=11 // pred_check
        %p246 = pneg %p187
      $region38: #{tpu_custom_call.1} parent=11 // pred_check_branch
        %248 = sbr.rel (%p246) target = $region40
      $region39: #{tpu_custom_call.1} parent=11 // pred_region
        _
      $region40: #{tpu_custom_call.1} parent=11 // pred_fallthru
        _
    $region12: #{tpu_custom_call.1} parent=5 // pred_fallthru
      _
    %p249 = scmp.lt.s32.totalorder %s14, 2
    // Predicated region
    $region41: #{tpu_custom_call.1} parent=5 // pred_check
      %p250 = pneg %p249
    $region42: #{tpu_custom_call.1} parent=5 // pred_check_branch
      %252 = sbr.rel (%p250) target = $region44
    $region43: #{tpu_custom_call.1} parent=5 // pred_region
      // Predicated region
      $region45: #{tpu_custom_call.1} parent=43 // pred_check
        %p253 = pneg %p34
      $region46: #{tpu_custom_call.1} parent=43 // pred_check_branch
        %255 = sbr.rel (%p253) target = $region48
      $region47: #{tpu_custom_call.1} parent=43 // pred_region
        %p256 = scmp.lt.s32.totalorder %s14, 1
        %s257 = scalar_select %p256, %s14, 1
        %s258 = smul.addr %s257, 32
        %s259 = smul.addr %s258, 8
        %s260 = scalar_lea.vmem %s0, %s259
      $region48: #{tpu_custom_call.1} parent=43 // pred_fallthru
        _
    $region44: #{tpu_custom_call.1} parent=5 // pred_fallthru
      _
    %p261 = scmp.le.s32.totalorder 1, %s14
    %p262 = scmp.lt.s32.totalorder %s14, 3
    %p263 = pnand %p261, %p262
    %p264 = pneg %p263
    // Predicated region
    $region49: #{tpu_custom_call.1} parent=5 // pred_check
      _
    $region50: #{tpu_custom_call.1} parent=5 // pred_check_branch
      %266 = sbr.rel (%p263) target = $region52
    $region51: #{tpu_custom_call.1} parent=5 // pred_region
      %s267 = ssub.s32 %s14, 1
      %p268 = scmp.lt.s32.totalorder %s19, 1
      %s269 = scalar_select %p268, %s19, 1
      %s270 = smul.addr %s269, 32
      %s271 = smul.addr %s270, 8
      %s272 = scalar_lea.vmem %s0, %s271
      %p273 = pneg %p40
      %p274 = pneg %p37
      %p275 = pneg %p61
      %p276 = pneg %p58
      %p277 = pneg %p82
      %p278 = pneg %p79
      %p279 = pneg %p103
      %p280 = pneg %p100
      %p281 = pneg %p124
      %p282 = pneg %p121
      %p283 = pneg %p145
      %p284 = pneg %p142
      %p285 = pneg %p166
      %p286 = pneg %p163
      %p287 = pneg %p187
      %p288 = pneg %p184
      %p289 = pneg %p213
      %p290 = pneg %p210
      %p291 = scmp.lt.s32.totalorder %s19, 1
      %s292 = scalar_select %p291, %s19, 1
      %s293 = smul.addr %s292, 8
      %s294 = smul.addr %s293, 8
      %s295 = scalar_lea.vmem %s8, %s294
      %p296 = scmp.lt.s32.totalorder %s19, 1
      %s297 = scalar_select %p296, %s19, 1
      %s298 = smul.addr %s297, 32
      %s299 = smul.addr %s298, 8
      %s300 = scalar_lea.vmem %s0, %s299
      %p301 = scmp.lt.s32.totalorder %s19, 1
      %s302 = scalar_select %p301, %s19, 1
      %s303 = smul.addr %s302, 8
      %s304 = smul.addr %s303, 8
      %s305 = scalar_lea.vmem %s8, %s304
      %vm306 = vcmask 64512
      %307 = vst.msk [vmem:[#allocation2] sm:$0xff] %vm306, 0.0
      %308 = vst.msk [vmem:[#allocation2 + $0x8] sm:$0xff] %vm306, 0.0
      %vm309 = vcmask 58368
      %310 = vst.msk [vmem:[#allocation2 + $0x10] sm:$0x3] %vm309, 0.0
      %311 = vst.msk [vmem:[#allocation2 + $0x18] sm:$0xff] %vm306, 0.0
      %312 = vst.msk [vmem:[#allocation2 + $0x20] sm:$0xff] %vm306, 0.0
      %313 = vst.msk [vmem:[#allocation2 + $0x28] sm:$0x3] %vm309, 0.0
      %314 = vst.msk [vmem:[#allocation2 + $0x30] sm:$0xff] %vm306, 0.0
      %315 = vst.msk [vmem:[#allocation2 + $0x38] sm:$0xff] %vm306, 0.0
      %316 = vst.msk [vmem:[#allocation2 + $0x40] sm:$0x3] %vm309, 0.0
      %317 = vst.msk [vmem:[#allocation2 + $0x48] sm:$0xff] %vm306, 0.0
      %318 = vst.msk [vmem:[#allocation2 + $0x50] sm:$0xff] %vm306, 0.0
      %319 = vst.msk [vmem:[#allocation2 + $0x58] sm:$0x3] %vm309, 0.0
      %320 = vst.msk [vmem:[#allocation2 + $0x60] sm:$0xff] %vm306, 0.0
      %321 = vst.msk [vmem:[#allocation2 + $0x68] sm:$0xff] %vm306, 0.0
      %322 = vst.msk [vmem:[#allocation2 + $0x70] sm:$0x3] %vm309, 0.0
      %323 = vst.msk [vmem:[#allocation2 + $0x78] sm:$0xff] %vm306, 0.0
      %324 = vst.msk [vmem:[#allocation2 + $0x80] sm:$0xff] %vm306, 0.0
      %325 = vst.msk [vmem:[#allocation2 + $0x88] sm:$0x3] %vm309, 0.0
      %326 = vst.msk [vmem:[#allocation2 + $0x90] sm:$0xff] %vm306, 0.0
      %327 = vst.msk [vmem:[#allocation2 + $0x98] sm:$0xff] %vm306, 0.0
      %328 = vst.msk [vmem:[#allocation2 + $0xa0] sm:$0x3] %vm309, 0.0
      %329 = vst.msk [vmem:[#allocation2 + $0xa8] sm:$0xff] %vm306, 0.0
      %330 = vst.msk [vmem:[#allocation2 + $0xb0] sm:$0xff] %vm306, 0.0
      %331 = vst.msk [vmem:[#allocation2 + $0xb8] sm:$0x3] %vm309, 0.0
      %332 = vst.msk [vmem:[#allocation2 + $0xc0] sm:$0xff] %vm306, 0.0
      %333 = vst.msk [vmem:[#allocation2 + $0xc8] sm:$0xff] %vm306, 0.0
      %334 = vst.msk [vmem:[#allocation2 + $0xd0] sm:$0x3] %vm309, 0.0
      %335 = vst.msk [vmem:[#allocation2 + $0xd8] sm:$0xff] %vm306, 0.0
      %336 = vst.msk [vmem:[#allocation2 + $0xe0] sm:$0xff] %vm306, 0.0
      %337 = vst.msk [vmem:[#allocation2 + $0xe8] sm:$0x3] %vm309, 0.0
      %338 = vst.msk [vmem:[#allocation2 + $0xf0] sm:$0xff] %vm306, 0.0
      %339 = vst.msk [vmem:[#allocation2 + $0xf8] sm:$0xff] %vm306, 0.0
      %340 = vst.msk [vmem:[#allocation2 + $0x100] sm:$0x3] %vm309, 0.0
      %341 = vst.msk [vmem:[#allocation2 + $0x108] sm:$0xff] %vm306, 0.0
      %342 = vst.msk [vmem:[#allocation2 + $0x110] sm:$0xff] %vm306, 0.0
      %343 = vst.msk [vmem:[#allocation2 + $0x118] sm:$0x3] %vm309, 0.0
      %344 = vst.msk [vmem:[#allocation2 + $0x120] sm:$0xff] %vm306, 0.0
      %345 = vst.msk [vmem:[#allocation2 + $0x128] sm:$0xff] %vm306, 0.0
      %346 = vst.msk [vmem:[#allocation2 + $0x130] sm:$0x3] %vm309, 0.0
      %347 = vst.msk [vmem:[#allocation2 + $0x138] sm:$0xff] %vm306, 0.0
      %348 = vst.msk [vmem:[#allocation2 + $0x140] sm:$0xff] %vm306, 0.0
      %349 = vst.msk [vmem:[#allocation2 + $0x148] sm:$0x3] %vm309, 0.0
      %350 = vst.msk [vmem:[#allocation2 + $0x150] sm:$0xff] %vm306, 0.0
      %351 = vst.msk [vmem:[#allocation2 + $0x158] sm:$0xff] %vm306, 0.0
      %352 = vst.msk [vmem:[#allocation2 + $0x160] sm:$0x3] %vm309, 0.0
      %353 = vst.msk [vmem:[#allocation2 + $0x168] sm:$0xff] %vm306, 0.0
      %354 = vst.msk [vmem:[#allocation2 + $0x170] sm:$0xff] %vm306, 0.0
      %355 = vst.msk [vmem:[#allocation2 + $0x178] sm:$0x3] %vm309, 0.0
      %356 = vst.msk [vmem:[#allocation2 + $0x180] sm:$0xff] %vm306, 0.0
      %357 = vst.msk [vmem:[#allocation2 + $0x188] sm:$0xff] %vm306, 0.0
      %358 = vst.msk [vmem:[#allocation2 + $0x190] sm:$0x3] %vm309, 0.0
      %359 = vst.msk [vmem:[#allocation2 + $0x198] sm:$0xff] %vm306, 0.0
      %360 = vst.msk [vmem:[#allocation2 + $0x1a0] sm:$0xff] %vm306, 0.0
      %361 = vst.msk [vmem:[#allocation2 + $0x1a8] sm:$0x3] %vm309, 0.0
      %v362 = vld [vmem:[%s300] sm:$0xff]
      %v363 = vld [vmem:[%s300 + $0x8] sm:$0xff]
      %v364 = vld [vmem:[%s300 + $0x10] sm:$0xff]
      %v365 = vld [vmem:[%s300 + $0x18] sm:$0xff]
      %v366 = vld [vmem:[%s300 + $0x20] sm:$0xff]
      %v367 = vld [vmem:[%s300 + $0x28] sm:$0xff]
      %v368 = vld [vmem:[%s300 + $0x30] sm:$0xff]
      %v369 = vld [vmem:[%s300 + $0x38] sm:$0xff]
      %v370 = vld [vmem:[%s300 + $0x40] sm:$0xff]
      %v371 = vld [vmem:[%s300 + $0x48] sm:$0xff]
      %v372 = vld [vmem:[%s300 + $0x50] sm:$0xff]
      %v373 = vld [vmem:[%s300 + $0x58] sm:$0xff]
      %v374 = vld [vmem:[%s300 + $0x60] sm:$0xff]
      %v375 = vld [vmem:[%s300 + $0x68] sm:$0xff]
      %v376 = vld [vmem:[%s300 + $0x70] sm:$0xff]
      %v377 = vld [vmem:[%s300 + $0x78] sm:$0xff]
      %v378 = vld [vmem:[%s300 + $0x80] sm:$0xff]
      %v379 = vld [vmem:[%s300 + $0x88] sm:$0xff]
      %v380 = vld [vmem:[%s300 + $0x90] sm:$0xff]
      %v381 = vld [vmem:[%s300 + $0x98] sm:$0xff]
      %v382 = vld [vmem:[%s300 + $0xa0] sm:$0xff]
      %v383 = vld [vmem:[%s300 + $0xa8] sm:$0xff]
      %v384 = vld [vmem:[%s300 + $0xb0] sm:$0xff]
      %v385 = vld [vmem:[%s300 + $0xb8] sm:$0xff]
      %v386 = vld [vmem:[%s300 + $0xc0] sm:$0xff]
      %v387 = vld [vmem:[%s300 + $0xc8] sm:$0xff]
      %v388 = vld [vmem:[%s300 + $0xd0] sm:$0xff]
      %v389 = vld [vmem:[%s300 + $0xd8] sm:$0xff]
      %v390 = vld [vmem:[%s300 + $0xe0] sm:$0xff]
      %v391 = vld [vmem:[%s300 + $0xe8] sm:$0xff]
      %v392 = vld [vmem:[%s300 + $0xf0] sm:$0xff]
      %v393 = vld [vmem:[%s300 + $0xf8] sm:$0xff]
      %s394 = scalar_lea.vmem [#allocation2], 24
      %vm395 = vcmask 31744
      %396 = vst.msk [vmem:[%s394 + $0x1] sm:$0xff] %vm395, %v362
      %397 = vst.msk [vmem:[%s394 + $0x9] sm:$0xff] %vm395, %v363
      %398 = vst.msk [vmem:[%s394 + $0x19] sm:$0xff] %vm395, %v364
      %399 = vst.msk [vmem:[%s394 + $0x21] sm:$0xff] %vm395, %v365
      %400 = vst.msk [vmem:[%s394 + $0x31] sm:$0xff] %vm395, %v366
      %401 = vst.msk [vmem:[%s394 + $0x39] sm:$0xff] %vm395, %v367
      %402 = vst.msk [vmem:[%s394 + $0x49] sm:$0xff] %vm395, %v368
      %403 = vst.msk [vmem:[%s394 + $0x51] sm:$0xff] %vm395, %v369
      %404 = vst.msk [vmem:[%s394 + $0x61] sm:$0xff] %vm395, %v370
      %405 = vst.msk [vmem:[%s394 + $0x69] sm:$0xff] %vm395, %v371
      %406 = vst.msk [vmem:[%s394 + $0x79] sm:$0xff] %vm395, %v372
      %407 = vst.msk [vmem:[%s394 + $0x81] sm:$0xff] %vm395, %v373
      %408 = vst.msk [vmem:[%s394 + $0x91] sm:$0xff] %vm395, %v374
      %409 = vst.msk [vmem:[%s394 + $0x99] sm:$0xff] %vm395, %v375
      %410 = vst.msk [vmem:[%s394 + $0xa9] sm:$0xff] %vm395, %v376
      %411 = vst.msk [vmem:[%s394 + $0xb1] sm:$0xff] %vm395, %v377
      %412 = vst.msk [vmem:[%s394 + $0xc1] sm:$0xff] %vm395, %v378
      %413 = vst.msk [vmem:[%s394 + $0xc9] sm:$0xff] %vm395, %v379
      %414 = vst.msk [vmem:[%s394 + $0xd9] sm:$0xff] %vm395, %v380
      %415 = vst.msk [vmem:[%s394 + $0xe1] sm:$0xff] %vm395, %v381
      %416 = vst.msk [vmem:[%s394 + $0xf1] sm:$0xff] %vm395, %v382
      %417 = vst.msk [vmem:[%s394 + $0xf9] sm:$0xff] %vm395, %v383
      %418 = vst.msk [vmem:[%s394 + $0x109] sm:$0xff] %vm395, %v384
      %419 = vst.msk [vmem:[%s394 + $0x111] sm:$0xff] %vm395, %v385
      %420 = vst.msk [vmem:[%s394 + $0x121] sm:$0xff] %vm395, %v386
      %421 = vst.msk [vmem:[%s394 + $0x129] sm:$0xff] %vm395, %v387
      %422 = vst.msk [vmem:[%s394 + $0x139] sm:$0xff] %vm395, %v388
      %423 = vst.msk [vmem:[%s394 + $0x141] sm:$0xff] %vm395, %v389
      %424 = vst.msk [vmem:[%s394 + $0x151] sm:$0xff] %vm395, %v390
      %425 = vst.msk [vmem:[%s394 + $0x159] sm:$0xff] %vm395, %v391
      %426 = vst.msk [vmem:[%s394 + $0x169] sm:$0xff] %vm395, %v392
      %427 = vst.msk [vmem:[%s394 + $0x171] sm:$0xff] %vm395, %v393
      %v428 = vld [vmem:[#allocation2] sm:$0xff]
      %v429 = vld [vmem:[#allocation2 + $0x8] sm:$0xff]
      %v430 = vld [vmem:[#allocation2 + $0x10] sm:$0x3]
      %v431 = vld [vmem:[#allocation2 + $0x18] sm:$0xff]
      %v432 = vld [vmem:[#allocation2 + $0x20] sm:$0xff]
      %v433 = vld [vmem:[#allocation2 + $0x28] sm:$0x3]
      %v434 = vld [vmem:[#allocation2 + $0x30] sm:$0xff]
      %v435 = vld [vmem:[#allocation2 + $0x38] sm:$0xff]
      %v436 = vld [vmem:[#allocation2 + $0x40] sm:$0x3]
      %v437 = vld [vmem:[#allocation2 + $0x48] sm:$0xff]
      %v438 = vld [vmem:[#allocation2 + $0x50] sm:$0xff]
      %v439 = vld [vmem:[#allocation2 + $0x58] sm:$0x3]
      %v440 = vld [vmem:[#allocation2 + $0x60] sm:$0xff]
      %v441 = vld [vmem:[#allocation2 + $0x68] sm:$0xff]
      %v442 = vld [vmem:[#allocation2 + $0x70] sm:$0x3]
      %v443 = vld [vmem:[#allocation2 + $0x78] sm:$0xff]
      %v444 = vld [vmem:[#allocation2 + $0x80] sm:$0xff]
      %v445 = vld [vmem:[#allocation2 + $0x88] sm:$0x3]
      %v446 = vld [vmem:[#allocation2 + $0x90] sm:$0xff]
      %v447 = vld [vmem:[#allocation2 + $0x98] sm:$0xff]
      %v448 = vld [vmem:[#allocation2 + $0xa0] sm:$0x3]
      %v449 = vld [vmem:[#allocation2 + $0xa8] sm:$0xff]
      %v450 = vld [vmem:[#allocation2 + $0xb0] sm:$0xff]
      %v451 = vld [vmem:[#allocation2 + $0xb8] sm:$0x3]
      %v452 = vld [vmem:[#allocation2 + $0xc0] sm:$0xff]
      %v453 = vld [vmem:[#allocation2 + $0xc8] sm:$0xff]
      %v454 = vld [vmem:[#allocation2 + $0xd0] sm:$0x3]
      %v455 = vld [vmem:[#allocation2 + $0xd8] sm:$0xff]
      %v456 = vld [vmem:[#allocation2 + $0xe0] sm:$0xff]
      %v457 = vld [vmem:[#allocation2 + $0xe8] sm:$0x3]
      %v458 = vld [vmem:[#allocation2 + $0xf0] sm:$0xff]
      %v459 = vld [vmem:[#allocation2 + $0xf8] sm:$0xff]
      %v460 = vld [vmem:[#allocation2 + $0x100] sm:$0x3]
      %v461 = vld [vmem:[#allocation2 + $0x108] sm:$0xff]
      %v462 = vld [vmem:[#allocation2 + $0x110] sm:$0xff]
      %v463 = vld [vmem:[#allocation2 + $0x118] sm:$0x3]
      %v464 = vld [vmem:[#allocation2 + $0x120] sm:$0xff]
      %v465 = vld [vmem:[#allocation2 + $0x128] sm:$0xff]
      %v466 = vld [vmem:[#allocation2 + $0x130] sm:$0x3]
      %v467 = vld [vmem:[#allocation2 + $0x138] sm:$0xff]
      %v468 = vld [vmem:[#allocation2 + $0x140] sm:$0xff]
      %v469 = vld [vmem:[#allocation2 + $0x148] sm:$0x3]
      %v470 = vld [vmem:[#allocation2 + $0x150] sm:$0xff]
      %v471 = vld [vmem:[#allocation2 + $0x158] sm:$0xff]
      %v472 = vld [vmem:[#allocation2 + $0x160] sm:$0x3]
      %v473 = vld [vmem:[#allocation2 + $0x168] sm:$0xff]
      %v474 = vld [vmem:[#allocation2 + $0x170] sm:$0xff]
      %v475 = vld [vmem:[#allocation2 + $0x178] sm:$0x3]
      %v476 = vld [vmem:[#allocation2 + $0x180] sm:$0xff]
      %v477 = vld [vmem:[#allocation2 + $0x188] sm:$0xff]
      %v478 = vld [vmem:[#allocation2 + $0x190] sm:$0x3]
      %v479 = vld [vmem:[#allocation2 + $0x198] sm:$0xff]
      %v480 = vld [vmem:[#allocation2 + $0x1a0] sm:$0xff]
      %v481 = vld [vmem:[#allocation2 + $0x1a8] sm:$0x3]
      %482 = vst.msk [vmem:[#allocation3] sm:$0xff] %vm395, %v428
      %483 = vst.msk [vmem:[#allocation3 + $0x8] sm:$0xff] %vm395, %v429
      %484 = vst.msk [vmem:[#allocation3 + $0x10] sm:$0xff] %vm395, %v431
      %485 = vst.msk [vmem:[#allocation3 + $0x18] sm:$0xff] %vm395, %v432
      %486 = vst.msk [vmem:[#allocation3 + $0x20] sm:$0xff] %vm395, %v434
      %487 = vst.msk [vmem:[#allocation3 + $0x28] sm:$0xff] %vm395, %v435
      %488 = vst.msk [vmem:[#allocation3 + $0x30] sm:$0xff] %vm395, %v437
      %489 = vst.msk [vmem:[#allocation3 + $0x38] sm:$0xff] %vm395, %v438
      %490 = vst.msk [vmem:[#allocation3 + $0x40] sm:$0xff] %vm395, %v440
      %491 = vst.msk [vmem:[#allocation3 + $0x48] sm:$0xff] %vm395, %v441
      %492 = vst.msk [vmem:[#allocation3 + $0x50] sm:$0xff] %vm395, %v443
      %493 = vst.msk [vmem:[#allocation3 + $0x58] sm:$0xff] %vm395, %v444
      %494 = vst.msk [vmem:[#allocation3 + $0x60] sm:$0xff] %vm395, %v446
      %495 = vst.msk [vmem:[#allocation3 + $0x68] sm:$0xff] %vm395, %v447
      %496 = vst.msk [vmem:[#allocation3 + $0x70] sm:$0xff] %vm395, %v449
      %497 = vst.msk [vmem:[#allocation3 + $0x78] sm:$0xff] %vm395, %v450
      %498 = vst.msk [vmem:[#allocation3 + $0x80] sm:$0xff] %vm395, %v452
      %499 = vst.msk [vmem:[#allocation3 + $0x88] sm:$0xff] %vm395, %v453
      %500 = vst.msk [vmem:[#allocation3 + $0x90] sm:$0xff] %vm395, %v455
      %501 = vst.msk [vmem:[#allocation3 + $0x98] sm:$0xff] %vm395, %v456
      %502 = vst.msk [vmem:[#allocation3 + $0xa0] sm:$0xff] %vm395, %v458
      %503 = vst.msk [vmem:[#allocation3 + $0xa8] sm:$0xff] %vm395, %v459
      %504 = vst.msk [vmem:[#allocation3 + $0xb0] sm:$0xff] %vm395, %v461
      %505 = vst.msk [vmem:[#allocation3 + $0xb8] sm:$0xff] %vm395, %v462
      %506 = vst.msk [vmem:[#allocation3 + $0xc0] sm:$0xff] %vm395, %v464
      %507 = vst.msk [vmem:[#allocation3 + $0xc8] sm:$0xff] %vm395, %v465
      %508 = vst.msk [vmem:[#allocation3 + $0xd0] sm:$0xff] %vm395, %v467
      %509 = vst.msk [vmem:[#allocation3 + $0xd8] sm:$0xff] %vm395, %v468
      %510 = vst.msk [vmem:[#allocation3 + $0xe0] sm:$0xff] %vm395, %v470
      %511 = vst.msk [vmem:[#allocation3 + $0xe8] sm:$0xff] %vm395, %v471
      %512 = vst.msk [vmem:[#allocation3 + $0xf0] sm:$0xff] %vm395, %v473
      %513 = vst.msk [vmem:[#allocation3 + $0xf8] sm:$0xff] %vm395, %v474
      %vm562 = vcmask 1046528
      %v563 = vrot.slane %v428, 1
      %v564 = vrot.slane %v429, 1
      %v565 = vsel %vm562, %v563, %v564
      %v566 = vrot.slane %v430, 1
      %v567 = vsel %vm562, %v564, %v566
      %v568 = vrot.slane %v431, 1
      %v569 = vrot.slane %v432, 1
      %v570 = vsel %vm562, %v568, %v569
      %v571 = vrot.slane %v433, 1
      %v572 = vsel %vm562, %v569, %v571
      %v573 = vrot.slane %v434, 1
      %v574 = vrot.slane %v435, 1
      %v575 = vsel %vm562, %v573, %v574
      %v576 = vrot.slane %v436, 1
      %v577 = vsel %vm562, %v574, %v576
      %v578 = vrot.slane %v437, 1
      %v579 = vrot.slane %v438, 1
      %v580 = vsel %vm562, %v578, %v579
      %v581 = vrot.slane %v439, 1
      %v582 = vsel %vm562, %v579, %v581
      %v583 = vrot.slane %v440, 1
      %v584 = vrot.slane %v441, 1
      %v585 = vsel %vm562, %v583, %v584
      %v586 = vrot.slane %v442, 1
      %v587 = vsel %vm562, %v584, %v586
      %v588 = vrot.slane %v443, 1
      %v589 = vrot.slane %v444, 1
      %v590 = vsel %vm562, %v588, %v589
      %v591 = vrot.slane %v445, 1
      %v592 = vsel %vm562, %v589, %v591
      %v593 = vrot.slane %v446, 1
      %v594 = vrot.slane %v447, 1
      %v595 = vsel %vm562, %v593, %v594
      %v596 = vrot.slane %v448, 1
      %v597 = vsel %vm562, %v594, %v596
      %v598 = vrot.slane %v449, 1
      %v599 = vrot.slane %v450, 1
      %v600 = vsel %vm562, %v598, %v599
      %v601 = vrot.slane %v451, 1
      %v602 = vsel %vm562, %v599, %v601
      %v603 = vrot.slane %v452, 1
      %v604 = vrot.slane %v453, 1
      %v605 = vsel %vm562, %v603, %v604
      %v606 = vrot.slane %v454, 1
      %v607 = vsel %vm562, %v604, %v606
      %v608 = vrot.slane %v455, 1
      %v609 = vrot.slane %v456, 1
      %v610 = vsel %vm562, %v608, %v609
      %v611 = vrot.slane %v457, 1
      %v612 = vsel %vm562, %v609, %v611
      %v613 = vrot.slane %v458, 1
      %v614 = vrot.slane %v459, 1
      %v615 = vsel %vm562, %v613, %v614
      %v616 = vrot.slane %v460, 1
      %v617 = vsel %vm562, %v614, %v616
      %v618 = vrot.slane %v461, 1
      %v619 = vrot.slane %v462, 1
      %v620 = vsel %vm562, %v618, %v619
      %v621 = vrot.slane %v463, 1
      %v622 = vsel %vm562, %v619, %v621
      %v623 = vrot.slane %v464, 1
      %v624 = vrot.slane %v465, 1
      %v625 = vsel %vm562, %v623, %v624
      %v626 = vrot.slane %v466, 1
      %v627 = vsel %vm562, %v624, %v626
      %v628 = vrot.slane %v467, 1
      %v629 = vrot.slane %v468, 1
      %v630 = vsel %vm562, %v628, %v629
      %v631 = vrot.slane %v469, 1
      %v632 = vsel %vm562, %v629, %v631
      %v633 = vrot.slane %v470, 1
      %v634 = vrot.slane %v471, 1
      %v635 = vsel %vm562, %v633, %v634
      %v636 = vrot.slane %v472, 1
      %v637 = vsel %vm562, %v634, %v636
      %v638 = vrot.slane %v473, 1
      %v639 = vrot.slane %v474, 1
      %v640 = vsel %vm562, %v638, %v639
      %v641 = vrot.slane %v475, 1
      %v642 = vsel %vm562, %v639, %v641
      %643 = vrot.lane.b32.xlu0 %v565, 4
      %v644 = vpop.permute.xlu0 %643
      %645 = vrot.lane.b32.xlu0 %v567, 4
      %v646 = vpop.permute.xlu0 %645
      %647 = vrot.lane.b32.xlu0 %v570, 4
      %v648 = vpop.permute.xlu0 %647
      %649 = vrot.lane.b32.xlu0 %v572, 4
      %v650 = vpop.permute.xlu0 %649
      %651 = vrot.lane.b32.xlu0 %v575, 4
      %v652 = vpop.permute.xlu0 %651
      %653 = vrot.lane.b32.xlu0 %v577, 4
      %v654 = vpop.permute.xlu0 %653
      %655 = vrot.lane.b32.xlu0 %v580, 4
      %v656 = vpop.permute.xlu0 %655
      %657 = vrot.lane.b32.xlu0 %v582, 4
      %v658 = vpop.permute.xlu0 %657
      %659 = vrot.lane.b32.xlu0 %v585, 4
      %v660 = vpop.permute.xlu0 %659
      %661 = vrot.lane.b32.xlu0 %v587, 4
      %v662 = vpop.permute.xlu0 %661
      %663 = vrot.lane.b32.xlu0 %v590, 4
      %v664 = vpop.permute.xlu0 %663
      %665 = vrot.lane.b32.xlu0 %v592, 4
      %v666 = vpop.permute.xlu0 %665
      %667 = vrot.lane.b32.xlu0 %v595, 4
      %v668 = vpop.permute.xlu0 %667
      %669 = vrot.lane.b32.xlu0 %v597, 4
      %v670 = vpop.permute.xlu0 %669
      %671 = vrot.lane.b32.xlu0 %v600, 4
      %v672 = vpop.permute.xlu0 %671
      %673 = vrot.lane.b32.xlu0 %v602, 4
      %v674 = vpop.permute.xlu0 %673
      %675 = vrot.lane.b32.xlu0 %v605, 4
      %v676 = vpop.permute.xlu0 %675
      %677 = vrot.lane.b32.xlu0 %v607, 4
      %v678 = vpop.permute.xlu0 %677
      %679 = vrot.lane.b32.xlu0 %v610, 4
      %v680 = vpop.permute.xlu0 %679
      %681 = vrot.lane.b32.xlu0 %v612, 4
      %v682 = vpop.permute.xlu0 %681
      %683 = vrot.lane.b32.xlu0 %v615, 4
      %v684 = vpop.permute.xlu0 %683
      %685 = vrot.lane.b32.xlu0 %v617, 4
      %v686 = vpop.permute.xlu0 %685
      %687 = vrot.lane.b32.xlu0 %v620, 4
      %v688 = vpop.permute.xlu0 %687
      %689 = vrot.lane.b32.xlu0 %v622, 4
      %v690 = vpop.permute.xlu0 %689
      %691 = vrot.lane.b32.xlu0 %v625, 4
      %v692 = vpop.permute.xlu0 %691
      %693 = vrot.lane.b32.xlu0 %v627, 4
      %v694 = vpop.permute.xlu0 %693
      %695 = vrot.lane.b32.xlu0 %v630, 4
      %v696 = vpop.permute.xlu0 %695
      %697 = vrot.lane.b32.xlu0 %v632, 4
      %v698 = vpop.permute.xlu0 %697
      %699 = vrot.lane.b32.xlu0 %v635, 4
      %v700 = vpop.permute.xlu0 %699
      %701 = vrot.lane.b32.xlu0 %v637, 4
      %v702 = vpop.permute.xlu0 %701
      %703 = vrot.lane.b32.xlu0 %v640, 4
      %v704 = vpop.permute.xlu0 %703
      %705 = vrot.lane.b32.xlu0 %v642, 4
      %v706 = vpop.permute.xlu0 %705
      %vm739 = vcmask 64544
      %740 = vst.msk [vmem:[#allocation3] sm:$0xff] %vm739, %v644
      %741 = vst.msk [vmem:[#allocation3 + $0x8] sm:$0xff] %vm739, %v646
      %742 = vst.msk [vmem:[#allocation3 + $0x10] sm:$0xff] %vm739, %v648
      %743 = vst.msk [vmem:[#allocation3 + $0x18] sm:$0xff] %vm739, %v650
      %744 = vst.msk [vmem:[#allocation3 + $0x20] sm:$0xff] %vm739, %v652
      %745 = vst.msk [vmem:[#allocation3 + $0x28] sm:$0xff] %vm739, %v654
      %746 = vst.msk [vmem:[#allocation3 + $0x30] sm:$0xff] %vm739, %v656
      %747 = vst.msk [vmem:[#allocation3 + $0x38] sm:$0xff] %vm739, %v658
      %748 = vst.msk [vmem:[#allocation3 + $0x40] sm:$0xff] %vm739, %v660
      %749 = vst.msk [vmem:[#allocation3 + $0x48] sm:$0xff] %vm739, %v662
      %750 = vst.msk [vmem:[#allocation3 + $0x50] sm:$0xff] %vm739, %v664
      %751 = vst.msk [vmem:[#allocation3 + $0x58] sm:$0xff] %vm739, %v666
      %752 = vst.msk [vmem:[#allocation3 + $0x60] sm:$0xff] %vm739, %v668
      %753 = vst.msk [vmem:[#allocation3 + $0x68] sm:$0xff] %vm739, %v670
      %754 = vst.msk [vmem:[#allocation3 + $0x70] sm:$0xff] %vm739, %v672
      %755 = vst.msk [vmem:[#allocation3 + $0x78] sm:$0xff] %vm739, %v674
      %756 = vst.msk [vmem:[#allocation3 + $0x80] sm:$0xff] %vm739, %v676
      %757 = vst.msk [vmem:[#allocation3 + $0x88] sm:$0xff] %vm739, %v678
      %758 = vst.msk [vmem:[#allocation3 + $0x90] sm:$0xff] %vm739, %v680
      %759 = vst.msk [vmem:[#allocation3 + $0x98] sm:$0xff] %vm739, %v682
      %760 = vst.msk [vmem:[#allocation3 + $0xa0] sm:$0xff] %vm739, %v684
      %761 = vst.msk [vmem:[#allocation3 + $0xa8] sm:$0xff] %vm739, %v686
      %762 = vst.msk [vmem:[#allocation3 + $0xb0] sm:$0xff] %vm739, %v688
      %763 = vst.msk [vmem:[#allocation3 + $0xb8] sm:$0xff] %vm739, %v690
      %764 = vst.msk [vmem:[#allocation3 + $0xc0] sm:$0xff] %vm739, %v692
      %765 = vst.msk [vmem:[#allocation3 + $0xc8] sm:$0xff] %vm739, %v694
      %766 = vst.msk [vmem:[#allocation3 + $0xd0] sm:$0xff] %vm739, %v696
      %767 = vst.msk [vmem:[#allocation3 + $0xd8] sm:$0xff] %vm739, %v698
      %768 = vst.msk [vmem:[#allocation3 + $0xe0] sm:$0xff] %vm739, %v700
      %769 = vst.msk [vmem:[#allocation3 + $0xe8] sm:$0xff] %vm739, %v702
      %770 = vst.msk [vmem:[#allocation3 + $0xf0] sm:$0xff] %vm739, %v704
      %771 = vst.msk [vmem:[#allocation3 + $0xf8] sm:$0xff] %vm739, %v706
      %vm772 = vcmask 1045504
      %v773 = vrot.slane %v428, 2
      %v774 = vrot.slane %v429, 2
      %v775 = vsel %vm772, %v773, %v774
      %v776 = vrot.slane %v430, 2
      %v777 = vsel %vm772, %v774, %v776
      %v778 = vrot.slane %v431, 2
      %v779 = vrot.slane %v432, 2
      %v780 = vsel %vm772, %v778, %v779
      %v781 = vrot.slane %v433, 2
      %v782 = vsel %vm772, %v779, %v781
      %v783 = vrot.slane %v434, 2
      %v784 = vrot.slane %v435, 2
      %v785 = vsel %vm772, %v783, %v784
      %v786 = vrot.slane %v436, 2
      %v787 = vsel %vm772, %v784, %v786
      %v788 = vrot.slane %v437, 2
      %v789 = vrot.slane %v438, 2
      %v790 = vsel %vm772, %v788, %v789
      %v791 = vrot.slane %v439, 2
      %v792 = vsel %vm772, %v789, %v791
      %v793 = vrot.slane %v440, 2
      %v794 = vrot.slane %v441, 2
      %v795 = vsel %vm772, %v793, %v794
      %v796 = vrot.slane %v442, 2
      %v797 = vsel %vm772, %v794, %v796
      %v798 = vrot.slane %v443, 2
      %v799 = vrot.slane %v444, 2
      %v800 = vsel %vm772, %v798, %v799
      %v801 = vrot.slane %v445, 2
      %v802 = vsel %vm772, %v799, %v801
      %v803 = vrot.slane %v446, 2
      %v804 = vrot.slane %v447, 2
      %v805 = vsel %vm772, %v803, %v804
      %v806 = vrot.slane %v448, 2
      %v807 = vsel %vm772, %v804, %v806
      %v808 = vrot.slane %v449, 2
      %v809 = vrot.slane %v450, 2
      %v810 = vsel %vm772, %v808, %v809
      %v811 = vrot.slane %v451, 2
      %v812 = vsel %vm772, %v809, %v811
      %v813 = vrot.slane %v452, 2
      %v814 = vrot.slane %v453, 2
      %v815 = vsel %vm772, %v813, %v814
      %v816 = vrot.slane %v454, 2
      %v817 = vsel %vm772, %v814, %v816
      %v818 = vrot.slane %v455, 2
      %v819 = vrot.slane %v456, 2
      %v820 = vsel %vm772, %v818, %v819
      %v821 = vrot.slane %v457, 2
      %v822 = vsel %vm772, %v819, %v821
      %v823 = vrot.slane %v458, 2
      %v824 = vrot.slane %v459, 2
      %v825 = vsel %vm772, %v823, %v824
      %v826 = vrot.slane %v460, 2
      %v827 = vsel %vm772, %v824, %v826
      %v828 = vrot.slane %v461, 2
      %v829 = vrot.slane %v462, 2
      %v830 = vsel %vm772, %v828, %v829
      %v831 = vrot.slane %v463, 2
      %v832 = vsel %vm772, %v829, %v831
      %v833 = vrot.slane %v464, 2
      %v834 = vrot.slane %v465, 2
      %v835 = vsel %vm772, %v833, %v834
      %v836 = vrot.slane %v466, 2
      %v837 = vsel %vm772, %v834, %v836
      %v838 = vrot.slane %v467, 2
      %v839 = vrot.slane %v468, 2
      %v840 = vsel %vm772, %v838, %v839
      %v841 = vrot.slane %v469, 2
      %v842 = vsel %vm772, %v839, %v841
      %v843 = vrot.slane %v470, 2
      %v844 = vrot.slane %v471, 2
      %v845 = vsel %vm772, %v843, %v844
      %v846 = vrot.slane %v472, 2
      %v847 = vsel %vm772, %v844, %v846
      %v848 = vrot.slane %v473, 2
      %v849 = vrot.slane %v474, 2
      %v850 = vsel %vm772, %v848, %v849
      %v851 = vrot.slane %v475, 2
      %v852 = vsel %vm772, %v849, %v851
      %853 = vrot.lane.b32.xlu0 %v775, 8
      %v854 = vpop.permute.xlu0 %853
      %855 = vrot.lane.b32.xlu0 %v777, 8
      %v856 = vpop.permute.xlu0 %855
      %857 = vrot.lane.b32.xlu0 %v780, 8
      %v858 = vpop.permute.xlu0 %857
      %859 = vrot.lane.b32.xlu0 %v782, 8
      %v860 = vpop.permute.xlu0 %859
      %861 = vrot.lane.b32.xlu0 %v785, 8
      %v862 = vpop.permute.xlu0 %861
      %863 = vrot.lane.b32.xlu0 %v787, 8
      %v864 = vpop.permute.xlu0 %863
      %865 = vrot.lane.b32.xlu0 %v790, 8
      %v866 = vpop.permute.xlu0 %865
      %867 = vrot.lane.b32.xlu0 %v792, 8
      %v868 = vpop.permute.xlu0 %867
      %869 = vrot.lane.b32.xlu0 %v795, 8
      %v870 = vpop.permute.xlu0 %869
      %871 = vrot.lane.b32.xlu0 %v797, 8
      %v872 = vpop.permute.xlu0 %871
      %873 = vrot.lane.b32.xlu0 %v800, 8
      %v874 = vpop.permute.xlu0 %873
      %875 = vrot.lane.b32.xlu0 %v802, 8
      %v876 = vpop.permute.xlu0 %875
      %877 = vrot.lane.b32.xlu0 %v805, 8
      %v878 = vpop.permute.xlu0 %877
      %879 = vrot.lane.b32.xlu0 %v807, 8
      %v880 = vpop.permute.xlu0 %879
      %881 = vrot.lane.b32.xlu0 %v810, 8
      %v882 = vpop.permute.xlu0 %881
      %883 = vrot.lane.b32.xlu0 %v812, 8
      %v884 = vpop.permute.xlu0 %883
      %885 = vrot.lane.b32.xlu0 %v815, 8
      %v886 = vpop.permute.xlu0 %885
      %887 = vrot.lane.b32.xlu0 %v817, 8
      %v888 = vpop.permute.xlu0 %887
      %889 = vrot.lane.b32.xlu0 %v820, 8
      %v890 = vpop.permute.xlu0 %889
      %891 = vrot.lane.b32.xlu0 %v822, 8
      %v892 = vpop.permute.xlu0 %891
      %893 = vrot.lane.b32.xlu0 %v825, 8
      %v894 = vpop.permute.xlu0 %893
      %895 = vrot.lane.b32.xlu0 %v827, 8
      %v896 = vpop.permute.xlu0 %895
      %897 = vrot.lane.b32.xlu0 %v830, 8
      %v898 = vpop.permute.xlu0 %897
      %899 = vrot.lane.b32.xlu0 %v832, 8
      %v900 = vpop.permute.xlu0 %899
      %901 = vrot.lane.b32.xlu0 %v835, 8
      %v902 = vpop.permute.xlu0 %901
      %903 = vrot.lane.b32.xlu0 %v837, 8
      %v904 = vpop.permute.xlu0 %903
      %905 = vrot.lane.b32.xlu0 %v840, 8
      %v906 = vpop.permute.xlu0 %905
      %907 = vrot.lane.b32.xlu0 %v842, 8
      %v908 = vpop.permute.xlu0 %907
      %909 = vrot.lane.b32.xlu0 %v845, 8
      %v910 = vpop.permute.xlu0 %909
      %911 = vrot.lane.b32.xlu0 %v847, 8
      %v912 = vpop.permute.xlu0 %911
      %913 = vrot.lane.b32.xlu0 %v850, 8
      %v914 = vpop.permute.xlu0 %913
      %915 = vrot.lane.b32.xlu0 %v852, 8
      %v916 = vpop.permute.xlu0 %915
      %vm949 = vcmask 97344
      %950 = vst.msk [vmem:[#allocation3] sm:$0xff] %vm949, %v854
      %951 = vst.msk [vmem:[#allocation3 + $0x8] sm:$0xff] %vm949, %v856
      %952 = vst.msk [vmem:[#allocation3 + $0x10] sm:$0xff] %vm949, %v858
      %953 = vst.msk [vmem:[#allocation3 + $0x18] sm:$0xff] %vm949, %v860
      %954 = vst.msk [vmem:[#allocation3 + $0x20] sm:$0xff] %vm949, %v862
      %955 = vst.msk [vmem:[#allocation3 + $0x28] sm:$0xff] %vm949, %v864
      %956 = vst.msk [vmem:[#allocation3 + $0x30] sm:$0xff] %vm949, %v866
      %957 = vst.msk [vmem:[#allocation3 + $0x38] sm:$0xff] %vm949, %v868
      %958 = vst.msk [vmem:[#allocation3 + $0x40] sm:$0xff] %vm949, %v870
      %959 = vst.msk [vmem:[#allocation3 + $0x48] sm:$0xff] %vm949, %v872
      %960 = vst.msk [vmem:[#allocation3 + $0x50] sm:$0xff] %vm949, %v874
      %961 = vst.msk [vmem:[#allocation3 + $0x58] sm:$0xff] %vm949, %v876
      %962 = vst.msk [vmem:[#allocation3 + $0x60] sm:$0xff] %vm949, %v878
      %963 = vst.msk [vmem:[#allocation3 + $0x68] sm:$0xff] %vm949, %v880
      %964 = vst.msk [vmem:[#allocation3 + $0x70] sm:$0xff] %vm949, %v882
      %965 = vst.msk [vmem:[#allocation3 + $0x78] sm:$0xff] %vm949, %v884
      %966 = vst.msk [vmem:[#allocation3 + $0x80] sm:$0xff] %vm949, %v886
      %967 = vst.msk [vmem:[#allocation3 + $0x88] sm:$0xff] %vm949, %v888
      %968 = vst.msk [vmem:[#allocation3 + $0x90] sm:$0xff] %vm949, %v890
      %969 = vst.msk [vmem:[#allocation3 + $0x98] sm:$0xff] %vm949, %v892
      %970 = vst.msk [vmem:[#allocation3 + $0xa0] sm:$0xff] %vm949, %v894
      %971 = vst.msk [vmem:[#allocation3 + $0xa8] sm:$0xff] %vm949, %v896
      %972 = vst.msk [vmem:[#allocation3 + $0xb0] sm:$0xff] %vm949, %v898
      %973 = vst.msk [vmem:[#allocation3 + $0xb8] sm:$0xff] %vm949, %v900
      %974 = vst.msk [vmem:[#allocation3 + $0xc0] sm:$0xff] %vm949, %v902
      %975 = vst.msk [vmem:[#allocation3 + $0xc8] sm:$0xff] %vm949, %v904
      %976 = vst.msk [vmem:[#allocation3 + $0xd0] sm:$0xff] %vm949, %v906
      %977 = vst.msk [vmem:[#allocation3 + $0xd8] sm:$0xff] %vm949, %v908
      %978 = vst.msk [vmem:[#allocation3 + $0xe0] sm:$0xff] %vm949, %v910
      %979 = vst.msk [vmem:[#allocation3 + $0xe8] sm:$0xff] %vm949, %v912
      %980 = vst.msk [vmem:[#allocation3 + $0xf0] sm:$0xff] %vm949, %v914
      %981 = vst.msk [vmem:[#allocation3 + $0xf8] sm:$0xff] %vm949, %v916
      %984 = vrot.lane.b32.xlu0 %v431, 12
      %v985 = vpop.permute.xlu0 %984
      %986 = vrot.lane.b32.xlu0 %v432, 12
      %v987 = vpop.permute.xlu0 %986
      %988 = vrot.lane.b32.xlu0 %v434, 12
      %v989 = vpop.permute.xlu0 %988
      %990 = vrot.lane.b32.xlu0 %v435, 12
      %v991 = vpop.permute.xlu0 %990
      %992 = vrot.lane.b32.xlu0 %v437, 12
      %v993 = vpop.permute.xlu0 %992
      %994 = vrot.lane.b32.xlu0 %v438, 12
      %v995 = vpop.permute.xlu0 %994
      %996 = vrot.lane.b32.xlu0 %v440, 12
      %v997 = vpop.permute.xlu0 %996
      %998 = vrot.lane.b32.xlu0 %v441, 12
      %v999 = vpop.permute.xlu0 %998
      %1000 = vrot.lane.b32.xlu0 %v443, 12
      %v1001 = vpop.permute.xlu0 %1000
      %1002 = vrot.lane.b32.xlu0 %v444, 12
      %v1003 = vpop.permute.xlu0 %1002
      %1004 = vrot.lane.b32.xlu0 %v446, 12
      %v1005 = vpop.permute.xlu0 %1004
      %1006 = vrot.lane.b32.xlu0 %v447, 12
      %v1007 = vpop.permute.xlu0 %1006
      %1008 = vrot.lane.b32.xlu0 %v449, 12
      %v1009 = vpop.permute.xlu0 %1008
      %1010 = vrot.lane.b32.xlu0 %v450, 12
      %v1011 = vpop.permute.xlu0 %1010
      %1012 = vrot.lane.b32.xlu0 %v452, 12
      %v1013 = vpop.permute.xlu0 %1012
      %1014 = vrot.lane.b32.xlu0 %v453, 12
      %v1015 = vpop.permute.xlu0 %1014
      %1016 = vrot.lane.b32.xlu0 %v455, 12
      %v1017 = vpop.permute.xlu0 %1016
      %1018 = vrot.lane.b32.xlu0 %v456, 12
      %v1019 = vpop.permute.xlu0 %1018
      %1020 = vrot.lane.b32.xlu0 %v458, 12
      %v1021 = vpop.permute.xlu0 %1020
      %1022 = vrot.lane.b32.xlu0 %v459, 12
      %v1023 = vpop.permute.xlu0 %1022
      %1024 = vrot.lane.b32.xlu0 %v461, 12
      %v1025 = vpop.permute.xlu0 %1024
      %1026 = vrot.lane.b32.xlu0 %v462, 12
      %v1027 = vpop.permute.xlu0 %1026
      %1028 = vrot.lane.b32.xlu0 %v464, 12
      %v1029 = vpop.permute.xlu0 %1028
      %1030 = vrot.lane.b32.xlu0 %v465, 12
      %v1031 = vpop.permute.xlu0 %1030
      %1032 = vrot.lane.b32.xlu0 %v467, 12
      %v1033 = vpop.permute.xlu0 %1032
      %1034 = vrot.lane.b32.xlu0 %v468, 12
      %v1035 = vpop.permute.xlu0 %1034
      %1036 = vrot.lane.b32.xlu0 %v470, 12
      %v1037 = vpop.permute.xlu0 %1036
      %1038 = vrot.lane.b32.xlu0 %v471, 12
      %v1039 = vpop.permute.xlu0 %1038
      %1040 = vrot.lane.b32.xlu0 %v473, 12
      %v1041 = vpop.permute.xlu0 %1040
      %1042 = vrot.lane.b32.xlu0 %v474, 12
      %v1043 = vpop.permute.xlu0 %1042
      %1044 = vrot.lane.b32.xlu0 %v476, 12
      %v1045 = vpop.permute.xlu0 %1044
      %1046 = vrot.lane.b32.xlu0 %v477, 12
      %v1047 = vpop.permute.xlu0 %1046
      %vm1080 = vcmask 130144
      %1081 = vst.msk [vmem:[#allocation3] sm:$0xff] %vm1080, %v985
      %1082 = vst.msk [vmem:[#allocation3 + $0x8] sm:$0xff] %vm1080, %v987
      %1083 = vst.msk [vmem:[#allocation3 + $0x10] sm:$0xff] %vm1080, %v989
      %1084 = vst.msk [vmem:[#allocation3 + $0x18] sm:$0xff] %vm1080, %v991
      %1085 = vst.msk [vmem:[#allocation3 + $0x20] sm:$0xff] %vm1080, %v993
      %1086 = vst.msk [vmem:[#allocation3 + $0x28] sm:$0xff] %vm1080, %v995
      %1087 = vst.msk [vmem:[#allocation3 + $0x30] sm:$0xff] %vm1080, %v997
      %1088 = vst.msk [vmem:[#allocation3 + $0x38] sm:$0xff] %vm1080, %v999
      %1089 = vst.msk [vmem:[#allocation3 + $0x40] sm:$0xff] %vm1080, %v1001
      %1090 = vst.msk [vmem:[#allocation3 + $0x48] sm:$0xff] %vm1080, %v1003
      %1091 = vst.msk [vmem:[#allocation3 + $0x50] sm:$0xff] %vm1080, %v1005
      %1092 = vst.msk [vmem:[#allocation3 + $0x58] sm:$0xff] %vm1080, %v1007
      %1093 = vst.msk [vmem:[#allocation3 + $0x60] sm:$0xff] %vm1080, %v1009
      %1094 = vst.msk [vmem:[#allocation3 + $0x68] sm:$0xff] %vm1080, %v1011
      %1095 = vst.msk [vmem:[#allocation3 + $0x70] sm:$0xff] %vm1080, %v1013
      %1096 = vst.msk [vmem:[#allocation3 + $0x78] sm:$0xff] %vm1080, %v1015
      %1097 = vst.msk [vmem:[#allocation3 + $0x80] sm:$0xff] %vm1080, %v1017
      %1098 = vst.msk [vmem:[#allocation3 + $0x88] sm:$0xff] %vm1080, %v1019
      %1099 = vst.msk [vmem:[#allocation3 + $0x90] sm:$0xff] %vm1080, %v1021
      %1100 = vst.msk [vmem:[#allocation3 + $0x98] sm:$0xff] %vm1080, %v1023
      %1101 = vst.msk [vmem:[#allocation3 + $0xa0] sm:$0xff] %vm1080, %v1025
      %1102 = vst.msk [vmem:[#allocation3 + $0xa8] sm:$0xff] %vm1080, %v1027
      %1103 = vst.msk [vmem:[#allocation3 + $0xb0] sm:$0xff] %vm1080, %v1029
      %1104 = vst.msk [vmem:[#allocation3 + $0xb8] sm:$0xff] %vm1080, %v1031
      %1105 = vst.msk [vmem:[#allocation3 + $0xc0] sm:$0xff] %vm1080, %v1033
      %1106 = vst.msk [vmem:[#allocation3 + $0xc8] sm:$0xff] %vm1080, %v1035
      %1107 = vst.msk [vmem:[#allocation3 + $0xd0] sm:$0xff] %vm1080, %v1037
      %1108 = vst.msk [vmem:[#allocation3 + $0xd8] sm:$0xff] %vm1080, %v1039
      %1109 = vst.msk [vmem:[#allocation3 + $0xe0] sm:$0xff] %vm1080, %v1041
      %1110 = vst.msk [vmem:[#allocation3 + $0xe8] sm:$0xff] %vm1080, %v1043
      %1111 = vst.msk [vmem:[#allocation3 + $0xf0] sm:$0xff] %vm1080, %v1045
      %1112 = vst.msk [vmem:[#allocation3 + $0xf8] sm:$0xff] %vm1080, %v1047
      %v1114 = vrot.slane %v476, 1
      %v1115 = vrot.slane %v477, 1
      %v1116 = vsel %vm562, %v1114, %v1115
      %v1117 = vrot.slane %v478, 1
      %v1118 = vsel %vm562, %v1115, %v1117
      %1119 = vrot.lane.b32.xlu0 %v570, 16
      %v1120 = vpop.permute.xlu0 %1119
      %1121 = vrot.lane.b32.xlu0 %v572, 16
      %v1122 = vpop.permute.xlu0 %1121
      %1123 = vrot.lane.b32.xlu0 %v575, 16
      %v1124 = vpop.permute.xlu0 %1123
      %1125 = vrot.lane.b32.xlu0 %v577, 16
      %v1126 = vpop.permute.xlu0 %1125
      %1127 = vrot.lane.b32.xlu0 %v580, 16
      %v1128 = vpop.permute.xlu0 %1127
      %1129 = vrot.lane.b32.xlu0 %v582, 16
      %v1130 = vpop.permute.xlu0 %1129
      %1131 = vrot.lane.b32.xlu0 %v585, 16
      %v1132 = vpop.permute.xlu0 %1131
      %1133 = vrot.lane.b32.xlu0 %v587, 16
      %v1134 = vpop.permute.xlu0 %1133
      %1135 = vrot.lane.b32.xlu0 %v590, 16
      %v1136 = vpop.permute.xlu0 %1135
      %1137 = vrot.lane.b32.xlu0 %v592, 16
      %v1138 = vpop.permute.xlu0 %1137
      %1139 = vrot.lane.b32.xlu0 %v595, 16
      %v1140 = vpop.permute.xlu0 %1139
      %1141 = vrot.lane.b32.xlu0 %v597, 16
      %v1142 = vpop.permute.xlu0 %1141
      %1143 = vrot.lane.b32.xlu0 %v600, 16
      %v1144 = vpop.permute.xlu0 %1143
      %1145 = vrot.lane.b32.xlu0 %v602, 16
      %v1146 = vpop.permute.xlu0 %1145
      %1147 = vrot.lane.b32.xlu0 %v605, 16
      %v1148 = vpop.permute.xlu0 %1147
      %1149 = vrot.lane.b32.xlu0 %v607, 16
      %v1150 = vpop.permute.xlu0 %1149
      %1151 = vrot.lane.b32.xlu0 %v610, 16
      %v1152 = vpop.permute.xlu0 %1151
      %1153 = vrot.lane.b32.xlu0 %v612, 16
      %v1154 = vpop.permute.xlu0 %1153
      %1155 = vrot.lane.b32.xlu0 %v615, 16
      %v1156 = vpop.permute.xlu0 %1155
      %1157 = vrot.lane.b32.xlu0 %v617, 16
      %v1158 = vpop.permute.xlu0 %1157
      %1159 = vrot.lane.b32.xlu0 %v620, 16
      %v1160 = vpop.permute.xlu0 %1159
      %1161 = vrot.lane.b32.xlu0 %v622, 16
      %v1162 = vpop.permute.xlu0 %1161
      %1163 = vrot.lane.b32.xlu0 %v625, 16
      %v1164 = vpop.permute.xlu0 %1163
      %1165 = vrot.lane.b32.xlu0 %v627, 16
      %v1166 = vpop.permute.xlu0 %1165
      %1167 = vrot.lane.b32.xlu0 %v630, 16
      %v1168 = vpop.permute.xlu0 %1167
      %1169 = vrot.lane.b32.xlu0 %v632, 16
      %v1170 = vpop.permute.xlu0 %1169
      %1171 = vrot.lane.b32.xlu0 %v635, 16
      %v1172 = vpop.permute.xlu0 %1171
      %1173 = vrot.lane.b32.xlu0 %v637, 16
      %v1174 = vpop.permute.xlu0 %1173
      %1175 = vrot.lane.b32.xlu0 %v640, 16
      %v1176 = vpop.permute.xlu0 %1175
      %1177 = vrot.lane.b32.xlu0 %v642, 16
      %v1178 = vpop.permute.xlu0 %1177
      %1179 = vrot.lane.b32.xlu0 %v1116, 16
      %v1180 = vpop.permute.xlu0 %1179
      %1181 = vrot.lane.b32.xlu0 %v1118, 16
      %v1182 = vpop.permute.xlu0 %1181
      %vm1215 = vcmask 162944
      %1216 = vst.msk [vmem:[#allocation3] sm:$0xff] %vm1215, %v1120
      %1217 = vst.msk [vmem:[#allocation3 + $0x8] sm:$0xff] %vm1215, %v1122
      %1218 = vst.msk [vmem:[#allocation3 + $0x10] sm:$0xff] %vm1215, %v1124
      %1219 = vst.msk [vmem:[#allocation3 + $0x18] sm:$0xff] %vm1215, %v1126
      %1220 = vst.msk [vmem:[#allocation3 + $0x20] sm:$0xff] %vm1215, %v1128
      %1221 = vst.msk [vmem:[#allocation3 + $0x28] sm:$0xff] %vm1215, %v1130
      %1222 = vst.msk [vmem:[#allocation3 + $0x30] sm:$0xff] %vm1215, %v1132
      %1223 = vst.msk [vmem:[#allocation3 + $0x38] sm:$0xff] %vm1215, %v1134
      %1224 = vst.msk [vmem:[#allocation3 + $0x40] sm:$0xff] %vm1215, %v1136
      %1225 = vst.msk [vmem:[#allocation3 + $0x48] sm:$0xff] %vm1215, %v1138
      %1226 = vst.msk [vmem:[#allocation3 + $0x50] sm:$0xff] %vm1215, %v1140
      %1227 = vst.msk [vmem:[#allocation3 + $0x58] sm:$0xff] %vm1215, %v1142
      %1228 = vst.msk [vmem:[#allocation3 + $0x60] sm:$0xff] %vm1215, %v1144
      %1229 = vst.msk [vmem:[#allocation3 + $0x68] sm:$0xff] %vm1215, %v1146
      %1230 = vst.msk [vmem:[#allocation3 + $0x70] sm:$0xff] %vm1215, %v1148
      %1231 = vst.msk [vmem:[#allocation3 + $0x78] sm:$0xff] %vm1215, %v1150
      %1232 = vst.msk [vmem:[#allocation3 + $0x80] sm:$0xff] %vm1215, %v1152
      %1233 = vst.msk [vmem:[#allocation3 + $0x88] sm:$0xff] %vm1215, %v1154
      %1234 = vst.msk [vmem:[#allocation3 + $0x90] sm:$0xff] %vm1215, %v1156
      %1235 = vst.msk [vmem:[#allocation3 + $0x98] sm:$0xff] %vm1215, %v1158
      %1236 = vst.msk [vmem:[#allocation3 + $0xa0] sm:$0xff] %vm1215, %v1160
      %1237 = vst.msk [vmem:[#allocation3 + $0xa8] sm:$0xff] %vm1215, %v1162
      %1238 = vst.msk [vmem:[#allocation3 + $0xb0] sm:$0xff] %vm1215, %v1164
      %1239 = vst.msk [vmem:[#allocation3 + $0xb8] sm:$0xff] %vm1215, %v1166
      %1240 = vst.msk [vmem:[#allocation3 + $0xc0] sm:$0xff] %vm1215, %v1168
      %1241 = vst.msk [vmem:[#allocation3 + $0xc8] sm:$0xff] %vm1215, %v1170
      %1242 = vst.msk [vmem:[#allocation3 + $0xd0] sm:$0xff] %vm1215, %v1172
      %1243 = vst.msk [vmem:[#allocation3 + $0xd8] sm:$0xff] %vm1215, %v1174
      %1244 = vst.msk [vmem:[#allocation3 + $0xe0] sm:$0xff] %vm1215, %v1176
      %1245 = vst.msk [vmem:[#allocation3 + $0xe8] sm:$0xff] %vm1215, %v1178
      %1246 = vst.msk [vmem:[#allocation3 + $0xf0] sm:$0xff] %vm1215, %v1180
      %1247 = vst.msk [vmem:[#allocation3 + $0xf8] sm:$0xff] %vm1215, %v1182
      %v1248 = vrot.slane %v476, 2
      %v1249 = vrot.slane %v477, 2
      %v1250 = vsel %vm772, %v1248, %v1249
      %v1251 = vrot.slane %v478, 2
      %v1252 = vsel %vm772, %v1249, %v1251
      %1253 = vrot.lane.b32.xlu0 %v780, 20
      %v1254 = vpop.permute.xlu0 %1253
      %1255 = vrot.lane.b32.xlu0 %v782, 20
      %v1256 = vpop.permute.xlu0 %1255
      %1257 = vrot.lane.b32.xlu0 %v785, 20
      %v1258 = vpop.permute.xlu0 %1257
      %1259 = vrot.lane.b32.xlu0 %v787, 20
      %v1260 = vpop.permute.xlu0 %1259
      %1261 = vrot.lane.b32.xlu0 %v790, 20
      %v1262 = vpop.permute.xlu0 %1261
      %1263 = vrot.lane.b32.xlu0 %v792, 20
      %v1264 = vpop.permute.xlu0 %1263
      %1265 = vrot.lane.b32.xlu0 %v795, 20
      %v1266 = vpop.permute.xlu0 %1265
      %1267 = vrot.lane.b32.xlu0 %v797, 20
      %v1268 = vpop.permute.xlu0 %1267
      %1269 = vrot.lane.b32.xlu0 %v800, 20
      %v1270 = vpop.permute.xlu0 %1269
      %1271 = vrot.lane.b32.xlu0 %v802, 20
      %v1272 = vpop.permute.xlu0 %1271
      %1273 = vrot.lane.b32.xlu0 %v805, 20
      %v1274 = vpop.permute.xlu0 %1273
      %1275 = vrot.lane.b32.xlu0 %v807, 20
      %v1276 = vpop.permute.xlu0 %1275
      %1277 = vrot.lane.b32.xlu0 %v810, 20
      %v1278 = vpop.permute.xlu0 %1277
      %1279 = vrot.lane.b32.xlu0 %v812, 20
      %v1280 = vpop.permute.xlu0 %1279
      %1281 = vrot.lane.b32.xlu0 %v815, 20
      %v1282 = vpop.permute.xlu0 %1281
      %1283 = vrot.lane.b32.xlu0 %v817, 20
      %v1284 = vpop.permute.xlu0 %1283
      %1285 = vrot.lane.b32.xlu0 %v820, 20
      %v1286 = vpop.permute.xlu0 %1285
      %1287 = vrot.lane.b32.xlu0 %v822, 20
      %v1288 = vpop.permute.xlu0 %1287
      %1289 = vrot.lane.b32.xlu0 %v825, 20
      %v1290 = vpop.permute.xlu0 %1289
      %1291 = vrot.lane.b32.xlu0 %v827, 20
      %v1292 = vpop.permute.xlu0 %1291
      %1293 = vrot.lane.b32.xlu0 %v830, 20
      %v1294 = vpop.permute.xlu0 %1293
      %1295 = vrot.lane.b32.xlu0 %v832, 20
      %v1296 = vpop.permute.xlu0 %1295
      %1297 = vrot.lane.b32.xlu0 %v835, 20
      %v1298 = vpop.permute.xlu0 %1297
      %1299 = vrot.lane.b32.xlu0 %v837, 20
      %v1300 = vpop.permute.xlu0 %1299
      %1301 = vrot.lane.b32.xlu0 %v840, 20
      %v1302 = vpop.permute.xlu0 %1301
      %1303 = vrot.lane.b32.xlu0 %v842, 20
      %v1304 = vpop.permute.xlu0 %1303
      %1305 = vrot.lane.b32.xlu0 %v845, 20
      %v1306 = vpop.permute.xlu0 %1305
      %1307 = vrot.lane.b32.xlu0 %v847, 20
      %v1308 = vpop.permute.xlu0 %1307
      %1309 = vrot.lane.b32.xlu0 %v850, 20
      %v1310 = vpop.permute.xlu0 %1309
      %1311 = vrot.lane.b32.xlu0 %v852, 20
      %v1312 = vpop.permute.xlu0 %1311
      %1313 = vrot.lane.b32.xlu0 %v1250, 20
      %v1314 = vpop.permute.xlu0 %1313
      %1315 = vrot.lane.b32.xlu0 %v1252, 20
      %v1316 = vpop.permute.xlu0 %1315
      %vm1349 = vcmask 195744
      %1350 = vst.msk [vmem:[#allocation3] sm:$0xff] %vm1349, %v1254
      %1351 = vst.msk [vmem:[#allocation3 + $0x8] sm:$0xff] %vm1349, %v1256
      %1352 = vst.msk [vmem:[#allocation3 + $0x10] sm:$0xff] %vm1349, %v1258
      %1353 = vst.msk [vmem:[#allocation3 + $0x18] sm:$0xff] %vm1349, %v1260
      %1354 = vst.msk [vmem:[#allocation3 + $0x20] sm:$0xff] %vm1349, %v1262
      %1355 = vst.msk [vmem:[#allocation3 + $0x28] sm:$0xff] %vm1349, %v1264
      %1356 = vst.msk [vmem:[#allocation3 + $0x30] sm:$0xff] %vm1349, %v1266
      %1357 = vst.msk [vmem:[#allocation3 + $0x38] sm:$0xff] %vm1349, %v1268
      %1358 = vst.msk [vmem:[#allocation3 + $0x40] sm:$0xff] %vm1349, %v1270
      %1359 = vst.msk [vmem:[#allocation3 + $0x48] sm:$0xff] %vm1349, %v1272
      %1360 = vst.msk [vmem:[#allocation3 + $0x50] sm:$0xff] %vm1349, %v1274
      %1361 = vst.msk [vmem:[#allocation3 + $0x58] sm:$0xff] %vm1349, %v1276
      %1362 = vst.msk [vmem:[#allocation3 + $0x60] sm:$0xff] %vm1349, %v1278
      %1363 = vst.msk [vmem:[#allocation3 + $0x68] sm:$0xff] %vm1349, %v1280
      %1364 = vst.msk [vmem:[#allocation3 + $0x70] sm:$0xff] %vm1349, %v1282
      %1365 = vst.msk [vmem:[#allocation3 + $0x78] sm:$0xff] %vm1349, %v1284
      %1366 = vst.msk [vmem:[#allocation3 + $0x80] sm:$0xff] %vm1349, %v1286
      %1367 = vst.msk [vmem:[#allocation3 + $0x88] sm:$0xff] %vm1349, %v1288
      %1368 = vst.msk [vmem:[#allocation3 + $0x90] sm:$0xff] %vm1349, %v1290
      %1369 = vst.msk [vmem:[#allocation3 + $0x98] sm:$0xff] %vm1349, %v1292
      %1370 = vst.msk [vmem:[#allocation3 + $0xa0] sm:$0xff] %vm1349, %v1294
      %1371 = vst.msk [vmem:[#allocation3 + $0xa8] sm:$0xff] %vm1349, %v1296
      %1372 = vst.msk [vmem:[#allocation3 + $0xb0] sm:$0xff] %vm1349, %v1298
      %1373 = vst.msk [vmem:[#allocation3 + $0xb8] sm:$0xff] %vm1349, %v1300
      %1374 = vst.msk [vmem:[#allocation3 + $0xc0] sm:$0xff] %vm1349, %v1302
      %1375 = vst.msk [vmem:[#allocation3 + $0xc8] sm:$0xff] %vm1349, %v1304
      %1376 = vst.msk [vmem:[#allocation3 + $0xd0] sm:$0xff] %vm1349, %v1306
      %1377 = vst.msk [vmem:[#allocation3 + $0xd8] sm:$0xff] %vm1349, %v1308
      %1378 = vst.msk [vmem:[#allocation3 + $0xe0] sm:$0xff] %vm1349, %v1310
      %1379 = vst.msk [vmem:[#allocation3 + $0xe8] sm:$0xff] %vm1349, %v1312
      %1380 = vst.msk [vmem:[#allocation3 + $0xf0] sm:$0xff] %vm1349, %v1314
      %1381 = vst.msk [vmem:[#allocation3 + $0xf8] sm:$0xff] %vm1349, %v1316
      %1384 = vrot.lane.b32.xlu0 %v434, 24
      %v1385 = vpop.permute.xlu0 %1384
      %1386 = vrot.lane.b32.xlu0 %v435, 24
      %v1387 = vpop.permute.xlu0 %1386
      %1388 = vrot.lane.b32.xlu0 %v437, 24
      %v1389 = vpop.permute.xlu0 %1388
      %1390 = vrot.lane.b32.xlu0 %v438, 24
      %v1391 = vpop.permute.xlu0 %1390
      %1392 = vrot.lane.b32.xlu0 %v440, 24
      %v1393 = vpop.permute.xlu0 %1392
      %1394 = vrot.lane.b32.xlu0 %v441, 24
      %v1395 = vpop.permute.xlu0 %1394
      %1396 = vrot.lane.b32.xlu0 %v443, 24
      %v1397 = vpop.permute.xlu0 %1396
      %1398 = vrot.lane.b32.xlu0 %v444, 24
      %v1399 = vpop.permute.xlu0 %1398
      %1400 = vrot.lane.b32.xlu0 %v446, 24
      %v1401 = vpop.permute.xlu0 %1400
      %1402 = vrot.lane.b32.xlu0 %v447, 24
      %v1403 = vpop.permute.xlu0 %1402
      %1404 = vrot.lane.b32.xlu0 %v449, 24
      %v1405 = vpop.permute.xlu0 %1404
      %1406 = vrot.lane.b32.xlu0 %v450, 24
      %v1407 = vpop.permute.xlu0 %1406
      %1408 = vrot.lane.b32.xlu0 %v452, 24
      %v1409 = vpop.permute.xlu0 %1408
      %1410 = vrot.lane.b32.xlu0 %v453, 24
      %v1411 = vpop.permute.xlu0 %1410
      %1412 = vrot.lane.b32.xlu0 %v455, 24
      %v1413 = vpop.permute.xlu0 %1412
      %1414 = vrot.lane.b32.xlu0 %v456, 24
      %v1415 = vpop.permute.xlu0 %1414
      %1416 = vrot.lane.b32.xlu0 %v458, 24
      %v1417 = vpop.permute.xlu0 %1416
      %1418 = vrot.lane.b32.xlu0 %v459, 24
      %v1419 = vpop.permute.xlu0 %1418
      %1420 = vrot.lane.b32.xlu0 %v461, 24
      %v1421 = vpop.permute.xlu0 %1420
      %1422 = vrot.lane.b32.xlu0 %v462, 24
      %v1423 = vpop.permute.xlu0 %1422
      %1424 = vrot.lane.b32.xlu0 %v464, 24
      %v1425 = vpop.permute.xlu0 %1424
      %1426 = vrot.lane.b32.xlu0 %v465, 24
      %v1427 = vpop.permute.xlu0 %1426
      %1428 = vrot.lane.b32.xlu0 %v467, 24
      %v1429 = vpop.permute.xlu0 %1428
      %1430 = vrot.lane.b32.xlu0 %v468, 24
      %v1431 = vpop.permute.xlu0 %1430
      %1432 = vrot.lane.b32.xlu0 %v470, 24
      %v1433 = vpop.permute.xlu0 %1432
      %1434 = vrot.lane.b32.xlu0 %v471, 24
      %v1435 = vpop.permute.xlu0 %1434
      %1436 = vrot.lane.b32.xlu0 %v473, 24
      %v1437 = vpop.permute.xlu0 %1436
      %1438 = vrot.lane.b32.xlu0 %v474, 24
      %v1439 = vpop.permute.xlu0 %1438
      %1440 = vrot.lane.b32.xlu0 %v476, 24
      %v1441 = vpop.permute.xlu0 %1440
      %1442 = vrot.lane.b32.xlu0 %v477, 24
      %v1443 = vpop.permute.xlu0 %1442
      %1444 = vrot.lane.b32.xlu0 %v479, 24
      %v1445 = vpop.permute.xlu0 %1444
      %1446 = vrot.lane.b32.xlu0 %v480, 24
      %v1447 = vpop.permute.xlu0 %1446
      %vm1480 = vcmask 228544
      %1481 = vst.msk [vmem:[#allocation3] sm:$0xff] %vm1480, %v1385
      %1482 = vst.msk [vmem:[#allocation3 + $0x8] sm:$0xff] %vm1480, %v1387
      %1483 = vst.msk [vmem:[#allocation3 + $0x10] sm:$0xff] %vm1480, %v1389
      %1484 = vst.msk [vmem:[#allocation3 + $0x18] sm:$0xff] %vm1480, %v1391
      %1485 = vst.msk [vmem:[#allocation3 + $0x20] sm:$0xff] %vm1480, %v1393
      %1486 = vst.msk [vmem:[#allocation3 + $0x28] sm:$0xff] %vm1480, %v1395
      %1487 = vst.msk [vmem:[#allocation3 + $0x30] sm:$0xff] %vm1480, %v1397
      %1488 = vst.msk [vmem:[#allocation3 + $0x38] sm:$0xff] %vm1480, %v1399
      %1489 = vst.msk [vmem:[#allocation3 + $0x40] sm:$0xff] %vm1480, %v1401
      %1490 = vst.msk [vmem:[#allocation3 + $0x48] sm:$0xff] %vm1480, %v1403
      %1491 = vst.msk [vmem:[#allocation3 + $0x50] sm:$0xff] %vm1480, %v1405
      %1492 = vst.msk [vmem:[#allocation3 + $0x58] sm:$0xff] %vm1480, %v1407
      %1493 = vst.msk [vmem:[#allocation3 + $0x60] sm:$0xff] %vm1480, %v1409
      %1494 = vst.msk [vmem:[#allocation3 + $0x68] sm:$0xff] %vm1480, %v1411
      %1495 = vst.msk [vmem:[#allocation3 + $0x70] sm:$0xff] %vm1480, %v1413
      %1496 = vst.msk [vmem:[#allocation3 + $0x78] sm:$0xff] %vm1480, %v1415
      %1497 = vst.msk [vmem:[#allocation3 + $0x80] sm:$0xff] %vm1480, %v1417
      %1498 = vst.msk [vmem:[#allocation3 + $0x88] sm:$0xff] %vm1480, %v1419
      %1499 = vst.msk [vmem:[#allocation3 + $0x90] sm:$0xff] %vm1480, %v1421
      %1500 = vst.msk [vmem:[#allocation3 + $0x98] sm:$0xff] %vm1480, %v1423
      %1501 = vst.msk [vmem:[#allocation3 + $0xa0] sm:$0xff] %vm1480, %v1425
      %1502 = vst.msk [vmem:[#allocation3 + $0xa8] sm:$0xff] %vm1480, %v1427
      %1503 = vst.msk [vmem:[#allocation3 + $0xb0] sm:$0xff] %vm1480, %v1429
      %1504 = vst.msk [vmem:[#allocation3 + $0xb8] sm:$0xff] %vm1480, %v1431
      %1505 = vst.msk [vmem:[#allocation3 + $0xc0] sm:$0xff] %vm1480, %v1433
      %1506 = vst.msk [vmem:[#allocation3 + $0xc8] sm:$0xff] %vm1480, %v1435
      %1507 = vst.msk [vmem:[#allocation3 + $0xd0] sm:$0xff] %vm1480, %v1437
      %1508 = vst.msk [vmem:[#allocation3 + $0xd8] sm:$0xff] %vm1480, %v1439
      %1509 = vst.msk [vmem:[#allocation3 + $0xe0] sm:$0xff] %vm1480, %v1441
      %1510 = vst.msk [vmem:[#allocation3 + $0xe8] sm:$0xff] %vm1480, %v1443
      %1511 = vst.msk [vmem:[#allocation3 + $0xf0] sm:$0xff] %vm1480, %v1445
      %1512 = vst.msk [vmem:[#allocation3 + $0xf8] sm:$0xff] %vm1480, %v1447
      %v1514 = vrot.slane %v479, 1
      %v1515 = vrot.slane %v480, 1
      %v1516 = vsel %vm562, %v1514, %v1515
      %v1517 = vrot.slane %v481, 1
      %v1518 = vsel %vm562, %v1515, %v1517
      %1519 = vrot.lane.b32.xlu0 %v575, 28
      %v1520 = vpop.permute.xlu0 %1519
      %1521 = vrot.lane.b32.xlu0 %v577, 28
      %v1522 = vpop.permute.xlu0 %1521
      %1523 = vrot.lane.b32.xlu0 %v580, 28
      %v1524 = vpop.permute.xlu0 %1523
      %1525 = vrot.lane.b32.xlu0 %v582, 28
      %v1526 = vpop.permute.xlu0 %1525
      %1527 = vrot.lane.b32.xlu0 %v585, 28
      %v1528 = vpop.permute.xlu0 %1527
      %1529 = vrot.lane.b32.xlu0 %v587, 28
      %v1530 = vpop.permute.xlu0 %1529
      %1531 = vrot.lane.b32.xlu0 %v590, 28
      %v1532 = vpop.permute.xlu0 %1531
      %1533 = vrot.lane.b32.xlu0 %v592, 28
      %v1534 = vpop.permute.xlu0 %1533
      %1535 = vrot.lane.b32.xlu0 %v595, 28
      %v1536 = vpop.permute.xlu0 %1535
      %1537 = vrot.lane.b32.xlu0 %v597, 28
      %v1538 = vpop.permute.xlu0 %1537
      %1539 = vrot.lane.b32.xlu0 %v600, 28
      %v1540 = vpop.permute.xlu0 %1539
      %1541 = vrot.lane.b32.xlu0 %v602, 28
      %v1542 = vpop.permute.xlu0 %1541
      %1543 = vrot.lane.b32.xlu0 %v605, 28
      %v1544 = vpop.permute.xlu0 %1543
      %1545 = vrot.lane.b32.xlu0 %v607, 28
      %v1546 = vpop.permute.xlu0 %1545
      %1547 = vrot.lane.b32.xlu0 %v610, 28
      %v1548 = vpop.permute.xlu0 %1547
      %1549 = vrot.lane.b32.xlu0 %v612, 28
      %v1550 = vpop.permute.xlu0 %1549
      %1551 = vrot.lane.b32.xlu0 %v615, 28
      %v1552 = vpop.permute.xlu0 %1551
      %1553 = vrot.lane.b32.xlu0 %v617, 28
      %v1554 = vpop.permute.xlu0 %1553
      %1555 = vrot.lane.b32.xlu0 %v620, 28
      %v1556 = vpop.permute.xlu0 %1555
      %1557 = vrot.lane.b32.xlu0 %v622, 28
      %v1558 = vpop.permute.xlu0 %1557
      %1559 = vrot.lane.b32.xlu0 %v625, 28
      %v1560 = vpop.permute.xlu0 %1559
      %1561 = vrot.lane.b32.xlu0 %v627, 28
      %v1562 = vpop.permute.xlu0 %1561
      %1563 = vrot.lane.b32.xlu0 %v630, 28
      %v1564 = vpop.permute.xlu0 %1563
      %1565 = vrot.lane.b32.xlu0 %v632, 28
      %v1566 = vpop.permute.xlu0 %1565
      %1567 = vrot.lane.b32.xlu0 %v635, 28
      %v1568 = vpop.permute.xlu0 %1567
      %1569 = vrot.lane.b32.xlu0 %v637, 28
      %v1570 = vpop.permute.xlu0 %1569
      %1571 = vrot.lane.b32.xlu0 %v640, 28
      %v1572 = vpop.permute.xlu0 %1571
      %1573 = vrot.lane.b32.xlu0 %v642, 28
      %v1574 = vpop.permute.xlu0 %1573
      %1575 = vrot.lane.b32.xlu0 %v1116, 28
      %v1576 = vpop.permute.xlu0 %1575
      %1577 = vrot.lane.b32.xlu0 %v1118, 28
      %v1578 = vpop.permute.xlu0 %1577
      %1579 = vrot.lane.b32.xlu0 %v1516, 28
      %v1580 = vpop.permute.xlu0 %1579
      %1581 = vrot.lane.b32.xlu0 %v1518, 28
      %v1582 = vpop.permute.xlu0 %1581
      %vm1615 = vcmask 261344
      %1616 = vst.msk [vmem:[#allocation3] sm:$0xff] %vm1615, %v1520
      %1617 = vst.msk [vmem:[#allocation3 + $0x8] sm:$0xff] %vm1615, %v1522
      %1618 = vst.msk [vmem:[#allocation3 + $0x10] sm:$0xff] %vm1615, %v1524
      %1619 = vst.msk [vmem:[#allocation3 + $0x18] sm:$0xff] %vm1615, %v1526
      %1620 = vst.msk [vmem:[#allocation3 + $0x20] sm:$0xff] %vm1615, %v1528
      %1621 = vst.msk [vmem:[#allocation3 + $0x28] sm:$0xff] %vm1615, %v1530
      %1622 = vst.msk [vmem:[#allocation3 + $0x30] sm:$0xff] %vm1615, %v1532
      %1623 = vst.msk [vmem:[#allocation3 + $0x38] sm:$0xff] %vm1615, %v1534
      %1624 = vst.msk [vmem:[#allocation3 + $0x40] sm:$0xff] %vm1615, %v1536
      %1625 = vst.msk [vmem:[#allocation3 + $0x48] sm:$0xff] %vm1615, %v1538
      %1626 = vst.msk [vmem:[#allocation3 + $0x50] sm:$0xff] %vm1615, %v1540
      %1627 = vst.msk [vmem:[#allocation3 + $0x58] sm:$0xff] %vm1615, %v1542
      %1628 = vst.msk [vmem:[#allocation3 + $0x60] sm:$0xff] %vm1615, %v1544
      %1629 = vst.msk [vmem:[#allocation3 + $0x68] sm:$0xff] %vm1615, %v1546
      %1630 = vst.msk [vmem:[#allocation3 + $0x70] sm:$0xff] %vm1615, %v1548
      %1631 = vst.msk [vmem:[#allocation3 + $0x78] sm:$0xff] %vm1615, %v1550
      %1632 = vst.msk [vmem:[#allocation3 + $0x80] sm:$0xff] %vm1615, %v1552
      %1633 = vst.msk [vmem:[#allocation3 + $0x88] sm:$0xff] %vm1615, %v1554
      %1634 = vst.msk [vmem:[#allocation3 + $0x90] sm:$0xff] %vm1615, %v1556
      %1635 = vst.msk [vmem:[#allocation3 + $0x98] sm:$0xff] %vm1615, %v1558
      %1636 = vst.msk [vmem:[#allocation3 + $0xa0] sm:$0xff] %vm1615, %v1560
      %1637 = vst.msk [vmem:[#allocation3 + $0xa8] sm:$0xff] %vm1615, %v1562
      %1638 = vst.msk [vmem:[#allocation3 + $0xb0] sm:$0xff] %vm1615, %v1564
      %1639 = vst.msk [vmem:[#allocation3 + $0xb8] sm:$0xff] %vm1615, %v1566
      %1640 = vst.msk [vmem:[#allocation3 + $0xc0] sm:$0xff] %vm1615, %v1568
      %1641 = vst.msk [vmem:[#allocation3 + $0xc8] sm:$0xff] %vm1615, %v1570
      %1642 = vst.msk [vmem:[#allocation3 + $0xd0] sm:$0xff] %vm1615, %v1572
      %1643 = vst.msk [vmem:[#allocation3 + $0xd8] sm:$0xff] %vm1615, %v1574
      %1644 = vst.msk [vmem:[#allocation3 + $0xe0] sm:$0xff] %vm1615, %v1576
      %1645 = vst.msk [vmem:[#allocation3 + $0xe8] sm:$0xff] %vm1615, %v1578
      %1646 = vst.msk [vmem:[#allocation3 + $0xf0] sm:$0xff] %vm1615, %v1580
      %1647 = vst.msk [vmem:[#allocation3 + $0xf8] sm:$0xff] %vm1615, %v1582
      %v1648 = vrot.slane %v479, 2
      %v1649 = vrot.slane %v480, 2
      %v1650 = vsel %vm772, %v1648, %v1649
      %v1651 = vrot.slane %v481, 2
      %v1652 = vsel %vm772, %v1649, %v1651
      %1653 = vrot.lane.b32.xlu0 %v785, 32
      %v1654 = vpop.permute.xlu0 %1653
      %1655 = vrot.lane.b32.xlu0 %v787, 32
      %v1656 = vpop.permute.xlu0 %1655
      %1657 = vrot.lane.b32.xlu0 %v790, 32
      %v1658 = vpop.permute.xlu0 %1657
      %1659 = vrot.lane.b32.xlu0 %v792, 32
      %v1660 = vpop.permute.xlu0 %1659
      %1661 = vrot.lane.b32.xlu0 %v795, 32
      %v1662 = vpop.permute.xlu0 %1661
      %1663 = vrot.lane.b32.xlu0 %v797, 32
      %v1664 = vpop.permute.xlu0 %1663
      %1665 = vrot.lane.b32.xlu0 %v800, 32
      %v1666 = vpop.permute.xlu0 %1665
      %1667 = vrot.lane.b32.xlu0 %v802, 32
      %v1668 = vpop.permute.xlu0 %1667
      %1669 = vrot.lane.b32.xlu0 %v805, 32
      %v1670 = vpop.permute.xlu0 %1669
      %1671 = vrot.lane.b32.xlu0 %v807, 32
      %v1672 = vpop.permute.xlu0 %1671
      %1673 = vrot.lane.b32.xlu0 %v810, 32
      %v1674 = vpop.permute.xlu0 %1673
      %1675 = vrot.lane.b32.xlu0 %v812, 32
      %v1676 = vpop.permute.xlu0 %1675
      %1677 = vrot.lane.b32.xlu0 %v815, 32
      %v1678 = vpop.permute.xlu0 %1677
      %1679 = vrot.lane.b32.xlu0 %v817, 32
      %v1680 = vpop.permute.xlu0 %1679
      %1681 = vrot.lane.b32.xlu0 %v820, 32
      %v1682 = vpop.permute.xlu0 %1681
      %1683 = vrot.lane.b32.xlu0 %v822, 32
      %v1684 = vpop.permute.xlu0 %1683
      %1685 = vrot.lane.b32.xlu0 %v825, 32
      %v1686 = vpop.permute.xlu0 %1685
      %1687 = vrot.lane.b32.xlu0 %v827, 32
      %v1688 = vpop.permute.xlu0 %1687
      %1689 = vrot.lane.b32.xlu0 %v830, 32
      %v1690 = vpop.permute.xlu0 %1689
      %1691 = vrot.lane.b32.xlu0 %v832, 32
      %v1692 = vpop.permute.xlu0 %1691
      %1693 = vrot.lane.b32.xlu0 %v835, 32
      %v1694 = vpop.permute.xlu0 %1693
      %1695 = vrot.lane.b32.xlu0 %v837, 32
      %v1696 = vpop.permute.xlu0 %1695
      %1697 = vrot.lane.b32.xlu0 %v840, 32
      %v1698 = vpop.permute.xlu0 %1697
      %1699 = vrot.lane.b32.xlu0 %v842, 32
      %v1700 = vpop.permute.xlu0 %1699
      %1701 = vrot.lane.b32.xlu0 %v845, 32
      %v1702 = vpop.permute.xlu0 %1701
      %1703 = vrot.lane.b32.xlu0 %v847, 32
      %v1704 = vpop.permute.xlu0 %1703
      %1705 = vrot.lane.b32.xlu0 %v850, 32
      %v1706 = vpop.permute.xlu0 %1705
      %1707 = vrot.lane.b32.xlu0 %v852, 32
      %v1708 = vpop.permute.xlu0 %1707
      %1709 = vrot.lane.b32.xlu0 %v1250, 32
      %v1710 = vpop.permute.xlu0 %1709
      %1711 = vrot.lane.b32.xlu0 %v1252, 32
      %v1712 = vpop.permute.xlu0 %1711
      %1713 = vrot.lane.b32.xlu0 %v1650, 32
      %v1714 = vpop.permute.xlu0 %1713
      %1715 = vrot.lane.b32.xlu0 %v1652, 32
      %v1716 = vpop.permute.xlu0 %1715
      %vm1749 = vcmask 294144
      %1750 = vst.msk [vmem:[#allocation3] sm:$0xff] %vm1749, %v1654
      %1751 = vst.msk [vmem:[#allocation3 + $0x8] sm:$0xff] %vm1749, %v1656
      %1752 = vst.msk [vmem:[#allocation3 + $0x10] sm:$0xff] %vm1749, %v1658
      %1753 = vst.msk [vmem:[#allocation3 + $0x18] sm:$0xff] %vm1749, %v1660
      %1754 = vst.msk [vmem:[#allocation3 + $0x20] sm:$0xff] %vm1749, %v1662
      %1755 = vst.msk [vmem:[#allocation3 + $0x28] sm:$0xff] %vm1749, %v1664
      %1756 = vst.msk [vmem:[#allocation3 + $0x30] sm:$0xff] %vm1749, %v1666
      %1757 = vst.msk [vmem:[#allocation3 + $0x38] sm:$0xff] %vm1749, %v1668
      %1758 = vst.msk [vmem:[#allocation3 + $0x40] sm:$0xff] %vm1749, %v1670
      %1759 = vst.msk [vmem:[#allocation3 + $0x48] sm:$0xff] %vm1749, %v1672
      %1760 = vst.msk [vmem:[#allocation3 + $0x50] sm:$0xff] %vm1749, %v1674
      %1761 = vst.msk [vmem:[#allocation3 + $0x58] sm:$0xff] %vm1749, %v1676
      %1762 = vst.msk [vmem:[#allocation3 + $0x60] sm:$0xff] %vm1749, %v1678
      %1763 = vst.msk [vmem:[#allocation3 + $0x68] sm:$0xff] %vm1749, %v1680
      %1764 = vst.msk [vmem:[#allocation3 + $0x70] sm:$0xff] %vm1749, %v1682
      %1765 = vst.msk [vmem:[#allocation3 + $0x78] sm:$0xff] %vm1749, %v1684
      %1766 = vst.msk [vmem:[#allocation3 + $0x80] sm:$0xff] %vm1749, %v1686
      %1767 = vst.msk [vmem:[#allocation3 + $0x88] sm:$0xff] %vm1749, %v1688
      %1768 = vst.msk [vmem:[#allocation3 + $0x90] sm:$0xff] %vm1749, %v1690
      %1769 = vst.msk [vmem:[#allocation3 + $0x98] sm:$0xff] %vm1749, %v1692
      %1770 = vst.msk [vmem:[#allocation3 + $0xa0] sm:$0xff] %vm1749, %v1694
      %1771 = vst.msk [vmem:[#allocation3 + $0xa8] sm:$0xff] %vm1749, %v1696
      %1772 = vst.msk [vmem:[#allocation3 + $0xb0] sm:$0xff] %vm1749, %v1698
      %1773 = vst.msk [vmem:[#allocation3 + $0xb8] sm:$0xff] %vm1749, %v1700
      %1774 = vst.msk [vmem:[#allocation3 + $0xc0] sm:$0xff] %vm1749, %v1702
      %1775 = vst.msk [vmem:[#allocation3 + $0xc8] sm:$0xff] %vm1749, %v1704
      %1776 = vst.msk [vmem:[#allocation3 + $0xd0] sm:$0xff] %vm1749, %v1706
      %1777 = vst.msk [vmem:[#allocation3 + $0xd8] sm:$0xff] %vm1749, %v1708
      %1778 = vst.msk [vmem:[#allocation3 + $0xe0] sm:$0xff] %vm1749, %v1710
      %1779 = vst.msk [vmem:[#allocation3 + $0xe8] sm:$0xff] %vm1749, %v1712
      %1780 = vst.msk [vmem:[#allocation3 + $0xf0] sm:$0xff] %vm1749, %v1714
      %1781 = vst.msk [vmem:[#allocation3 + $0xf8] sm:$0xff] %vm1749, %v1716
      %v1782 = vld [vmem:[#allocation3] sm:$0xff]
      %v1783 = vld [vmem:[#allocation3 + $0x8] sm:$0xff]
      %v1784 = vld [vmem:[#allocation3 + $0x10] sm:$0xff]
      %v1785 = vld [vmem:[#allocation3 + $0x18] sm:$0xff]
      %v1786 = vld [vmem:[#allocation3 + $0x20] sm:$0xff]
      %v1787 = vld [vmem:[#allocation3 + $0x28] sm:$0xff]
      %v1788 = vld [vmem:[#allocation3 + $0x30] sm:$0xff]
      %v1789 = vld [vmem:[#allocation3 + $0x38] sm:$0xff]
      %v1790 = vld [vmem:[#allocation3 + $0x40] sm:$0xff]
      %v1791 = vld [vmem:[#allocation3 + $0x48] sm:$0xff]
      %v1792 = vld [vmem:[#allocation3 + $0x50] sm:$0xff]
      %v1793 = vld [vmem:[#allocation3 + $0x58] sm:$0xff]
      %v1794 = vld [vmem:[#allocation3 + $0x60] sm:$0xff]
      %v1795 = vld [vmem:[#allocation3 + $0x68] sm:$0xff]
      %v1796 = vld [vmem:[#allocation3 + $0x70] sm:$0xff]
      %v1797 = vld [vmem:[#allocation3 + $0x78] sm:$0xff]
      %v1798 = vld [vmem:[#allocation3 + $0x80] sm:$0xff]
      %v1799 = vld [vmem:[#allocation3 + $0x88] sm:$0xff]
      %v1800 = vld [vmem:[#allocation3 + $0x90] sm:$0xff]
      %v1801 = vld [vmem:[#allocation3 + $0x98] sm:$0xff]
      %v1802 = vld [vmem:[#allocation3 + $0xa0] sm:$0xff]
      %v1803 = vld [vmem:[#allocation3 + $0xa8] sm:$0xff]
      %v1804 = vld [vmem:[#allocation3 + $0xb0] sm:$0xff]
      %v1805 = vld [vmem:[#allocation3 + $0xb8] sm:$0xff]
      %v1806 = vld [vmem:[#allocation3 + $0xc0] sm:$0xff]
      %v1807 = vld [vmem:[#allocation3 + $0xc8] sm:$0xff]
      %v1808 = vld [vmem:[#allocation3 + $0xd0] sm:$0xff]
      %v1809 = vld [vmem:[#allocation3 + $0xd8] sm:$0xff]
      %v1810 = vld [vmem:[#allocation3 + $0xe0] sm:$0xff]
      %v1811 = vld [vmem:[#allocation3 + $0xe8] sm:$0xff]
      %v1812 = vld [vmem:[#allocation3 + $0xf0] sm:$0xff]
      %v1813 = vld [vmem:[#allocation3 + $0xf8] sm:$0xff]
      %v1814 = vld [vmem:[%s1] sm:$0xff]
      %v1815 = vld [vmem:[%s1 + $0x8] sm:$0xff]
      %v1816 = vld [vmem:[%s1 + $0x10] sm:$0xff]
      %v1817 = vld [vmem:[%s1 + $0x18] sm:$0xff]
      %v1818 = vld [vmem:[%s1 + $0x20] sm:$0xf]
      %v1819 = vld [vmem:[%s2] sm:$0x1]
      %v1821 = vlaneseq
      %v1822 = vshrl.u32 %v1821, 7
      %v1823 = vsub.s32 0, %v1822
      %v1824 = vrot.slane %v1819, %v1823
      %vm1826 = vcmask 293888
      %v1828 = vsel %vm1826, %v1782, 0
      %v1831 = vsel %vm1826, %v1783, 0
      %v1834 = vsel %vm1826, %v1784, 0
      %v1837 = vsel %vm1826, %v1785, 0
      %v1840 = vsel %vm1826, %v1786, 0
      %v1843 = vsel %vm1826, %v1787, 0
      %v1846 = vsel %vm1826, %v1788, 0
      %v1849 = vsel %vm1826, %v1789, 0
      %v1852 = vsel %vm1826, %v1790, 0
      %v1855 = vsel %vm1826, %v1791, 0
      %v1858 = vsel %vm1826, %v1792, 0
      %v1861 = vsel %vm1826, %v1793, 0
      %v1864 = vsel %vm1826, %v1794, 0
      %v1867 = vsel %vm1826, %v1795, 0
      %v1870 = vsel %vm1826, %v1796, 0
      %v1873 = vsel %vm1826, %v1797, 0
      %v1876 = vsel %vm1826, %v1798, 0
      %v1879 = vsel %vm1826, %v1799, 0
      %v1882 = vsel %vm1826, %v1800, 0
      %v1885 = vsel %vm1826, %v1801, 0
      %v1888 = vsel %vm1826, %v1802, 0
      %v1891 = vsel %vm1826, %v1803, 0
      %v1894 = vsel %vm1826, %v1804, 0
      %v1897 = vsel %vm1826, %v1805, 0
      %v1900 = vsel %vm1826, %v1806, 0
      %v1903 = vsel %vm1826, %v1807, 0
      %v1906 = vsel %vm1826, %v1808, 0
      %v1909 = vsel %vm1826, %v1809, 0
      %v1912 = vsel %vm1826, %v1810, 0
      %v1915 = vsel %vm1826, %v1811, 0
      %v1918 = vsel %vm1826, %v1812, 0
      %v1921 = vsel %vm1826, %v1813, 0
      %vm1923 = vcmask 1043456
      %v1925 = vsel %vm1923, %v1818, 0
      %1927 = vmatprep.subr.mxu0 0.0
      %1928 = vmatpush1.msra.mxu0 %v1814
      %1929 = vmatprep.subr.mxu0 0.0
      %1930 = vmatpush1.msra.mxu0 %v1815
      %1931 = vmatprep.subr.mxu0 0.0
      %1932 = vmatpush1.msra.mxu0 %v1816
      %1933 = vmatprep.subr.mxu0 0.0
      %1934 = vmatpush1.msra.mxu0 %v1817
      %1935 = vmatprep.subr.mxu0 0.0
      %1936 = vmatpush1.msra.mxu0 %v1925
      %1937 = vmatprep.subr.mxu0 0.0
      %1938 = vmatpush1.msra.mxu0 0.0
      %1939 = vmatprep.subr.mxu0 0.0
      %1940 = vmatpush1.msra.mxu0 0.0
      %1941 = vmatprep.subr.mxu0 0.0
      %1942 = vmatpush1.msra.mxu0 0.0
      %1943 = vmatprep.subr.mxu0 0.0
      %1944 = vmatpush1.msra.mxu0 0.0
      %1945 = vmatprep.subr.mxu0 0.0
      %1946 = vmatpush1.msra.mxu0 0.0
      %1947 = vmatprep.subr.mxu0 0.0
      %1948 = vmatpush1.msra.mxu0 0.0
      %1949 = vmatprep.subr.mxu0 0.0
      %1950 = vmatpush1.msra.mxu0 0.0
      %1951 = vmatprep.subr.mxu0 0.0
      %1952 = vmatpush1.msra.mxu0 0.0
      %1953 = vmatprep.subr.mxu0 0.0
      %1954 = vmatpush1.msra.mxu0 0.0
      %1955 = vmatprep.subr.mxu0 0.0
      %1956 = vmatpush1.msra.mxu0 0.0
      %1957 = vmatprep.subr.mxu0 0.0
      %1958 = vmatpush1.msra.mxu0 0.0
      %1959 = vmatprep.subr.mxu0 0.0
      %1960 = vmatpush1.msra.mxu0 0.0
      %1961 = vmatprep.subr.mxu0 0.0
      %1962 = vmatpush1.msra.mxu0 0.0
      %1963 = vmatprep.subr.mxu0 0.0
      %1964 = vmatpush1.msra.mxu0 0.0
      %1965 = vmatprep.subr.mxu0 0.0
      %1966 = vmatpush1.msra.mxu0 0.0
      %1967 = vmatprep.subr.mxu0 0.0
      %1968 = vmatpush1.msra.mxu0 0.0
      %1969 = vmatprep.subr.mxu0 0.0
      %1970 = vmatpush1.msra.mxu0 0.0
      %1971 = vmatprep.subr.mxu0 0.0
      %1972 = vmatpush1.msra.mxu0 0.0
      %1973 = vmatprep.subr.mxu0 0.0
      %1974 = vmatpush1.msra.mxu0 0.0
      %1975 = vmatprep.subr.mxu0 0.0
      %1976 = vmatpush1.msra.mxu0 0.0
      %1977 = vmatprep.subr.mxu0 0.0
      %1978 = vmatpush1.msra.mxu0 0.0
      %1979 = vmatprep.subr.mxu0 0.0
      %1980 = vmatpush1.msra.mxu0 0.0
      %1981 = vmatprep.subr.mxu0 0.0
      %1982 = vmatpush1.msra.mxu0 0.0
      %1983 = vmatprep.subr.mxu0 0.0
      %1984 = vmatpush1.msra.mxu0 0.0
      %1985 = vmatprep.subr.mxu0 0.0
      %1986 = vmatpush1.msra.mxu0 0.0
      %1987 = vmatprep.subr.mxu0 0.0
      %1988 = vmatpush1.msra.mxu0 0.0
      %1989 = vmatprep.subr.mxu0 0.0
      %1990 = vmatpush1.msra.mxu0 0.0
      %1991 = vmatprep.mubr.f32.mxu0 0.0
      %1992 = vmatmul.mubr.f32.gmra.mrb[0].mxu0 %v1828
      %v1993 = vpop.f32.mrb[0].mxu0
      %v1994 = vadd.f32 %v1824, %v1993
      %v1995 = vpop.f32.mrb[0].mxu0
      %1996 = vmatprep.mubr.f32.mxu0 0.0
      %1997 = vmatmul.mubr.f32.gmra.mrb[0].mxu0 %v1831
      %v1998 = vpop.f32.mrb[0].mxu0
      %v1999 = vadd.f32 %v1824, %v1998
      %v2000 = vpop.f32.mrb[0].mxu0
      %2001 = vmatprep.mubr.f32.mxu0 0.0
      %2002 = vmatmul.mubr.f32.gmra.mrb[0].mxu0 %v1834
      %v2003 = vpop.f32.mrb[0].mxu0
      %v2004 = vadd.f32 %v1824, %v2003
      %v2005 = vpop.f32.mrb[0].mxu0
      %2006 = vmatprep.mubr.f32.mxu0 0.0
      %2007 = vmatmul.mubr.f32.gmra.mrb[0].mxu0 %v1837
      %v2008 = vpop.f32.mrb[0].mxu0
      %v2009 = vadd.f32 %v1824, %v2008
      %v2010 = vpop.f32.mrb[0].mxu0
      %2011 = vmatprep.mubr.f32.mxu0 0.0
      %2012 = vmatmul.mubr.f32.gmra.mrb[0].mxu0 %v1840
      %v2013 = vpop.f32.mrb[0].mxu0
      %v2014 = vadd.f32 %v1824, %v2013
      %v2015 = vpop.f32.mrb[0].mxu0
      %2016 = vmatprep.mubr.f32.mxu0 0.0
      %2017 = vmatmul.mubr.f32.gmra.mrb[0].mxu0 %v1843
      %v2018 = vpop.f32.mrb[0].mxu0
      %v2019 = vadd.f32 %v1824, %v2018
      %v2020 = vpop.f32.mrb[0].mxu0
      %2021 = vmatprep.mubr.f32.mxu0 0.0
      %2022 = vmatmul.mubr.f32.gmra.mrb[0].mxu0 %v1846
      %v2023 = vpop.f32.mrb[0].mxu0
      %v2024 = vadd.f32 %v1824, %v2023
      %v2025 = vpop.f32.mrb[0].mxu0
      %2026 = vmatprep.mubr.f32.mxu0 0.0
      %2027 = vmatmul.mubr.f32.gmra.mrb[0].mxu0 %v1849
      %v2028 = vpop.f32.mrb[0].mxu0
      %v2029 = vadd.f32 %v1824, %v2028
      %v2030 = vpop.f32.mrb[0].mxu0
      %2031 = vmatprep.mubr.f32.mxu0 0.0
      %2032 = vmatmul.mubr.f32.gmra.mrb[0].mxu0 %v1852
      %v2033 = vpop.f32.mrb[0].mxu0
      %v2034 = vadd.f32 %v1824, %v2033
      %v2035 = vpop.f32.mrb[0].mxu0
      %2036 = vmatprep.mubr.f32.mxu0 0.0
      %2037 = vmatmul.mubr.f32.gmra.mrb[0].mxu0 %v1855
      %v2038 = vpop.f32.mrb[0].mxu0
      %v2039 = vadd.f32 %v1824, %v2038
      %v2040 = vpop.f32.mrb[0].mxu0
      %2041 = vmatprep.mubr.f32.mxu0 0.0
      %2042 = vmatmul.mubr.f32.gmra.mrb[0].mxu0 %v1858
      %v2043 = vpop.f32.mrb[0].mxu0
      %v2044 = vadd.f32 %v1824, %v2043
      %v2045 = vpop.f32.mrb[0].mxu0
      %2046 = vmatprep.mubr.f32.mxu0 0.0
      %2047 = vmatmul.mubr.f32.gmra.mrb[0].mxu0 %v1861
      %v2048 = vpop.f32.mrb[0].mxu0
      %v2049 = vadd.f32 %v1824, %v2048
      %v2050 = vpop.f32.mrb[0].mxu0
      %2051 = vmatprep.mubr.f32.mxu0 0.0
      %2052 = vmatmul.mubr.f32.gmra.mrb[0].mxu0 %v1864
      %v2053 = vpop.f32.mrb[0].mxu0
      %v2054 = vadd.f32 %v1824, %v2053
      %v2055 = vpop.f32.mrb[0].mxu0
      %2056 = vmatprep.mubr.f32.mxu0 0.0
      %2057 = vmatmul.mubr.f32.gmra.mrb[0].mxu0 %v1867
      %v2058 = vpop.f32.mrb[0].mxu0
      %v2059 = vadd.f32 %v1824, %v2058
      %v2060 = vpop.f32.mrb[0].mxu0
      %2061 = vmatprep.mubr.f32.mxu0 0.0
      %2062 = vmatmul.mubr.f32.gmra.mrb[0].mxu0 %v1870
      %v2063 = vpop.f32.mrb[0].mxu0
      %v2064 = vadd.f32 %v1824, %v2063
      %v2065 = vpop.f32.mrb[0].mxu0
      %2066 = vmatprep.mubr.f32.mxu0 0.0
      %2067 = vmatmul.mubr.f32.gmra.mrb[0].mxu0 %v1873
      %v2068 = vpop.f32.mrb[0].mxu0
      %v2069 = vadd.f32 %v1824, %v2068
      %v2070 = vpop.f32.mrb[0].mxu0
      %2071 = vmatprep.mubr.f32.mxu0 0.0
      %2072 = vmatmul.mubr.f32.gmra.mrb[0].mxu0 %v1876
      %v2073 = vpop.f32.mrb[0].mxu0
      %v2074 = vadd.f32 %v1824, %v2073
      %v2075 = vpop.f32.mrb[0].mxu0
      %2076 = vmatprep.mubr.f32.mxu0 0.0
      %2077 = vmatmul.mubr.f32.gmra.mrb[0].mxu0 %v1879
      %v2078 = vpop.f32.mrb[0].mxu0
      %v2079 = vadd.f32 %v1824, %v2078
      %v2080 = vpop.f32.mrb[0].mxu0
      %2081 = vmatprep.mubr.f32.mxu0 0.0
      %2082 = vmatmul.mubr.f32.gmra.mrb[0].mxu0 %v1882
      %v2083 = vpop.f32.mrb[0].mxu0
      %v2084 = vadd.f32 %v1824, %v2083
      %v2085 = vpop.f32.mrb[0].mxu0
      %2086 = vmatprep.mubr.f32.mxu0 0.0
      %2087 = vmatmul.mubr.f32.gmra.mrb[0].mxu0 %v1885
      %v2088 = vpop.f32.mrb[0].mxu0
      %v2089 = vadd.f32 %v1824, %v2088
      %v2090 = vpop.f32.mrb[0].mxu0
      %2091 = vmatprep.mubr.f32.mxu0 0.0
      %2092 = vmatmul.mubr.f32.gmra.mrb[0].mxu0 %v1888
      %v2093 = vpop.f32.mrb[0].mxu0
      %v2094 = vadd.f32 %v1824, %v2093
      %v2095 = vpop.f32.mrb[0].mxu0
      %2096 = vmatprep.mubr.f32.mxu0 0.0
      %2097 = vmatmul.mubr.f32.gmra.mrb[0].mxu0 %v1891
      %v2098 = vpop.f32.mrb[0].mxu0
      %v2099 = vadd.f32 %v1824, %v2098
      %v2100 = vpop.f32.mrb[0].mxu0
      %2101 = vmatprep.mubr.f32.mxu0 0.0
      %2102 = vmatmul.mubr.f32.gmra.mrb[0].mxu0 %v1894
      %v2103 = vpop.f32.mrb[0].mxu0
      %v2104 = vadd.f32 %v1824, %v2103
      %v2105 = vpop.f32.mrb[0].mxu0
      %2106 = vmatprep.mubr.f32.mxu0 0.0
      %2107 = vmatmul.mubr.f32.gmra.mrb[0].mxu0 %v1897
      %v2108 = vpop.f32.mrb[0].mxu0
      %v2109 = vadd.f32 %v1824, %v2108
      %v2110 = vpop.f32.mrb[0].mxu0
      %2111 = vmatprep.mubr.f32.mxu0 0.0
      %2112 = vmatmul.mubr.f32.gmra.mrb[0].mxu0 %v1900
      %v2113 = vpop.f32.mrb[0].mxu0
      %v2114 = vadd.f32 %v1824, %v2113
      %v2115 = vpop.f32.mrb[0].mxu0
      %2116 = vmatprep.mubr.f32.mxu0 0.0
      %2117 = vmatmul.mubr.f32.gmra.mrb[0].mxu0 %v1903
      %v2118 = vpop.f32.mrb[0].mxu0
      %v2119 = vadd.f32 %v1824, %v2118
      %v2120 = vpop.f32.mrb[0].mxu0
      %2121 = vmatprep.mubr.f32.mxu0 0.0
      %2122 = vmatmul.mubr.f32.gmra.mrb[0].mxu0 %v1906
      %v2123 = vpop.f32.mrb[0].mxu0
      %v2124 = vadd.f32 %v1824, %v2123
      %v2125 = vpop.f32.mrb[0].mxu0
      %2126 = vmatprep.mubr.f32.mxu0 0.0
      %2127 = vmatmul.mubr.f32.gmra.mrb[0].mxu0 %v1909
      %v2128 = vpop.f32.mrb[0].mxu0
      %v2129 = vadd.f32 %v1824, %v2128
      %v2130 = vpop.f32.mrb[0].mxu0
      %2131 = vmatprep.mubr.f32.mxu0 0.0
      %2132 = vmatmul.mubr.f32.gmra.mrb[0].mxu0 %v1912
      %v2133 = vpop.f32.mrb[0].mxu0
      %v2134 = vadd.f32 %v1824, %v2133
      %v2135 = vpop.f32.mrb[0].mxu0
      %2136 = vmatprep.mubr.f32.mxu0 0.0
      %2137 = vmatmul.mubr.f32.gmra.mrb[0].mxu0 %v1915
      %v2138 = vpop.f32.mrb[0].mxu0
      %v2139 = vadd.f32 %v1824, %v2138
      %v2140 = vpop.f32.mrb[0].mxu0
      %2141 = vmatprep.mubr.f32.mxu0 0.0
      %2142 = vmatmul.mubr.f32.gmra.mrb[0].mxu0 %v1918
      %v2143 = vpop.f32.mrb[0].mxu0
      %v2144 = vadd.f32 %v1824, %v2143
      %v2145 = vpop.f32.mrb[0].mxu0
      %2146 = vmatprep.mubr.f32.mxu0 0.0
      %2147 = vmatmul.mubr.f32.gmra.mrb[0].mxu0 %v1921
      %v2148 = vpop.f32.mrb[0].mxu0
      %v2149 = vadd.f32 %v1824, %v2148
      %v2150 = vpop.f32.mrb[0].mxu0
      %2151 = vdwg.mxu0
      %v2152 = vmin.f32 %v1994, 0.0
      %v2153 = vmin.f32 %v1999, 0.0
      %v2154 = vmin.f32 %v2004, 0.0
      %v2155 = vmin.f32 %v2009, 0.0
      %v2156 = vmin.f32 %v2014, 0.0
      %v2157 = vmin.f32 %v2019, 0.0
      %v2158 = vmin.f32 %v2024, 0.0
      %v2159 = vmin.f32 %v2029, 0.0
      %v2160 = vmin.f32 %v2034, 0.0
      %v2161 = vmin.f32 %v2039, 0.0
      %v2162 = vmin.f32 %v2044, 0.0
      %v2163 = vmin.f32 %v2049, 0.0
      %v2164 = vmin.f32 %v2054, 0.0
      %v2165 = vmin.f32 %v2059, 0.0
      %v2166 = vmin.f32 %v2064, 0.0
      %v2167 = vmin.f32 %v2069, 0.0
      %v2168 = vmin.f32 %v2074, 0.0
      %v2169 = vmin.f32 %v2079, 0.0
      %v2170 = vmin.f32 %v2084, 0.0
      %v2171 = vmin.f32 %v2089, 0.0
      %v2172 = vmin.f32 %v2094, 0.0
      %v2173 = vmin.f32 %v2099, 0.0
      %v2174 = vmin.f32 %v2104, 0.0
      %v2175 = vmin.f32 %v2109, 0.0
      %v2176 = vmin.f32 %v2114, 0.0
      %v2177 = vmin.f32 %v2119, 0.0
      %v2178 = vmin.f32 %v2124, 0.0
      %v2179 = vmin.f32 %v2129, 0.0
      %v2180 = vmin.f32 %v2134, 0.0
      %v2181 = vmin.f32 %v2139, 0.0
      %v2182 = vmin.f32 %v2144, 0.0
      %v2183 = vmin.f32 %v2149, 0.0
      %v2184 = vmul.f32 %v2152, 1.442695
      %v2185 = vpow.pop %v2184
      %v2186 = vmul.f32 %v2153, 1.442695
      %v2187 = vpow.pop %v2186
      %v2188 = vmul.f32 %v2154, 1.442695
      %v2189 = vpow.pop %v2188
      %v2190 = vmul.f32 %v2155, 1.442695
      %v2191 = vpow.pop %v2190
      %v2192 = vmul.f32 %v2156, 1.442695
      %v2193 = vpow.pop %v2192
      %v2194 = vmul.f32 %v2157, 1.442695
      %v2195 = vpow.pop %v2194
      %v2196 = vmul.f32 %v2158, 1.442695
      %v2197 = vpow.pop %v2196
      %v2198 = vmul.f32 %v2159, 1.442695
      %v2199 = vpow.pop %v2198
      %v2200 = vmul.f32 %v2160, 1.442695
      %v2201 = vpow.pop %v2200
      %v2202 = vmul.f32 %v2161, 1.442695
      %v2203 = vpow.pop %v2202
      %v2204 = vmul.f32 %v2162, 1.442695
      %v2205 = vpow.pop %v2204
      %v2206 = vmul.f32 %v2163, 1.442695
      %v2207 = vpow.pop %v2206
      %v2208 = vmul.f32 %v2164, 1.442695
      %v2209 = vpow.pop %v2208
      %v2210 = vmul.f32 %v2165, 1.442695
      %v2211 = vpow.pop %v2210
      %v2212 = vmul.f32 %v2166, 1.442695
      %v2213 = vpow.pop %v2212
      %v2214 = vmul.f32 %v2167, 1.442695
      %v2215 = vpow.pop %v2214
      %v2216 = vmul.f32 %v2168, 1.442695
      %v2217 = vpow.pop %v2216
      %v2218 = vmul.f32 %v2169, 1.442695
      %v2219 = vpow.pop %v2218
      %v2220 = vmul.f32 %v2170, 1.442695
      %v2221 = vpow.pop %v2220
      %v2222 = vmul.f32 %v2171, 1.442695
      %v2223 = vpow.pop %v2222
      %v2224 = vmul.f32 %v2172, 1.442695
      %v2225 = vpow.pop %v2224
      %v2226 = vmul.f32 %v2173, 1.442695
      %v2227 = vpow.pop %v2226
      %v2228 = vmul.f32 %v2174, 1.442695
      %v2229 = vpow.pop %v2228
      %v2230 = vmul.f32 %v2175, 1.442695
      %v2231 = vpow.pop %v2230
      %v2232 = vmul.f32 %v2176, 1.442695
      %v2233 = vpow.pop %v2232
      %v2234 = vmul.f32 %v2177, 1.442695
      %v2235 = vpow.pop %v2234
      %v2236 = vmul.f32 %v2178, 1.442695
      %v2237 = vpow.pop %v2236
      %v2238 = vmul.f32 %v2179, 1.442695
      %v2239 = vpow.pop %v2238
      %v2240 = vmul.f32 %v2180, 1.442695
      %v2241 = vpow.pop %v2240
      %v2242 = vmul.f32 %v2181, 1.442695
      %v2243 = vpow.pop %v2242
      %v2244 = vmul.f32 %v2182, 1.442695
      %v2245 = vpow.pop %v2244
      %v2246 = vmul.f32 %v2183, 1.442695
      %v2247 = vpow.pop %v2246
      %v2248 = vsub.f32 %v2185, 1.0
      %v2249 = vsub.f32 %v2187, 1.0
      %v2250 = vsub.f32 %v2189, 1.0
      %v2251 = vsub.f32 %v2191, 1.0
      %v2252 = vsub.f32 %v2193, 1.0
      %v2253 = vsub.f32 %v2195, 1.0
      %v2254 = vsub.f32 %v2197, 1.0
      %v2255 = vsub.f32 %v2199, 1.0
      %v2256 = vsub.f32 %v2201, 1.0
      %v2257 = vsub.f32 %v2203, 1.0
      %v2258 = vsub.f32 %v2205, 1.0
      %v2259 = vsub.f32 %v2207, 1.0
      %v2260 = vsub.f32 %v2209, 1.0
      %v2261 = vsub.f32 %v2211, 1.0
      %v2262 = vsub.f32 %v2213, 1.0
      %v2263 = vsub.f32 %v2215, 1.0
      %v2264 = vsub.f32 %v2217, 1.0
      %v2265 = vsub.f32 %v2219, 1.0
      %v2266 = vsub.f32 %v2221, 1.0
      %v2267 = vsub.f32 %v2223, 1.0
      %v2268 = vsub.f32 %v2225, 1.0
      %v2269 = vsub.f32 %v2227, 1.0
      %v2270 = vsub.f32 %v2229, 1.0
      %v2271 = vsub.f32 %v2231, 1.0
      %v2272 = vsub.f32 %v2233, 1.0
      %v2273 = vsub.f32 %v2235, 1.0
      %v2274 = vsub.f32 %v2237, 1.0
      %v2275 = vsub.f32 %v2239, 1.0
      %v2276 = vsub.f32 %v2241, 1.0
      %v2277 = vsub.f32 %v2243, 1.0
      %v2278 = vsub.f32 %v2245, 1.0
      %v2279 = vsub.f32 %v2247, 1.0
      %v2280 = vmul.f32 %v2248, 1.6732632
      %v2281 = vmul.f32 %v2249, 1.6732632
      %v2282 = vmul.f32 %v2250, 1.6732632
      %v2283 = vmul.f32 %v2251, 1.6732632
      %v2284 = vmul.f32 %v2252, 1.6732632
      %v2285 = vmul.f32 %v2253, 1.6732632
      %v2286 = vmul.f32 %v2254, 1.6732632
      %v2287 = vmul.f32 %v2255, 1.6732632
      %v2288 = vmul.f32 %v2256, 1.6732632
      %v2289 = vmul.f32 %v2257, 1.6732632
      %v2290 = vmul.f32 %v2258, 1.6732632
      %v2291 = vmul.f32 %v2259, 1.6732632
      %v2292 = vmul.f32 %v2260, 1.6732632
      %v2293 = vmul.f32 %v2261, 1.6732632
      %v2294 = vmul.f32 %v2262, 1.6732632
      %v2295 = vmul.f32 %v2263, 1.6732632
      %v2296 = vmul.f32 %v2264, 1.6732632
      %v2297 = vmul.f32 %v2265, 1.6732632
      %v2298 = vmul.f32 %v2266, 1.6732632
      %v2299 = vmul.f32 %v2267, 1.6732632
      %v2300 = vmul.f32 %v2268, 1.6732632
      %v2301 = vmul.f32 %v2269, 1.6732632
      %v2302 = vmul.f32 %v2270, 1.6732632
      %v2303 = vmul.f32 %v2271, 1.6732632
      %v2304 = vmul.f32 %v2272, 1.6732632
      %v2305 = vmul.f32 %v2273, 1.6732632
      %v2306 = vmul.f32 %v2274, 1.6732632
      %v2307 = vmul.f32 %v2275, 1.6732632
      %v2308 = vmul.f32 %v2276, 1.6732632
      %v2309 = vmul.f32 %v2277, 1.6732632
      %v2310 = vmul.f32 %v2278, 1.6732632
      %v2311 = vmul.f32 %v2279, 1.6732632
      %vm2312 = vcmp.gt.f32.partialorder %v1994, 0.0
      %vm2313 = vcmp.gt.f32.partialorder %v1999, 0.0
      %vm2314 = vcmp.gt.f32.partialorder %v2004, 0.0
      %vm2315 = vcmp.gt.f32.partialorder %v2009, 0.0
      %vm2316 = vcmp.gt.f32.partialorder %v2014, 0.0
      %vm2317 = vcmp.gt.f32.partialorder %v2019, 0.0
      %vm2318 = vcmp.gt.f32.partialorder %v2024, 0.0
      %vm2319 = vcmp.gt.f32.partialorder %v2029, 0.0
      %vm2320 = vcmp.gt.f32.partialorder %v2034, 0.0
      %vm2321 = vcmp.gt.f32.partialorder %v2039, 0.0
      %vm2322 = vcmp.gt.f32.partialorder %v2044, 0.0
      %vm2323 = vcmp.gt.f32.partialorder %v2049, 0.0
      %vm2324 = vcmp.gt.f32.partialorder %v2054, 0.0
      %vm2325 = vcmp.gt.f32.partialorder %v2059, 0.0
      %vm2326 = vcmp.gt.f32.partialorder %v2064, 0.0
      %vm2327 = vcmp.gt.f32.partialorder %v2069, 0.0
      %vm2328 = vcmp.gt.f32.partialorder %v2074, 0.0
      %vm2329 = vcmp.gt.f32.partialorder %v2079, 0.0
      %vm2330 = vcmp.gt.f32.partialorder %v2084, 0.0
      %vm2331 = vcmp.gt.f32.partialorder %v2089, 0.0
      %vm2332 = vcmp.gt.f32.partialorder %v2094, 0.0
      %vm2333 = vcmp.gt.f32.partialorder %v2099, 0.0
      %vm2334 = vcmp.gt.f32.partialorder %v2104, 0.0
      %vm2335 = vcmp.gt.f32.partialorder %v2109, 0.0
      %vm2336 = vcmp.gt.f32.partialorder %v2114, 0.0
      %vm2337 = vcmp.gt.f32.partialorder %v2119, 0.0
      %vm2338 = vcmp.gt.f32.partialorder %v2124, 0.0
      %vm2339 = vcmp.gt.f32.partialorder %v2129, 0.0
      %vm2340 = vcmp.gt.f32.partialorder %v2134, 0.0
      %vm2341 = vcmp.gt.f32.partialorder %v2139, 0.0
      %vm2342 = vcmp.gt.f32.partialorder %v2144, 0.0
      %vm2343 = vcmp.gt.f32.partialorder %v2149, 0.0
      %v2344 = vsel %vm2312, %v1994, %v2280
      %v2345 = vsel %vm2313, %v1999, %v2281
      %v2346 = vsel %vm2314, %v2004, %v2282
      %v2347 = vsel %vm2315, %v2009, %v2283
      %v2348 = vsel %vm2316, %v2014, %v2284
      %v2349 = vsel %vm2317, %v2019, %v2285
      %v2350 = vsel %vm2318, %v2024, %v2286
      %v2351 = vsel %vm2319, %v2029, %v2287
      %v2352 = vsel %vm2320, %v2034, %v2288
      %v2353 = vsel %vm2321, %v2039, %v2289
      %v2354 = vsel %vm2322, %v2044, %v2290
      %v2355 = vsel %vm2323, %v2049, %v2291
      %v2356 = vsel %vm2324, %v2054, %v2292
      %v2357 = vsel %vm2325, %v2059, %v2293
      %v2358 = vsel %vm2326, %v2064, %v2294
      %v2359 = vsel %vm2327, %v2069, %v2295
      %v2360 = vsel %vm2328, %v2074, %v2296
      %v2361 = vsel %vm2329, %v2079, %v2297
      %v2362 = vsel %vm2330, %v2084, %v2298
      %v2363 = vsel %vm2331, %v2089, %v2299
      %v2364 = vsel %vm2332, %v2094, %v2300
      %v2365 = vsel %vm2333, %v2099, %v2301
      %v2366 = vsel %vm2334, %v2104, %v2302
      %v2367 = vsel %vm2335, %v2109, %v2303
      %v2368 = vsel %vm2336, %v2114, %v2304
      %v2369 = vsel %vm2337, %v2119, %v2305
      %v2370 = vsel %vm2338, %v2124, %v2306
      %v2371 = vsel %vm2339, %v2129, %v2307
      %v2372 = vsel %vm2340, %v2134, %v2308
      %v2373 = vsel %vm2341, %v2139, %v2309
      %v2374 = vsel %vm2342, %v2144, %v2310
      %v2375 = vsel %vm2343, %v2149, %v2311
      %v2376 = vmul.f32 %v2344, 1.050701
      %v2377 = vmul.f32 %v2345, 1.050701
      %v2378 = vmul.f32 %v2346, 1.050701
      %v2379 = vmul.f32 %v2347, 1.050701
      %v2380 = vmul.f32 %v2348, 1.050701
      %v2381 = vmul.f32 %v2349, 1.050701
      %v2382 = vmul.f32 %v2350, 1.050701
      %v2383 = vmul.f32 %v2351, 1.050701
      %v2384 = vmul.f32 %v2352, 1.050701
      %v2385 = vmul.f32 %v2353, 1.050701
      %v2386 = vmul.f32 %v2354, 1.050701
      %v2387 = vmul.f32 %v2355, 1.050701
      %v2388 = vmul.f32 %v2356, 1.050701
      %v2389 = vmul.f32 %v2357, 1.050701
      %v2390 = vmul.f32 %v2358, 1.050701
      %v2391 = vmul.f32 %v2359, 1.050701
      %v2392 = vmul.f32 %v2360, 1.050701
      %v2393 = vmul.f32 %v2361, 1.050701
      %v2394 = vmul.f32 %v2362, 1.050701
      %v2395 = vmul.f32 %v2363, 1.050701
      %v2396 = vmul.f32 %v2364, 1.050701
      %v2397 = vmul.f32 %v2365, 1.050701
      %v2398 = vmul.f32 %v2366, 1.050701
      %v2399 = vmul.f32 %v2367, 1.050701
      %v2400 = vmul.f32 %v2368, 1.050701
      %v2401 = vmul.f32 %v2369, 1.050701
      %v2402 = vmul.f32 %v2370, 1.050701
      %v2403 = vmul.f32 %v2371, 1.050701
      %v2404 = vmul.f32 %v2372, 1.050701
      %v2405 = vmul.f32 %v2373, 1.050701
      %v2406 = vmul.f32 %v2374, 1.050701
      %v2407 = vmul.f32 %v2375, 1.050701
      %2408 = vst.msk [vmem:[%s394 + $0x1] sm:$0xff] %vm306, %v2376
      %2409 = vst.msk [vmem:[%s394 + $0x9] sm:$0xff] %vm306, %v2377
      %2410 = vst.msk [vmem:[%s394 + $0x19] sm:$0xff] %vm306, %v2378
      %2411 = vst.msk [vmem:[%s394 + $0x21] sm:$0xff] %vm306, %v2379
      %2412 = vst.msk [vmem:[%s394 + $0x31] sm:$0xff] %vm306, %v2380
      %2413 = vst.msk [vmem:[%s394 + $0x39] sm:$0xff] %vm306, %v2381
      %2414 = vst.msk [vmem:[%s394 + $0x49] sm:$0xff] %vm306, %v2382
      %2415 = vst.msk [vmem:[%s394 + $0x51] sm:$0xff] %vm306, %v2383
      %2416 = vst.msk [vmem:[%s394 + $0x61] sm:$0xff] %vm306, %v2384
      %2417 = vst.msk [vmem:[%s394 + $0x69] sm:$0xff] %vm306, %v2385
      %2418 = vst.msk [vmem:[%s394 + $0x79] sm:$0xff] %vm306, %v2386
      %2419 = vst.msk [vmem:[%s394 + $0x81] sm:$0xff] %vm306, %v2387
      %2420 = vst.msk [vmem:[%s394 + $0x91] sm:$0xff] %vm306, %v2388
      %2421 = vst.msk [vmem:[%s394 + $0x99] sm:$0xff] %vm306, %v2389
      %2422 = vst.msk [vmem:[%s394 + $0xa9] sm:$0xff] %vm306, %v2390
      %2423 = vst.msk [vmem:[%s394 + $0xb1] sm:$0xff] %vm306, %v2391
      %2424 = vst.msk [vmem:[%s394 + $0xc1] sm:$0xff] %vm306, %v2392
      %2425 = vst.msk [vmem:[%s394 + $0xc9] sm:$0xff] %vm306, %v2393
      %2426 = vst.msk [vmem:[%s394 + $0xd9] sm:$0xff] %vm306, %v2394
      %2427 = vst.msk [vmem:[%s394 + $0xe1] sm:$0xff] %vm306, %v2395
      %2428 = vst.msk [vmem:[%s394 + $0xf1] sm:$0xff] %vm306, %v2396
      %2429 = vst.msk [vmem:[%s394 + $0xf9] sm:$0xff] %vm306, %v2397
      %2430 = vst.msk [vmem:[%s394 + $0x109] sm:$0xff] %vm306, %v2398
      %2431 = vst.msk [vmem:[%s394 + $0x111] sm:$0xff] %vm306, %v2399
      %2432 = vst.msk [vmem:[%s394 + $0x121] sm:$0xff] %vm306, %v2400
      %2433 = vst.msk [vmem:[%s394 + $0x129] sm:$0xff] %vm306, %v2401
      %2434 = vst.msk [vmem:[%s394 + $0x139] sm:$0xff] %vm306, %v2402
      %2435 = vst.msk [vmem:[%s394 + $0x141] sm:$0xff] %vm306, %v2403
      %2436 = vst.msk [vmem:[%s394 + $0x151] sm:$0xff] %vm306, %v2404
      %2437 = vst.msk [vmem:[%s394 + $0x159] sm:$0xff] %vm306, %v2405
      %2438 = vst.msk [vmem:[%s394 + $0x169] sm:$0xff] %vm306, %v2406
      %2439 = vst.msk [vmem:[%s394 + $0x171] sm:$0xff] %vm306, %v2407
      %v2440 = vld [vmem:[#allocation2] sm:$0xff]
      %v2441 = vld [vmem:[#allocation2 + $0x8] sm:$0xff]
      %v2442 = vld [vmem:[#allocation2 + $0x10] sm:$0x3]
      %v2443 = vld [vmem:[#allocation2 + $0x18] sm:$0xff]
      %v2444 = vld [vmem:[#allocation2 + $0x20] sm:$0xff]
      %v2445 = vld [vmem:[#allocation2 + $0x28] sm:$0x3]
      %v2446 = vld [vmem:[#allocation2 + $0x30] sm:$0xff]
      %v2447 = vld [vmem:[#allocation2 + $0x38] sm:$0xff]
      %v2448 = vld [vmem:[#allocation2 + $0x40] sm:$0x3]
      %v2449 = vld [vmem:[#allocation2 + $0x48] sm:$0xff]
      %v2450 = vld [vmem:[#allocation2 + $0x50] sm:$0xff]
      %v2451 = vld [vmem:[#allocation2 + $0x58] sm:$0x3]
      %v2452 = vld [vmem:[#allocation2 + $0x60] sm:$0xff]
      %v2453 = vld [vmem:[#allocation2 + $0x68] sm:$0xff]
      %v2454 = vld [vmem:[#allocation2 + $0x70] sm:$0x3]
      %v2455 = vld [vmem:[#allocation2 + $0x78] sm:$0xff]
      %v2456 = vld [vmem:[#allocation2 + $0x80] sm:$0xff]
      %v2457 = vld [vmem:[#allocation2 + $0x88] sm:$0x3]
      %v2458 = vld [vmem:[#allocation2 + $0x90] sm:$0xff]
      %v2459 = vld [vmem:[#allocation2 + $0x98] sm:$0xff]
      %v2460 = vld [vmem:[#allocation2 + $0xa0] sm:$0x3]
      %v2461 = vld [vmem:[#allocation2 + $0xa8] sm:$0xff]
      %v2462 = vld [vmem:[#allocation2 + $0xb0] sm:$0xff]
      %v2463 = vld [vmem:[#allocation2 + $0xb8] sm:$0x3]
      %v2464 = vld [vmem:[#allocation2 + $0xc0] sm:$0xff]
      %v2465 = vld [vmem:[#allocation2 + $0xc8] sm:$0xff]
      %v2466 = vld [vmem:[#allocation2 + $0xd0] sm:$0x3]
      %v2467 = vld [vmem:[#allocation2 + $0xd8] sm:$0xff]
      %v2468 = vld [vmem:[#allocation2 + $0xe0] sm:$0xff]
      %v2469 = vld [vmem:[#allocation2 + $0xe8] sm:$0x3]
      %v2470 = vld [vmem:[#allocation2 + $0xf0] sm:$0xff]
      %v2471 = vld [vmem:[#allocation2 + $0xf8] sm:$0xff]
      %v2472 = vld [vmem:[#allocation2 + $0x100] sm:$0x3]
      %v2473 = vld [vmem:[#allocation2 + $0x108] sm:$0xff]
      %v2474 = vld [vmem:[#allocation2 + $0x110] sm:$0xff]
      %v2475 = vld [vmem:[#allocation2 + $0x118] sm:$0x3]
      %v2476 = vld [vmem:[#allocation2 + $0x120] sm:$0xff]
      %v2477 = vld [vmem:[#allocation2 + $0x128] sm:$0xff]
      %v2478 = vld [vmem:[#allocation2 + $0x130] sm:$0x3]
      %v2479 = vld [vmem:[#allocation2 + $0x138] sm:$0xff]
      %v2480 = vld [vmem:[#allocation2 + $0x140] sm:$0xff]
      %v2481 = vld [vmem:[#allocation2 + $0x148] sm:$0x3]
      %v2482 = vld [vmem:[#allocation2 + $0x150] sm:$0xff]
      %v2483 = vld [vmem:[#allocation2 + $0x158] sm:$0xff]
      %v2484 = vld [vmem:[#allocation2 + $0x160] sm:$0x3]
      %v2485 = vld [vmem:[#allocation2 + $0x168] sm:$0xff]
      %v2486 = vld [vmem:[#allocation2 + $0x170] sm:$0xff]
      %v2487 = vld [vmem:[#allocation2 + $0x178] sm:$0x3]
      %v2488 = vld [vmem:[#allocation2 + $0x180] sm:$0xff]
      %v2489 = vld [vmem:[#allocation2 + $0x188] sm:$0xff]
      %v2490 = vld [vmem:[#allocation2 + $0x190] sm:$0x3]
      %v2491 = vld [vmem:[#allocation2 + $0x198] sm:$0xff]
      %v2492 = vld [vmem:[#allocation2 + $0x1a0] sm:$0xff]
      %v2493 = vld [vmem:[#allocation2 + $0x1a8] sm:$0x3]
      %2494 = vst.msk [vmem:[#allocation3] sm:$0xff] %vm306, %v2440
      %2495 = vst.msk [vmem:[#allocation3 + $0x8] sm:$0xff] %vm306, %v2441
      %2496 = vst.msk [vmem:[#allocation3 + $0x10] sm:$0xff] %vm306, %v2443
      %2497 = vst.msk [vmem:[#allocation3 + $0x18] sm:$0xff] %vm306, %v2444
      %2498 = vst.msk [vmem:[#allocation3 + $0x20] sm:$0xff] %vm306, %v2446
      %2499 = vst.msk [vmem:[#allocation3 + $0x28] sm:$0xff] %vm306, %v2447
      %2500 = vst.msk [vmem:[#allocation3 + $0x30] sm:$0xff] %vm306, %v2449
      %2501 = vst.msk [vmem:[#allocation3 + $0x38] sm:$0xff] %vm306, %v2450
      %2502 = vst.msk [vmem:[#allocation3 + $0x40] sm:$0xff] %vm306, %v2452
      %2503 = vst.msk [vmem:[#allocation3 + $0x48] sm:$0xff] %vm306, %v2453
      %2504 = vst.msk [vmem:[#allocation3 + $0x50] sm:$0xff] %vm306, %v2455
      %2505 = vst.msk [vmem:[#allocation3 + $0x58] sm:$0xff] %vm306, %v2456
      %2506 = vst.msk [vmem:[#allocation3 + $0x60] sm:$0xff] %vm306, %v2458
      %2507 = vst.msk [vmem:[#allocation3 + $0x68] sm:$0xff] %vm306, %v2459
      %2508 = vst.msk [vmem:[#allocation3 + $0x70] sm:$0xff] %vm306, %v2461
      %2509 = vst.msk [vmem:[#allocation3 + $0x78] sm:$0xff] %vm306, %v2462
      %2510 = vst.msk [vmem:[#allocation3 + $0x80] sm:$0xff] %vm306, %v2464
      %2511 = vst.msk [vmem:[#allocation3 + $0x88] sm:$0xff] %vm306, %v2465
      %2512 = vst.msk [vmem:[#allocation3 + $0x90] sm:$0xff] %vm306, %v2467
      %2513 = vst.msk [vmem:[#allocation3 + $0x98] sm:$0xff] %vm306, %v2468
      %2514 = vst.msk [vmem:[#allocation3 + $0xa0] sm:$0xff] %vm306, %v2470
      %2515 = vst.msk [vmem:[#allocation3 + $0xa8] sm:$0xff] %vm306, %v2471
      %2516 = vst.msk [vmem:[#allocation3 + $0xb0] sm:$0xff] %vm306, %v2473
      %2517 = vst.msk [vmem:[#allocation3 + $0xb8] sm:$0xff] %vm306, %v2474
      %2518 = vst.msk [vmem:[#allocation3 + $0xc0] sm:$0xff] %vm306, %v2476
      %2519 = vst.msk [vmem:[#allocation3 + $0xc8] sm:$0xff] %vm306, %v2477
      %2520 = vst.msk [vmem:[#allocation3 + $0xd0] sm:$0xff] %vm306, %v2479
      %2521 = vst.msk [vmem:[#allocation3 + $0xd8] sm:$0xff] %vm306, %v2480
      %2522 = vst.msk [vmem:[#allocation3 + $0xe0] sm:$0xff] %vm306, %v2482
      %2523 = vst.msk [vmem:[#allocation3 + $0xe8] sm:$0xff] %vm306, %v2483
      %2524 = vst.msk [vmem:[#allocation3 + $0xf0] sm:$0xff] %vm306, %v2485
      %2525 = vst.msk [vmem:[#allocation3 + $0xf8] sm:$0xff] %vm306, %v2486
      %v2574 = vrot.slane %v2440, 1
      %v2575 = vrot.slane %v2441, 1
      %v2576 = vsel %vm562, %v2574, %v2575
      %v2577 = vrot.slane %v2442, 1
      %v2578 = vsel %vm562, %v2575, %v2577
      %v2579 = vrot.slane %v2443, 1
      %v2580 = vrot.slane %v2444, 1
      %v2581 = vsel %vm562, %v2579, %v2580
      %v2582 = vrot.slane %v2445, 1
      %v2583 = vsel %vm562, %v2580, %v2582
      %v2584 = vrot.slane %v2446, 1
      %v2585 = vrot.slane %v2447, 1
      %v2586 = vsel %vm562, %v2584, %v2585
      %v2587 = vrot.slane %v2448, 1
      %v2588 = vsel %vm562, %v2585, %v2587
      %v2589 = vrot.slane %v2449, 1
      %v2590 = vrot.slane %v2450, 1
      %v2591 = vsel %vm562, %v2589, %v2590
      %v2592 = vrot.slane %v2451, 1
      %v2593 = vsel %vm562, %v2590, %v2592
      %v2594 = vrot.slane %v2452, 1
      %v2595 = vrot.slane %v2453, 1
      %v2596 = vsel %vm562, %v2594, %v2595
      %v2597 = vrot.slane %v2454, 1
      %v2598 = vsel %vm562, %v2595, %v2597
      %v2599 = vrot.slane %v2455, 1
      %v2600 = vrot.slane %v2456, 1
      %v2601 = vsel %vm562, %v2599, %v2600
      %v2602 = vrot.slane %v2457, 1
      %v2603 = vsel %vm562, %v2600, %v2602
      %v2604 = vrot.slane %v2458, 1
      %v2605 = vrot.slane %v2459, 1
      %v2606 = vsel %vm562, %v2604, %v2605
      %v2607 = vrot.slane %v2460, 1
      %v2608 = vsel %vm562, %v2605, %v2607
      %v2609 = vrot.slane %v2461, 1
      %v2610 = vrot.slane %v2462, 1
      %v2611 = vsel %vm562, %v2609, %v2610
      %v2612 = vrot.slane %v2463, 1
      %v2613 = vsel %vm562, %v2610, %v2612
      %v2614 = vrot.slane %v2464, 1
      %v2615 = vrot.slane %v2465, 1
      %v2616 = vsel %vm562, %v2614, %v2615
      %v2617 = vrot.slane %v2466, 1
      %v2618 = vsel %vm562, %v2615, %v2617
      %v2619 = vrot.slane %v2467, 1
      %v2620 = vrot.slane %v2468, 1
      %v2621 = vsel %vm562, %v2619, %v2620
      %v2622 = vrot.slane %v2469, 1
      %v2623 = vsel %vm562, %v2620, %v2622
      %v2624 = vrot.slane %v2470, 1
      %v2625 = vrot.slane %v2471, 1
      %v2626 = vsel %vm562, %v2624, %v2625
      %v2627 = vrot.slane %v2472, 1
      %v2628 = vsel %vm562, %v2625, %v2627
      %v2629 = vrot.slane %v2473, 1
      %v2630 = vrot.slane %v2474, 1
      %v2631 = vsel %vm562, %v2629, %v2630
      %v2632 = vrot.slane %v2475, 1
      %v2633 = vsel %vm562, %v2630, %v2632
      %v2634 = vrot.slane %v2476, 1
      %v2635 = vrot.slane %v2477, 1
      %v2636 = vsel %vm562, %v2634, %v2635
      %v2637 = vrot.slane %v2478, 1
      %v2638 = vsel %vm562, %v2635, %v2637
      %v2639 = vrot.slane %v2479, 1
      %v2640 = vrot.slane %v2480, 1
      %v2641 = vsel %vm562, %v2639, %v2640
      %v2642 = vrot.slane %v2481, 1
      %v2643 = vsel %vm562, %v2640, %v2642
      %v2644 = vrot.slane %v2482, 1
      %v2645 = vrot.slane %v2483, 1
      %v2646 = vsel %vm562, %v2644, %v2645
      %v2647 = vrot.slane %v2484, 1
      %v2648 = vsel %vm562, %v2645, %v2647
      %v2649 = vrot.slane %v2485, 1
      %v2650 = vrot.slane %v2486, 1
      %v2651 = vsel %vm562, %v2649, %v2650
      %v2652 = vrot.slane %v2487, 1
      %v2653 = vsel %vm562, %v2650, %v2652
      %2654 = vrot.lane.b32.xlu0 %v2576, 8
      %v2655 = vpop.permute.xlu0 %2654
      %2656 = vrot.lane.b32.xlu0 %v2578, 8
      %v2657 = vpop.permute.xlu0 %2656
      %2658 = vrot.lane.b32.xlu0 %v2581, 8
      %v2659 = vpop.permute.xlu0 %2658
      %2660 = vrot.lane.b32.xlu0 %v2583, 8
      %v2661 = vpop.permute.xlu0 %2660
      %2662 = vrot.lane.b32.xlu0 %v2586, 8
      %v2663 = vpop.permute.xlu0 %2662
      %2664 = vrot.lane.b32.xlu0 %v2588, 8
      %v2665 = vpop.permute.xlu0 %2664
      %2666 = vrot.lane.b32.xlu0 %v2591, 8
      %v2667 = vpop.permute.xlu0 %2666
      %2668 = vrot.lane.b32.xlu0 %v2593, 8
      %v2669 = vpop.permute.xlu0 %2668
      %2670 = vrot.lane.b32.xlu0 %v2596, 8
      %v2671 = vpop.permute.xlu0 %2670
      %2672 = vrot.lane.b32.xlu0 %v2598, 8
      %v2673 = vpop.permute.xlu0 %2672
      %2674 = vrot.lane.b32.xlu0 %v2601, 8
      %v2675 = vpop.permute.xlu0 %2674
      %2676 = vrot.lane.b32.xlu0 %v2603, 8
      %v2677 = vpop.permute.xlu0 %2676
      %2678 = vrot.lane.b32.xlu0 %v2606, 8
      %v2679 = vpop.permute.xlu0 %2678
      %2680 = vrot.lane.b32.xlu0 %v2608, 8
      %v2681 = vpop.permute.xlu0 %2680
      %2682 = vrot.lane.b32.xlu0 %v2611, 8
      %v2683 = vpop.permute.xlu0 %2682
      %2684 = vrot.lane.b32.xlu0 %v2613, 8
      %v2685 = vpop.permute.xlu0 %2684
      %2686 = vrot.lane.b32.xlu0 %v2616, 8
      %v2687 = vpop.permute.xlu0 %2686
      %2688 = vrot.lane.b32.xlu0 %v2618, 8
      %v2689 = vpop.permute.xlu0 %2688
      %2690 = vrot.lane.b32.xlu0 %v2621, 8
      %v2691 = vpop.permute.xlu0 %2690
      %2692 = vrot.lane.b32.xlu0 %v2623, 8
      %v2693 = vpop.permute.xlu0 %2692
      %2694 = vrot.lane.b32.xlu0 %v2626, 8
      %v2695 = vpop.permute.xlu0 %2694
      %2696 = vrot.lane.b32.xlu0 %v2628, 8
      %v2697 = vpop.permute.xlu0 %2696
      %2698 = vrot.lane.b32.xlu0 %v2631, 8
      %v2699 = vpop.permute.xlu0 %2698
      %2700 = vrot.lane.b32.xlu0 %v2633, 8
      %v2701 = vpop.permute.xlu0 %2700
      %2702 = vrot.lane.b32.xlu0 %v2636, 8
      %v2703 = vpop.permute.xlu0 %2702
      %2704 = vrot.lane.b32.xlu0 %v2638, 8
      %v2705 = vpop.permute.xlu0 %2704
      %2706 = vrot.lane.b32.xlu0 %v2641, 8
      %v2707 = vpop.permute.xlu0 %2706
      %2708 = vrot.lane.b32.xlu0 %v2643, 8
      %v2709 = vpop.permute.xlu0 %2708
      %2710 = vrot.lane.b32.xlu0 %v2646, 8
      %v2711 = vpop.permute.xlu0 %2710
      %2712 = vrot.lane.b32.xlu0 %v2648, 8
      %v2713 = vpop.permute.xlu0 %2712
      %2714 = vrot.lane.b32.xlu0 %v2651, 8
      %v2715 = vpop.permute.xlu0 %2714
      %2716 = vrot.lane.b32.xlu0 %v2653, 8
      %v2717 = vpop.permute.xlu0 %2716
      %vm2750 = vcmask 130112
      %2751 = vst.msk [vmem:[#allocation3] sm:$0xff] %vm2750, %v2655
      %2752 = vst.msk [vmem:[#allocation3 + $0x8] sm:$0xff] %vm2750, %v2657
      %2753 = vst.msk [vmem:[#allocation3 + $0x10] sm:$0xff] %vm2750, %v2659
      %2754 = vst.msk [vmem:[#allocation3 + $0x18] sm:$0xff] %vm2750, %v2661
      %2755 = vst.msk [vmem:[#allocation3 + $0x20] sm:$0xff] %vm2750, %v2663
      %2756 = vst.msk [vmem:[#allocation3 + $0x28] sm:$0xff] %vm2750, %v2665
      %2757 = vst.msk [vmem:[#allocation3 + $0x30] sm:$0xff] %vm2750, %v2667
      %2758 = vst.msk [vmem:[#allocation3 + $0x38] sm:$0xff] %vm2750, %v2669
      %2759 = vst.msk [vmem:[#allocation3 + $0x40] sm:$0xff] %vm2750, %v2671
      %2760 = vst.msk [vmem:[#allocation3 + $0x48] sm:$0xff] %vm2750, %v2673
      %2761 = vst.msk [vmem:[#allocation3 + $0x50] sm:$0xff] %vm2750, %v2675
      %2762 = vst.msk [vmem:[#allocation3 + $0x58] sm:$0xff] %vm2750, %v2677
      %2763 = vst.msk [vmem:[#allocation3 + $0x60] sm:$0xff] %vm2750, %v2679
      %2764 = vst.msk [vmem:[#allocation3 + $0x68] sm:$0xff] %vm2750, %v2681
      %2765 = vst.msk [vmem:[#allocation3 + $0x70] sm:$0xff] %vm2750, %v2683
      %2766 = vst.msk [vmem:[#allocation3 + $0x78] sm:$0xff] %vm2750, %v2685
      %2767 = vst.msk [vmem:[#allocation3 + $0x80] sm:$0xff] %vm2750, %v2687
      %2768 = vst.msk [vmem:[#allocation3 + $0x88] sm:$0xff] %vm2750, %v2689
      %2769 = vst.msk [vmem:[#allocation3 + $0x90] sm:$0xff] %vm2750, %v2691
      %2770 = vst.msk [vmem:[#allocation3 + $0x98] sm:$0xff] %vm2750, %v2693
      %2771 = vst.msk [vmem:[#allocation3 + $0xa0] sm:$0xff] %vm2750, %v2695
      %2772 = vst.msk [vmem:[#allocation3 + $0xa8] sm:$0xff] %vm2750, %v2697
      %2773 = vst.msk [vmem:[#allocation3 + $0xb0] sm:$0xff] %vm2750, %v2699
      %2774 = vst.msk [vmem:[#allocation3 + $0xb8] sm:$0xff] %vm2750, %v2701
      %2775 = vst.msk [vmem:[#allocation3 + $0xc0] sm:$0xff] %vm2750, %v2703
      %2776 = vst.msk [vmem:[#allocation3 + $0xc8] sm:$0xff] %vm2750, %v2705
      %2777 = vst.msk [vmem:[#allocation3 + $0xd0] sm:$0xff] %vm2750, %v2707
      %2778 = vst.msk [vmem:[#allocation3 + $0xd8] sm:$0xff] %vm2750, %v2709
      %2779 = vst.msk [vmem:[#allocation3 + $0xe0] sm:$0xff] %vm2750, %v2711
      %2780 = vst.msk [vmem:[#allocation3 + $0xe8] sm:$0xff] %vm2750, %v2713
      %2781 = vst.msk [vmem:[#allocation3 + $0xf0] sm:$0xff] %vm2750, %v2715
      %2782 = vst.msk [vmem:[#allocation3 + $0xf8] sm:$0xff] %vm2750, %v2717
      %v2783 = vrot.slane %v2440, 2
      %v2784 = vrot.slane %v2441, 2
      %v2785 = vsel %vm772, %v2783, %v2784
      %v2786 = vrot.slane %v2442, 2
      %v2787 = vsel %vm772, %v2784, %v2786
      %v2788 = vrot.slane %v2443, 2
      %v2789 = vrot.slane %v2444, 2
      %v2790 = vsel %vm772, %v2788, %v2789
      %v2791 = vrot.slane %v2445, 2
      %v2792 = vsel %vm772, %v2789, %v2791
      %v2793 = vrot.slane %v2446, 2
      %v2794 = vrot.slane %v2447, 2
      %v2795 = vsel %vm772, %v2793, %v2794
      %v2796 = vrot.slane %v2448, 2
      %v2797 = vsel %vm772, %v2794, %v2796
      %v2798 = vrot.slane %v2449, 2
      %v2799 = vrot.slane %v2450, 2
      %v2800 = vsel %vm772, %v2798, %v2799
      %v2801 = vrot.slane %v2451, 2
      %v2802 = vsel %vm772, %v2799, %v2801
      %v2803 = vrot.slane %v2452, 2
      %v2804 = vrot.slane %v2453, 2
      %v2805 = vsel %vm772, %v2803, %v2804
      %v2806 = vrot.slane %v2454, 2
      %v2807 = vsel %vm772, %v2804, %v2806
      %v2808 = vrot.slane %v2455, 2
      %v2809 = vrot.slane %v2456, 2
      %v2810 = vsel %vm772, %v2808, %v2809
      %v2811 = vrot.slane %v2457, 2
      %v2812 = vsel %vm772, %v2809, %v2811
      %v2813 = vrot.slane %v2458, 2
      %v2814 = vrot.slane %v2459, 2
      %v2815 = vsel %vm772, %v2813, %v2814
      %v2816 = vrot.slane %v2460, 2
      %v2817 = vsel %vm772, %v2814, %v2816
      %v2818 = vrot.slane %v2461, 2
      %v2819 = vrot.slane %v2462, 2
      %v2820 = vsel %vm772, %v2818, %v2819
      %v2821 = vrot.slane %v2463, 2
      %v2822 = vsel %vm772, %v2819, %v2821
      %v2823 = vrot.slane %v2464, 2
      %v2824 = vrot.slane %v2465, 2
      %v2825 = vsel %vm772, %v2823, %v2824
      %v2826 = vrot.slane %v2466, 2
      %v2827 = vsel %vm772, %v2824, %v2826
      %v2828 = vrot.slane %v2467, 2
      %v2829 = vrot.slane %v2468, 2
      %v2830 = vsel %vm772, %v2828, %v2829
      %v2831 = vrot.slane %v2469, 2
      %v2832 = vsel %vm772, %v2829, %v2831
      %v2833 = vrot.slane %v2470, 2
      %v2834 = vrot.slane %v2471, 2
      %v2835 = vsel %vm772, %v2833, %v2834
      %v2836 = vrot.slane %v2472, 2
      %v2837 = vsel %vm772, %v2834, %v2836
      %v2838 = vrot.slane %v2473, 2
      %v2839 = vrot.slane %v2474, 2
      %v2840 = vsel %vm772, %v2838, %v2839
      %v2841 = vrot.slane %v2475, 2
      %v2842 = vsel %vm772, %v2839, %v2841
      %v2843 = vrot.slane %v2476, 2
      %v2844 = vrot.slane %v2477, 2
      %v2845 = vsel %vm772, %v2843, %v2844
      %v2846 = vrot.slane %v2478, 2
      %v2847 = vsel %vm772, %v2844, %v2846
      %v2848 = vrot.slane %v2479, 2
      %v2849 = vrot.slane %v2480, 2
      %v2850 = vsel %vm772, %v2848, %v2849
      %v2851 = vrot.slane %v2481, 2
      %v2852 = vsel %vm772, %v2849, %v2851
      %v2853 = vrot.slane %v2482, 2
      %v2854 = vrot.slane %v2483, 2
      %v2855 = vsel %vm772, %v2853, %v2854
      %v2856 = vrot.slane %v2484, 2
      %v2857 = vsel %vm772, %v2854, %v2856
      %v2858 = vrot.slane %v2485, 2
      %v2859 = vrot.slane %v2486, 2
      %v2860 = vsel %vm772, %v2858, %v2859
      %v2861 = vrot.slane %v2487, 2
      %v2862 = vsel %vm772, %v2859, %v2861
      %2863 = vrot.lane.b32.xlu0 %v2785, 16
      %v2864 = vpop.permute.xlu0 %2863
      %2865 = vrot.lane.b32.xlu0 %v2787, 16
      %v2866 = vpop.permute.xlu0 %2865
      %2867 = vrot.lane.b32.xlu0 %v2790, 16
      %v2868 = vpop.permute.xlu0 %2867
      %2869 = vrot.lane.b32.xlu0 %v2792, 16
      %v2870 = vpop.permute.xlu0 %2869
      %2871 = vrot.lane.b32.xlu0 %v2795, 16
      %v2872 = vpop.permute.xlu0 %2871
      %2873 = vrot.lane.b32.xlu0 %v2797, 16
      %v2874 = vpop.permute.xlu0 %2873
      %2875 = vrot.lane.b32.xlu0 %v2800, 16
      %v2876 = vpop.permute.xlu0 %2875
      %2877 = vrot.lane.b32.xlu0 %v2802, 16
      %v2878 = vpop.permute.xlu0 %2877
      %2879 = vrot.lane.b32.xlu0 %v2805, 16
      %v2880 = vpop.permute.xlu0 %2879
      %2881 = vrot.lane.b32.xlu0 %v2807, 16
      %v2882 = vpop.permute.xlu0 %2881
      %2883 = vrot.lane.b32.xlu0 %v2810, 16
      %v2884 = vpop.permute.xlu0 %2883
      %2885 = vrot.lane.b32.xlu0 %v2812, 16
      %v2886 = vpop.permute.xlu0 %2885
      %2887 = vrot.lane.b32.xlu0 %v2815, 16
      %v2888 = vpop.permute.xlu0 %2887
      %2889 = vrot.lane.b32.xlu0 %v2817, 16
      %v2890 = vpop.permute.xlu0 %2889
      %2891 = vrot.lane.b32.xlu0 %v2820, 16
      %v2892 = vpop.permute.xlu0 %2891
      %2893 = vrot.lane.b32.xlu0 %v2822, 16
      %v2894 = vpop.permute.xlu0 %2893
      %2895 = vrot.lane.b32.xlu0 %v2825, 16
      %v2896 = vpop.permute.xlu0 %2895
      %2897 = vrot.lane.b32.xlu0 %v2827, 16
      %v2898 = vpop.permute.xlu0 %2897
      %2899 = vrot.lane.b32.xlu0 %v2830, 16
      %v2900 = vpop.permute.xlu0 %2899
      %2901 = vrot.lane.b32.xlu0 %v2832, 16
      %v2902 = vpop.permute.xlu0 %2901
      %2903 = vrot.lane.b32.xlu0 %v2835, 16
      %v2904 = vpop.permute.xlu0 %2903
      %2905 = vrot.lane.b32.xlu0 %v2837, 16
      %v2906 = vpop.permute.xlu0 %2905
      %2907 = vrot.lane.b32.xlu0 %v2840, 16
      %v2908 = vpop.permute.xlu0 %2907
      %2909 = vrot.lane.b32.xlu0 %v2842, 16
      %v2910 = vpop.permute.xlu0 %2909
      %2911 = vrot.lane.b32.xlu0 %v2845, 16
      %v2912 = vpop.permute.xlu0 %2911
      %2913 = vrot.lane.b32.xlu0 %v2847, 16
      %v2914 = vpop.permute.xlu0 %2913
      %2915 = vrot.lane.b32.xlu0 %v2850, 16
      %v2916 = vpop.permute.xlu0 %2915
      %2917 = vrot.lane.b32.xlu0 %v2852, 16
      %v2918 = vpop.permute.xlu0 %2917
      %2919 = vrot.lane.b32.xlu0 %v2855, 16
      %v2920 = vpop.permute.xlu0 %2919
      %2921 = vrot.lane.b32.xlu0 %v2857, 16
      %v2922 = vpop.permute.xlu0 %2921
      %2923 = vrot.lane.b32.xlu0 %v2860, 16
      %v2924 = vpop.permute.xlu0 %2923
      %2925 = vrot.lane.b32.xlu0 %v2862, 16
      %v2926 = vpop.permute.xlu0 %2925
      %vm2959 = vcmask 195712
      %2960 = vst.msk [vmem:[#allocation3] sm:$0xff] %vm2959, %v2864
      %2961 = vst.msk [vmem:[#allocation3 + $0x8] sm:$0xff] %vm2959, %v2866
      %2962 = vst.msk [vmem:[#allocation3 + $0x10] sm:$0xff] %vm2959, %v2868
      %2963 = vst.msk [vmem:[#allocation3 + $0x18] sm:$0xff] %vm2959, %v2870
      %2964 = vst.msk [vmem:[#allocation3 + $0x20] sm:$0xff] %vm2959, %v2872
      %2965 = vst.msk [vmem:[#allocation3 + $0x28] sm:$0xff] %vm2959, %v2874
      %2966 = vst.msk [vmem:[#allocation3 + $0x30] sm:$0xff] %vm2959, %v2876
      %2967 = vst.msk [vmem:[#allocation3 + $0x38] sm:$0xff] %vm2959, %v2878
      %2968 = vst.msk [vmem:[#allocation3 + $0x40] sm:$0xff] %vm2959, %v2880
      %2969 = vst.msk [vmem:[#allocation3 + $0x48] sm:$0xff] %vm2959, %v2882
      %2970 = vst.msk [vmem:[#allocation3 + $0x50] sm:$0xff] %vm2959, %v2884
      %2971 = vst.msk [vmem:[#allocation3 + $0x58] sm:$0xff] %vm2959, %v2886
      %2972 = vst.msk [vmem:[#allocation3 + $0x60] sm:$0xff] %vm2959, %v2888
      %2973 = vst.msk [vmem:[#allocation3 + $0x68] sm:$0xff] %vm2959, %v2890
      %2974 = vst.msk [vmem:[#allocation3 + $0x70] sm:$0xff] %vm2959, %v2892
      %2975 = vst.msk [vmem:[#allocation3 + $0x78] sm:$0xff] %vm2959, %v2894
      %2976 = vst.msk [vmem:[#allocation3 + $0x80] sm:$0xff] %vm2959, %v2896
      %2977 = vst.msk [vmem:[#allocation3 + $0x88] sm:$0xff] %vm2959, %v2898
      %2978 = vst.msk [vmem:[#allocation3 + $0x90] sm:$0xff] %vm2959, %v2900
      %2979 = vst.msk [vmem:[#allocation3 + $0x98] sm:$0xff] %vm2959, %v2902
      %2980 = vst.msk [vmem:[#allocation3 + $0xa0] sm:$0xff] %vm2959, %v2904
      %2981 = vst.msk [vmem:[#allocation3 + $0xa8] sm:$0xff] %vm2959, %v2906
      %2982 = vst.msk [vmem:[#allocation3 + $0xb0] sm:$0xff] %vm2959, %v2908
      %2983 = vst.msk [vmem:[#allocation3 + $0xb8] sm:$0xff] %vm2959, %v2910
      %2984 = vst.msk [vmem:[#allocation3 + $0xc0] sm:$0xff] %vm2959, %v2912
      %2985 = vst.msk [vmem:[#allocation3 + $0xc8] sm:$0xff] %vm2959, %v2914
      %2986 = vst.msk [vmem:[#allocation3 + $0xd0] sm:$0xff] %vm2959, %v2916
      %2987 = vst.msk [vmem:[#allocation3 + $0xd8] sm:$0xff] %vm2959, %v2918
      %2988 = vst.msk [vmem:[#allocation3 + $0xe0] sm:$0xff] %vm2959, %v2920
      %2989 = vst.msk [vmem:[#allocation3 + $0xe8] sm:$0xff] %vm2959, %v2922
      %2990 = vst.msk [vmem:[#allocation3 + $0xf0] sm:$0xff] %vm2959, %v2924
      %2991 = vst.msk [vmem:[#allocation3 + $0xf8] sm:$0xff] %vm2959, %v2926
      %2994 = vrot.lane.b32.xlu0 %v2443, 24
      %v2995 = vpop.permute.xlu0 %2994
      %2996 = vrot.lane.b32.xlu0 %v2444, 24
      %v2997 = vpop.permute.xlu0 %2996
      %2998 = vrot.lane.b32.xlu0 %v2446, 24
      %v2999 = vpop.permute.xlu0 %2998
      %3000 = vrot.lane.b32.xlu0 %v2447, 24
      %v3001 = vpop.permute.xlu0 %3000
      %3002 = vrot.lane.b32.xlu0 %v2449, 24
      %v3003 = vpop.permute.xlu0 %3002
      %3004 = vrot.lane.b32.xlu0 %v2450, 24
      %v3005 = vpop.permute.xlu0 %3004
      %3006 = vrot.lane.b32.xlu0 %v2452, 24
      %v3007 = vpop.permute.xlu0 %3006
      %3008 = vrot.lane.b32.xlu0 %v2453, 24
      %v3009 = vpop.permute.xlu0 %3008
      %3010 = vrot.lane.b32.xlu0 %v2455, 24
      %v3011 = vpop.permute.xlu0 %3010
      %3012 = vrot.lane.b32.xlu0 %v2456, 24
      %v3013 = vpop.permute.xlu0 %3012
      %3014 = vrot.lane.b32.xlu0 %v2458, 24
      %v3015 = vpop.permute.xlu0 %3014
      %3016 = vrot.lane.b32.xlu0 %v2459, 24
      %v3017 = vpop.permute.xlu0 %3016
      %3018 = vrot.lane.b32.xlu0 %v2461, 24
      %v3019 = vpop.permute.xlu0 %3018
      %3020 = vrot.lane.b32.xlu0 %v2462, 24
      %v3021 = vpop.permute.xlu0 %3020
      %3022 = vrot.lane.b32.xlu0 %v2464, 24
      %v3023 = vpop.permute.xlu0 %3022
      %3024 = vrot.lane.b32.xlu0 %v2465, 24
      %v3025 = vpop.permute.xlu0 %3024
      %3026 = vrot.lane.b32.xlu0 %v2467, 24
      %v3027 = vpop.permute.xlu0 %3026
      %3028 = vrot.lane.b32.xlu0 %v2468, 24
      %v3029 = vpop.permute.xlu0 %3028
      %3030 = vrot.lane.b32.xlu0 %v2470, 24
      %v3031 = vpop.permute.xlu0 %3030
      %3032 = vrot.lane.b32.xlu0 %v2471, 24
      %v3033 = vpop.permute.xlu0 %3032
      %3034 = vrot.lane.b32.xlu0 %v2473, 24
      %v3035 = vpop.permute.xlu0 %3034
      %3036 = vrot.lane.b32.xlu0 %v2474, 24
      %v3037 = vpop.permute.xlu0 %3036
      %3038 = vrot.lane.b32.xlu0 %v2476, 24
      %v3039 = vpop.permute.xlu0 %3038
      %3040 = vrot.lane.b32.xlu0 %v2477, 24
      %v3041 = vpop.permute.xlu0 %3040
      %3042 = vrot.lane.b32.xlu0 %v2479, 24
      %v3043 = vpop.permute.xlu0 %3042
      %3044 = vrot.lane.b32.xlu0 %v2480, 24
      %v3045 = vpop.permute.xlu0 %3044
      %3046 = vrot.lane.b32.xlu0 %v2482, 24
      %v3047 = vpop.permute.xlu0 %3046
      %3048 = vrot.lane.b32.xlu0 %v2483, 24
      %v3049 = vpop.permute.xlu0 %3048
      %3050 = vrot.lane.b32.xlu0 %v2485, 24
      %v3051 = vpop.permute.xlu0 %3050
      %3052 = vrot.lane.b32.xlu0 %v2486, 24
      %v3053 = vpop.permute.xlu0 %3052
      %3054 = vrot.lane.b32.xlu0 %v2488, 24
      %v3055 = vpop.permute.xlu0 %3054
      %3056 = vrot.lane.b32.xlu0 %v2489, 24
      %v3057 = vpop.permute.xlu0 %3056
      %vm3090 = vcmask 261312
      %3091 = vst.msk [vmem:[#allocation3] sm:$0xff] %vm3090, %v2995
      %3092 = vst.msk [vmem:[#allocation3 + $0x8] sm:$0xff] %vm3090, %v2997
      %3093 = vst.msk [vmem:[#allocation3 + $0x10] sm:$0xff] %vm3090, %v2999
      %3094 = vst.msk [vmem:[#allocation3 + $0x18] sm:$0xff] %vm3090, %v3001
      %3095 = vst.msk [vmem:[#allocation3 + $0x20] sm:$0xff] %vm3090, %v3003
      %3096 = vst.msk [vmem:[#allocation3 + $0x28] sm:$0xff] %vm3090, %v3005
      %3097 = vst.msk [vmem:[#allocation3 + $0x30] sm:$0xff] %vm3090, %v3007
      %3098 = vst.msk [vmem:[#allocation3 + $0x38] sm:$0xff] %vm3090, %v3009
      %3099 = vst.msk [vmem:[#allocation3 + $0x40] sm:$0xff] %vm3090, %v3011
      %3100 = vst.msk [vmem:[#allocation3 + $0x48] sm:$0xff] %vm3090, %v3013
      %3101 = vst.msk [vmem:[#allocation3 + $0x50] sm:$0xff] %vm3090, %v3015
      %3102 = vst.msk [vmem:[#allocation3 + $0x58] sm:$0xff] %vm3090, %v3017
      %3103 = vst.msk [vmem:[#allocation3 + $0x60] sm:$0xff] %vm3090, %v3019
      %3104 = vst.msk [vmem:[#allocation3 + $0x68] sm:$0xff] %vm3090, %v3021
      %3105 = vst.msk [vmem:[#allocation3 + $0x70] sm:$0xff] %vm3090, %v3023
      %3106 = vst.msk [vmem:[#allocation3 + $0x78] sm:$0xff] %vm3090, %v3025
      %3107 = vst.msk [vmem:[#allocation3 + $0x80] sm:$0xff] %vm3090, %v3027
      %3108 = vst.msk [vmem:[#allocation3 + $0x88] sm:$0xff] %vm3090, %v3029
      %3109 = vst.msk [vmem:[#allocation3 + $0x90] sm:$0xff] %vm3090, %v3031
      %3110 = vst.msk [vmem:[#allocation3 + $0x98] sm:$0xff] %vm3090, %v3033
      %3111 = vst.msk [vmem:[#allocation3 + $0xa0] sm:$0xff] %vm3090, %v3035
      %3112 = vst.msk [vmem:[#allocation3 + $0xa8] sm:$0xff] %vm3090, %v3037
      %3113 = vst.msk [vmem:[#allocation3 + $0xb0] sm:$0xff] %vm3090, %v3039
      %3114 = vst.msk [vmem:[#allocation3 + $0xb8] sm:$0xff] %vm3090, %v3041
      %3115 = vst.msk [vmem:[#allocation3 + $0xc0] sm:$0xff] %vm3090, %v3043
      %3116 = vst.msk [vmem:[#allocation3 + $0xc8] sm:$0xff] %vm3090, %v3045
      %3117 = vst.msk [vmem:[#allocation3 + $0xd0] sm:$0xff] %vm3090, %v3047
      %3118 = vst.msk [vmem:[#allocation3 + $0xd8] sm:$0xff] %vm3090, %v3049
      %3119 = vst.msk [vmem:[#allocation3 + $0xe0] sm:$0xff] %vm3090, %v3051
      %3120 = vst.msk [vmem:[#allocation3 + $0xe8] sm:$0xff] %vm3090, %v3053
      %3121 = vst.msk [vmem:[#allocation3 + $0xf0] sm:$0xff] %vm3090, %v3055
      %3122 = vst.msk [vmem:[#allocation3 + $0xf8] sm:$0xff] %vm3090, %v3057
      %v3124 = vrot.slane %v2488, 1
      %v3125 = vrot.slane %v2489, 1
      %v3126 = vsel %vm562, %v3124, %v3125
      %v3127 = vrot.slane %v2490, 1
      %v3128 = vsel %vm562, %v3125, %v3127
      %3129 = vrot.lane.b32.xlu0 %v2581, 32
      %v3130 = vpop.permute.xlu0 %3129
      %3131 = vrot.lane.b32.xlu0 %v2583, 32
      %v3132 = vpop.permute.xlu0 %3131
      %3133 = vrot.lane.b32.xlu0 %v2586, 32
      %v3134 = vpop.permute.xlu0 %3133
      %3135 = vrot.lane.b32.xlu0 %v2588, 32
      %v3136 = vpop.permute.xlu0 %3135
      %3137 = vrot.lane.b32.xlu0 %v2591, 32
      %v3138 = vpop.permute.xlu0 %3137
      %3139 = vrot.lane.b32.xlu0 %v2593, 32
      %v3140 = vpop.permute.xlu0 %3139
      %3141 = vrot.lane.b32.xlu0 %v2596, 32
      %v3142 = vpop.permute.xlu0 %3141
      %3143 = vrot.lane.b32.xlu0 %v2598, 32
      %v3144 = vpop.permute.xlu0 %3143
      %3145 = vrot.lane.b32.xlu0 %v2601, 32
      %v3146 = vpop.permute.xlu0 %3145
      %3147 = vrot.lane.b32.xlu0 %v2603, 32
      %v3148 = vpop.permute.xlu0 %3147
      %3149 = vrot.lane.b32.xlu0 %v2606, 32
      %v3150 = vpop.permute.xlu0 %3149
      %3151 = vrot.lane.b32.xlu0 %v2608, 32
      %v3152 = vpop.permute.xlu0 %3151
      %3153 = vrot.lane.b32.xlu0 %v2611, 32
      %v3154 = vpop.permute.xlu0 %3153
      %3155 = vrot.lane.b32.xlu0 %v2613, 32
      %v3156 = vpop.permute.xlu0 %3155
      %3157 = vrot.lane.b32.xlu0 %v2616, 32
      %v3158 = vpop.permute.xlu0 %3157
      %3159 = vrot.lane.b32.xlu0 %v2618, 32
      %v3160 = vpop.permute.xlu0 %3159
      %3161 = vrot.lane.b32.xlu0 %v2621, 32
      %v3162 = vpop.permute.xlu0 %3161
      %3163 = vrot.lane.b32.xlu0 %v2623, 32
      %v3164 = vpop.permute.xlu0 %3163
      %3165 = vrot.lane.b32.xlu0 %v2626, 32
      %v3166 = vpop.permute.xlu0 %3165
      %3167 = vrot.lane.b32.xlu0 %v2628, 32
      %v3168 = vpop.permute.xlu0 %3167
      %3169 = vrot.lane.b32.xlu0 %v2631, 32
      %v3170 = vpop.permute.xlu0 %3169
      %3171 = vrot.lane.b32.xlu0 %v2633, 32
      %v3172 = vpop.permute.xlu0 %3171
      %3173 = vrot.lane.b32.xlu0 %v2636, 32
      %v3174 = vpop.permute.xlu0 %3173
      %3175 = vrot.lane.b32.xlu0 %v2638, 32
      %v3176 = vpop.permute.xlu0 %3175
      %3177 = vrot.lane.b32.xlu0 %v2641, 32
      %v3178 = vpop.permute.xlu0 %3177
      %3179 = vrot.lane.b32.xlu0 %v2643, 32
      %v3180 = vpop.permute.xlu0 %3179
      %3181 = vrot.lane.b32.xlu0 %v2646, 32
      %v3182 = vpop.permute.xlu0 %3181
      %3183 = vrot.lane.b32.xlu0 %v2648, 32
      %v3184 = vpop.permute.xlu0 %3183
      %3185 = vrot.lane.b32.xlu0 %v2651, 32
      %v3186 = vpop.permute.xlu0 %3185
      %3187 = vrot.lane.b32.xlu0 %v2653, 32
      %v3188 = vpop.permute.xlu0 %3187
      %3189 = vrot.lane.b32.xlu0 %v3126, 32
      %v3190 = vpop.permute.xlu0 %3189
      %3191 = vrot.lane.b32.xlu0 %v3128, 32
      %v3192 = vpop.permute.xlu0 %3191
      %vm3225 = vcmask 326912
      %3226 = vst.msk [vmem:[#allocation3] sm:$0xff] %vm3225, %v3130
      %3227 = vst.msk [vmem:[#allocation3 + $0x8] sm:$0xff] %vm3225, %v3132
      %3228 = vst.msk [vmem:[#allocation3 + $0x10] sm:$0xff] %vm3225, %v3134
      %3229 = vst.msk [vmem:[#allocation3 + $0x18] sm:$0xff] %vm3225, %v3136
      %3230 = vst.msk [vmem:[#allocation3 + $0x20] sm:$0xff] %vm3225, %v3138
      %3231 = vst.msk [vmem:[#allocation3 + $0x28] sm:$0xff] %vm3225, %v3140
      %3232 = vst.msk [vmem:[#allocation3 + $0x30] sm:$0xff] %vm3225, %v3142
      %3233 = vst.msk [vmem:[#allocation3 + $0x38] sm:$0xff] %vm3225, %v3144
      %3234 = vst.msk [vmem:[#allocation3 + $0x40] sm:$0xff] %vm3225, %v3146
      %3235 = vst.msk [vmem:[#allocation3 + $0x48] sm:$0xff] %vm3225, %v3148
      %3236 = vst.msk [vmem:[#allocation3 + $0x50] sm:$0xff] %vm3225, %v3150
      %3237 = vst.msk [vmem:[#allocation3 + $0x58] sm:$0xff] %vm3225, %v3152
      %3238 = vst.msk [vmem:[#allocation3 + $0x60] sm:$0xff] %vm3225, %v3154
      %3239 = vst.msk [vmem:[#allocation3 + $0x68] sm:$0xff] %vm3225, %v3156
      %3240 = vst.msk [vmem:[#allocation3 + $0x70] sm:$0xff] %vm3225, %v3158
      %3241 = vst.msk [vmem:[#allocation3 + $0x78] sm:$0xff] %vm3225, %v3160
      %3242 = vst.msk [vmem:[#allocation3 + $0x80] sm:$0xff] %vm3225, %v3162
      %3243 = vst.msk [vmem:[#allocation3 + $0x88] sm:$0xff] %vm3225, %v3164
      %3244 = vst.msk [vmem:[#allocation3 + $0x90] sm:$0xff] %vm3225, %v3166
      %3245 = vst.msk [vmem:[#allocation3 + $0x98] sm:$0xff] %vm3225, %v3168
      %3246 = vst.msk [vmem:[#allocation3 + $0xa0] sm:$0xff] %vm3225, %v3170
      %3247 = vst.msk [vmem:[#allocation3 + $0xa8] sm:$0xff] %vm3225, %v3172
      %3248 = vst.msk [vmem:[#allocation3 + $0xb0] sm:$0xff] %vm3225, %v3174
      %3249 = vst.msk [vmem:[#allocation3 + $0xb8] sm:$0xff] %vm3225, %v3176
      %3250 = vst.msk [vmem:[#allocation3 + $0xc0] sm:$0xff] %vm3225, %v3178
      %3251 = vst.msk [vmem:[#allocation3 + $0xc8] sm:$0xff] %vm3225, %v3180
      %3252 = vst.msk [vmem:[#allocation3 + $0xd0] sm:$0xff] %vm3225, %v3182
      %3253 = vst.msk [vmem:[#allocation3 + $0xd8] sm:$0xff] %vm3225, %v3184
      %3254 = vst.msk [vmem:[#allocation3 + $0xe0] sm:$0xff] %vm3225, %v3186
      %3255 = vst.msk [vmem:[#allocation3 + $0xe8] sm:$0xff] %vm3225, %v3188
      %3256 = vst.msk [vmem:[#allocation3 + $0xf0] sm:$0xff] %vm3225, %v3190
      %3257 = vst.msk [vmem:[#allocation3 + $0xf8] sm:$0xff] %vm3225, %v3192
      %v3258 = vrot.slane %v2488, 2
      %v3259 = vrot.slane %v2489, 2
      %v3260 = vsel %vm772, %v3258, %v3259
      %v3261 = vrot.slane %v2490, 2
      %v3262 = vsel %vm772, %v3259, %v3261
      %3263 = vrot.lane.b32.xlu0 %v2790, 40
      %v3264 = vpop.permute.xlu0 %3263
      %3265 = vrot.lane.b32.xlu0 %v2792, 40
      %v3266 = vpop.permute.xlu0 %3265
      %3267 = vrot.lane.b32.xlu0 %v2795, 40
      %v3268 = vpop.permute.xlu0 %3267
      %3269 = vrot.lane.b32.xlu0 %v2797, 40
      %v3270 = vpop.permute.xlu0 %3269
      %3271 = vrot.lane.b32.xlu0 %v2800, 40
      %v3272 = vpop.permute.xlu0 %3271
      %3273 = vrot.lane.b32.xlu0 %v2802, 40
      %v3274 = vpop.permute.xlu0 %3273
      %3275 = vrot.lane.b32.xlu0 %v2805, 40
      %v3276 = vpop.permute.xlu0 %3275
      %3277 = vrot.lane.b32.xlu0 %v2807, 40
      %v3278 = vpop.permute.xlu0 %3277
      %3279 = vrot.lane.b32.xlu0 %v2810, 40
      %v3280 = vpop.permute.xlu0 %3279
      %3281 = vrot.lane.b32.xlu0 %v2812, 40
      %v3282 = vpop.permute.xlu0 %3281
      %3283 = vrot.lane.b32.xlu0 %v2815, 40
      %v3284 = vpop.permute.xlu0 %3283
      %3285 = vrot.lane.b32.xlu0 %v2817, 40
      %v3286 = vpop.permute.xlu0 %3285
      %3287 = vrot.lane.b32.xlu0 %v2820, 40
      %v3288 = vpop.permute.xlu0 %3287
      %3289 = vrot.lane.b32.xlu0 %v2822, 40
      %v3290 = vpop.permute.xlu0 %3289
      %3291 = vrot.lane.b32.xlu0 %v2825, 40
      %v3292 = vpop.permute.xlu0 %3291
      %3293 = vrot.lane.b32.xlu0 %v2827, 40
      %v3294 = vpop.permute.xlu0 %3293
      %3295 = vrot.lane.b32.xlu0 %v2830, 40
      %v3296 = vpop.permute.xlu0 %3295
      %3297 = vrot.lane.b32.xlu0 %v2832, 40
      %v3298 = vpop.permute.xlu0 %3297
      %3299 = vrot.lane.b32.xlu0 %v2835, 40
      %v3300 = vpop.permute.xlu0 %3299
      %3301 = vrot.lane.b32.xlu0 %v2837, 40
      %v3302 = vpop.permute.xlu0 %3301
      %3303 = vrot.lane.b32.xlu0 %v2840, 40
      %v3304 = vpop.permute.xlu0 %3303
      %3305 = vrot.lane.b32.xlu0 %v2842, 40
      %v3306 = vpop.permute.xlu0 %3305
      %3307 = vrot.lane.b32.xlu0 %v2845, 40
      %v3308 = vpop.permute.xlu0 %3307
      %3309 = vrot.lane.b32.xlu0 %v2847, 40
      %v3310 = vpop.permute.xlu0 %3309
      %3311 = vrot.lane.b32.xlu0 %v2850, 40
      %v3312 = vpop.permute.xlu0 %3311
      %3313 = vrot.lane.b32.xlu0 %v2852, 40
      %v3314 = vpop.permute.xlu0 %3313
      %3315 = vrot.lane.b32.xlu0 %v2855, 40
      %v3316 = vpop.permute.xlu0 %3315
      %3317 = vrot.lane.b32.xlu0 %v2857, 40
      %v3318 = vpop.permute.xlu0 %3317
      %3319 = vrot.lane.b32.xlu0 %v2860, 40
      %v3320 = vpop.permute.xlu0 %3319
      %3321 = vrot.lane.b32.xlu0 %v2862, 40
      %v3322 = vpop.permute.xlu0 %3321
      %3323 = vrot.lane.b32.xlu0 %v3260, 40
      %v3324 = vpop.permute.xlu0 %3323
      %3325 = vrot.lane.b32.xlu0 %v3262, 40
      %v3326 = vpop.permute.xlu0 %3325
      %vm3359 = vcmask 392512
      %3360 = vst.msk [vmem:[#allocation3] sm:$0xff] %vm3359, %v3264
      %3361 = vst.msk [vmem:[#allocation3 + $0x8] sm:$0xff] %vm3359, %v3266
      %3362 = vst.msk [vmem:[#allocation3 + $0x10] sm:$0xff] %vm3359, %v3268
      %3363 = vst.msk [vmem:[#allocation3 + $0x18] sm:$0xff] %vm3359, %v3270
      %3364 = vst.msk [vmem:[#allocation3 + $0x20] sm:$0xff] %vm3359, %v3272
      %3365 = vst.msk [vmem:[#allocation3 + $0x28] sm:$0xff] %vm3359, %v3274
      %3366 = vst.msk [vmem:[#allocation3 + $0x30] sm:$0xff] %vm3359, %v3276
      %3367 = vst.msk [vmem:[#allocation3 + $0x38] sm:$0xff] %vm3359, %v3278
      %3368 = vst.msk [vmem:[#allocation3 + $0x40] sm:$0xff] %vm3359, %v3280
      %3369 = vst.msk [vmem:[#allocation3 + $0x48] sm:$0xff] %vm3359, %v3282
      %3370 = vst.msk [vmem:[#allocation3 + $0x50] sm:$0xff] %vm3359, %v3284
      %3371 = vst.msk [vmem:[#allocation3 + $0x58] sm:$0xff] %vm3359, %v3286
      %3372 = vst.msk [vmem:[#allocation3 + $0x60] sm:$0xff] %vm3359, %v3288
      %3373 = vst.msk [vmem:[#allocation3 + $0x68] sm:$0xff] %vm3359, %v3290
      %3374 = vst.msk [vmem:[#allocation3 + $0x70] sm:$0xff] %vm3359, %v3292
      %3375 = vst.msk [vmem:[#allocation3 + $0x78] sm:$0xff] %vm3359, %v3294
      %3376 = vst.msk [vmem:[#allocation3 + $0x80] sm:$0xff] %vm3359, %v3296
      %3377 = vst.msk [vmem:[#allocation3 + $0x88] sm:$0xff] %vm3359, %v3298
      %3378 = vst.msk [vmem:[#allocation3 + $0x90] sm:$0xff] %vm3359, %v3300
      %3379 = vst.msk [vmem:[#allocation3 + $0x98] sm:$0xff] %vm3359, %v3302
      %3380 = vst.msk [vmem:[#allocation3 + $0xa0] sm:$0xff] %vm3359, %v3304
      %3381 = vst.msk [vmem:[#allocation3 + $0xa8] sm:$0xff] %vm3359, %v3306
      %3382 = vst.msk [vmem:[#allocation3 + $0xb0] sm:$0xff] %vm3359, %v3308
      %3383 = vst.msk [vmem:[#allocation3 + $0xb8] sm:$0xff] %vm3359, %v3310
      %3384 = vst.msk [vmem:[#allocation3 + $0xc0] sm:$0xff] %vm3359, %v3312
      %3385 = vst.msk [vmem:[#allocation3 + $0xc8] sm:$0xff] %vm3359, %v3314
      %3386 = vst.msk [vmem:[#allocation3 + $0xd0] sm:$0xff] %vm3359, %v3316
      %3387 = vst.msk [vmem:[#allocation3 + $0xd8] sm:$0xff] %vm3359, %v3318
      %3388 = vst.msk [vmem:[#allocation3 + $0xe0] sm:$0xff] %vm3359, %v3320
      %3389 = vst.msk [vmem:[#allocation3 + $0xe8] sm:$0xff] %vm3359, %v3322
      %3390 = vst.msk [vmem:[#allocation3 + $0xf0] sm:$0xff] %vm3359, %v3324
      %3391 = vst.msk [vmem:[#allocation3 + $0xf8] sm:$0xff] %vm3359, %v3326
      %3394 = vrot.lane.b32.xlu0 %v2446, 48
      %v3395 = vpop.permute.xlu0 %3394
      %3396 = vrot.lane.b32.xlu0 %v2447, 48
      %v3397 = vpop.permute.xlu0 %3396
      %3398 = vrot.lane.b32.xlu0 %v2449, 48
      %v3399 = vpop.permute.xlu0 %3398
      %3400 = vrot.lane.b32.xlu0 %v2450, 48
      %v3401 = vpop.permute.xlu0 %3400
      %3402 = vrot.lane.b32.xlu0 %v2452, 48
      %v3403 = vpop.permute.xlu0 %3402
      %3404 = vrot.lane.b32.xlu0 %v2453, 48
      %v3405 = vpop.permute.xlu0 %3404
      %3406 = vrot.lane.b32.xlu0 %v2455, 48
      %v3407 = vpop.permute.xlu0 %3406
      %3408 = vrot.lane.b32.xlu0 %v2456, 48
      %v3409 = vpop.permute.xlu0 %3408
      %3410 = vrot.lane.b32.xlu0 %v2458, 48
      %v3411 = vpop.permute.xlu0 %3410
      %3412 = vrot.lane.b32.xlu0 %v2459, 48
      %v3413 = vpop.permute.xlu0 %3412
      %3414 = vrot.lane.b32.xlu0 %v2461, 48
      %v3415 = vpop.permute.xlu0 %3414
      %3416 = vrot.lane.b32.xlu0 %v2462, 48
      %v3417 = vpop.permute.xlu0 %3416
      %3418 = vrot.lane.b32.xlu0 %v2464, 48
      %v3419 = vpop.permute.xlu0 %3418
      %3420 = vrot.lane.b32.xlu0 %v2465, 48
      %v3421 = vpop.permute.xlu0 %3420
      %3422 = vrot.lane.b32.xlu0 %v2467, 48
      %v3423 = vpop.permute.xlu0 %3422
      %3424 = vrot.lane.b32.xlu0 %v2468, 48
      %v3425 = vpop.permute.xlu0 %3424
      %3426 = vrot.lane.b32.xlu0 %v2470, 48
      %v3427 = vpop.permute.xlu0 %3426
      %3428 = vrot.lane.b32.xlu0 %v2471, 48
      %v3429 = vpop.permute.xlu0 %3428
      %3430 = vrot.lane.b32.xlu0 %v2473, 48
      %v3431 = vpop.permute.xlu0 %3430
      %3432 = vrot.lane.b32.xlu0 %v2474, 48
      %v3433 = vpop.permute.xlu0 %3432
      %3434 = vrot.lane.b32.xlu0 %v2476, 48
      %v3435 = vpop.permute.xlu0 %3434
      %3436 = vrot.lane.b32.xlu0 %v2477, 48
      %v3437 = vpop.permute.xlu0 %3436
      %3438 = vrot.lane.b32.xlu0 %v2479, 48
      %v3439 = vpop.permute.xlu0 %3438
      %3440 = vrot.lane.b32.xlu0 %v2480, 48
      %v3441 = vpop.permute.xlu0 %3440
      %3442 = vrot.lane.b32.xlu0 %v2482, 48
      %v3443 = vpop.permute.xlu0 %3442
      %3444 = vrot.lane.b32.xlu0 %v2483, 48
      %v3445 = vpop.permute.xlu0 %3444
      %3446 = vrot.lane.b32.xlu0 %v2485, 48
      %v3447 = vpop.permute.xlu0 %3446
      %3448 = vrot.lane.b32.xlu0 %v2486, 48
      %v3449 = vpop.permute.xlu0 %3448
      %3450 = vrot.lane.b32.xlu0 %v2488, 48
      %v3451 = vpop.permute.xlu0 %3450
      %3452 = vrot.lane.b32.xlu0 %v2489, 48
      %v3453 = vpop.permute.xlu0 %3452
      %3454 = vrot.lane.b32.xlu0 %v2491, 48
      %v3455 = vpop.permute.xlu0 %3454
      %3456 = vrot.lane.b32.xlu0 %v2492, 48
      %v3457 = vpop.permute.xlu0 %3456
      %vm3490 = vcmask 458112
      %3491 = vst.msk [vmem:[#allocation3] sm:$0xff] %vm3490, %v3395
      %3492 = vst.msk [vmem:[#allocation3 + $0x8] sm:$0xff] %vm3490, %v3397
      %3493 = vst.msk [vmem:[#allocation3 + $0x10] sm:$0xff] %vm3490, %v3399
      %3494 = vst.msk [vmem:[#allocation3 + $0x18] sm:$0xff] %vm3490, %v3401
      %3495 = vst.msk [vmem:[#allocation3 + $0x20] sm:$0xff] %vm3490, %v3403
      %3496 = vst.msk [vmem:[#allocation3 + $0x28] sm:$0xff] %vm3490, %v3405
      %3497 = vst.msk [vmem:[#allocation3 + $0x30] sm:$0xff] %vm3490, %v3407
      %3498 = vst.msk [vmem:[#allocation3 + $0x38] sm:$0xff] %vm3490, %v3409
      %3499 = vst.msk [vmem:[#allocation3 + $0x40] sm:$0xff] %vm3490, %v3411
      %3500 = vst.msk [vmem:[#allocation3 + $0x48] sm:$0xff] %vm3490, %v3413
      %3501 = vst.msk [vmem:[#allocation3 + $0x50] sm:$0xff] %vm3490, %v3415
      %3502 = vst.msk [vmem:[#allocation3 + $0x58] sm:$0xff] %vm3490, %v3417
      %3503 = vst.msk [vmem:[#allocation3 + $0x60] sm:$0xff] %vm3490, %v3419
      %3504 = vst.msk [vmem:[#allocation3 + $0x68] sm:$0xff] %vm3490, %v3421
      %3505 = vst.msk [vmem:[#allocation3 + $0x70] sm:$0xff] %vm3490, %v3423
      %3506 = vst.msk [vmem:[#allocation3 + $0x78] sm:$0xff] %vm3490, %v3425
      %3507 = vst.msk [vmem:[#allocation3 + $0x80] sm:$0xff] %vm3490, %v3427
      %3508 = vst.msk [vmem:[#allocation3 + $0x88] sm:$0xff] %vm3490, %v3429
      %3509 = vst.msk [vmem:[#allocation3 + $0x90] sm:$0xff] %vm3490, %v3431
      %3510 = vst.msk [vmem:[#allocation3 + $0x98] sm:$0xff] %vm3490, %v3433
      %3511 = vst.msk [vmem:[#allocation3 + $0xa0] sm:$0xff] %vm3490, %v3435
      %3512 = vst.msk [vmem:[#allocation3 + $0xa8] sm:$0xff] %vm3490, %v3437
      %3513 = vst.msk [vmem:[#allocation3 + $0xb0] sm:$0xff] %vm3490, %v3439
      %3514 = vst.msk [vmem:[#allocation3 + $0xb8] sm:$0xff] %vm3490, %v3441
      %3515 = vst.msk [vmem:[#allocation3 + $0xc0] sm:$0xff] %vm3490, %v3443
      %3516 = vst.msk [vmem:[#allocation3 + $0xc8] sm:$0xff] %vm3490, %v3445
      %3517 = vst.msk [vmem:[#allocation3 + $0xd0] sm:$0xff] %vm3490, %v3447
      %3518 = vst.msk [vmem:[#allocation3 + $0xd8] sm:$0xff] %vm3490, %v3449
      %3519 = vst.msk [vmem:[#allocation3 + $0xe0] sm:$0xff] %vm3490, %v3451
      %3520 = vst.msk [vmem:[#allocation3 + $0xe8] sm:$0xff] %vm3490, %v3453
      %3521 = vst.msk [vmem:[#allocation3 + $0xf0] sm:$0xff] %vm3490, %v3455
      %3522 = vst.msk [vmem:[#allocation3 + $0xf8] sm:$0xff] %vm3490, %v3457
      %v3524 = vrot.slane %v2491, 1
      %v3525 = vrot.slane %v2492, 1
      %v3526 = vsel %vm562, %v3524, %v3525
      %v3527 = vrot.slane %v2493, 1
      %v3528 = vsel %vm562, %v3525, %v3527
      %3529 = vrot.lane.b32.xlu0 %v2586, 56
      %v3530 = vpop.permute.xlu0 %3529
      %3531 = vrot.lane.b32.xlu0 %v2588, 56
      %v3532 = vpop.permute.xlu0 %3531
      %3533 = vrot.lane.b32.xlu0 %v2591, 56
      %v3534 = vpop.permute.xlu0 %3533
      %3535 = vrot.lane.b32.xlu0 %v2593, 56
      %v3536 = vpop.permute.xlu0 %3535
      %3537 = vrot.lane.b32.xlu0 %v2596, 56
      %v3538 = vpop.permute.xlu0 %3537
      %3539 = vrot.lane.b32.xlu0 %v2598, 56
      %v3540 = vpop.permute.xlu0 %3539
      %3541 = vrot.lane.b32.xlu0 %v2601, 56
      %v3542 = vpop.permute.xlu0 %3541
      %3543 = vrot.lane.b32.xlu0 %v2603, 56
      %v3544 = vpop.permute.xlu0 %3543
      %3545 = vrot.lane.b32.xlu0 %v2606, 56
      %v3546 = vpop.permute.xlu0 %3545
      %3547 = vrot.lane.b32.xlu0 %v2608, 56
      %v3548 = vpop.permute.xlu0 %3547
      %3549 = vrot.lane.b32.xlu0 %v2611, 56
      %v3550 = vpop.permute.xlu0 %3549
      %3551 = vrot.lane.b32.xlu0 %v2613, 56
      %v3552 = vpop.permute.xlu0 %3551
      %3553 = vrot.lane.b32.xlu0 %v2616, 56
      %v3554 = vpop.permute.xlu0 %3553
      %3555 = vrot.lane.b32.xlu0 %v2618, 56
      %v3556 = vpop.permute.xlu0 %3555
      %3557 = vrot.lane.b32.xlu0 %v2621, 56
      %v3558 = vpop.permute.xlu0 %3557
      %3559 = vrot.lane.b32.xlu0 %v2623, 56
      %v3560 = vpop.permute.xlu0 %3559
      %3561 = vrot.lane.b32.xlu0 %v2626, 56
      %v3562 = vpop.permute.xlu0 %3561
      %3563 = vrot.lane.b32.xlu0 %v2628, 56
      %v3564 = vpop.permute.xlu0 %3563
      %3565 = vrot.lane.b32.xlu0 %v2631, 56
      %v3566 = vpop.permute.xlu0 %3565
      %3567 = vrot.lane.b32.xlu0 %v2633, 56
      %v3568 = vpop.permute.xlu0 %3567
      %3569 = vrot.lane.b32.xlu0 %v2636, 56
      %v3570 = vpop.permute.xlu0 %3569
      %3571 = vrot.lane.b32.xlu0 %v2638, 56
      %v3572 = vpop.permute.xlu0 %3571
      %3573 = vrot.lane.b32.xlu0 %v2641, 56
      %v3574 = vpop.permute.xlu0 %3573
      %3575 = vrot.lane.b32.xlu0 %v2643, 56
      %v3576 = vpop.permute.xlu0 %3575
      %3577 = vrot.lane.b32.xlu0 %v2646, 56
      %v3578 = vpop.permute.xlu0 %3577
      %3579 = vrot.lane.b32.xlu0 %v2648, 56
      %v3580 = vpop.permute.xlu0 %3579
      %3581 = vrot.lane.b32.xlu0 %v2651, 56
      %v3582 = vpop.permute.xlu0 %3581
      %3583 = vrot.lane.b32.xlu0 %v2653, 56
      %v3584 = vpop.permute.xlu0 %3583
      %3585 = vrot.lane.b32.xlu0 %v3126, 56
      %v3586 = vpop.permute.xlu0 %3585
      %3587 = vrot.lane.b32.xlu0 %v3128, 56
      %v3588 = vpop.permute.xlu0 %3587
      %3589 = vrot.lane.b32.xlu0 %v3526, 56
      %v3590 = vpop.permute.xlu0 %3589
      %3591 = vrot.lane.b32.xlu0 %v3528, 56
      %v3592 = vpop.permute.xlu0 %3591
      %vm3625 = vcmask 523712
      %3626 = vst.msk [vmem:[#allocation3] sm:$0xff] %vm3625, %v3530
      %3627 = vst.msk [vmem:[#allocation3 + $0x8] sm:$0xff] %vm3625, %v3532
      %3628 = vst.msk [vmem:[#allocation3 + $0x10] sm:$0xff] %vm3625, %v3534
      %3629 = vst.msk [vmem:[#allocation3 + $0x18] sm:$0xff] %vm3625, %v3536
      %3630 = vst.msk [vmem:[#allocation3 + $0x20] sm:$0xff] %vm3625, %v3538
      %3631 = vst.msk [vmem:[#allocation3 + $0x28] sm:$0xff] %vm3625, %v3540
      %3632 = vst.msk [vmem:[#allocation3 + $0x30] sm:$0xff] %vm3625, %v3542
      %3633 = vst.msk [vmem:[#allocation3 + $0x38] sm:$0xff] %vm3625, %v3544
      %3634 = vst.msk [vmem:[#allocation3 + $0x40] sm:$0xff] %vm3625, %v3546
      %3635 = vst.msk [vmem:[#allocation3 + $0x48] sm:$0xff] %vm3625, %v3548
      %3636 = vst.msk [vmem:[#allocation3 + $0x50] sm:$0xff] %vm3625, %v3550
      %3637 = vst.msk [vmem:[#allocation3 + $0x58] sm:$0xff] %vm3625, %v3552
      %3638 = vst.msk [vmem:[#allocation3 + $0x60] sm:$0xff] %vm3625, %v3554
      %3639 = vst.msk [vmem:[#allocation3 + $0x68] sm:$0xff] %vm3625, %v3556
      %3640 = vst.msk [vmem:[#allocation3 + $0x70] sm:$0xff] %vm3625, %v3558
      %3641 = vst.msk [vmem:[#allocation3 + $0x78] sm:$0xff] %vm3625, %v3560
      %3642 = vst.msk [vmem:[#allocation3 + $0x80] sm:$0xff] %vm3625, %v3562
      %3643 = vst.msk [vmem:[#allocation3 + $0x88] sm:$0xff] %vm3625, %v3564
      %3644 = vst.msk [vmem:[#allocation3 + $0x90] sm:$0xff] %vm3625, %v3566
      %3645 = vst.msk [vmem:[#allocation3 + $0x98] sm:$0xff] %vm3625, %v3568
      %3646 = vst.msk [vmem:[#allocation3 + $0xa0] sm:$0xff] %vm3625, %v3570
      %3647 = vst.msk [vmem:[#allocation3 + $0xa8] sm:$0xff] %vm3625, %v3572
      %3648 = vst.msk [vmem:[#allocation3 + $0xb0] sm:$0xff] %vm3625, %v3574
      %3649 = vst.msk [vmem:[#allocation3 + $0xb8] sm:$0xff] %vm3625, %v3576
      %3650 = vst.msk [vmem:[#allocation3 + $0xc0] sm:$0xff] %vm3625, %v3578
      %3651 = vst.msk [vmem:[#allocation3 + $0xc8] sm:$0xff] %vm3625, %v3580
      %3652 = vst.msk [vmem:[#allocation3 + $0xd0] sm:$0xff] %vm3625, %v3582
      %3653 = vst.msk [vmem:[#allocation3 + $0xd8] sm:$0xff] %vm3625, %v3584
      %3654 = vst.msk [vmem:[#allocation3 + $0xe0] sm:$0xff] %vm3625, %v3586
      %3655 = vst.msk [vmem:[#allocation3 + $0xe8] sm:$0xff] %vm3625, %v3588
      %3656 = vst.msk [vmem:[#allocation3 + $0xf0] sm:$0xff] %vm3625, %v3590
      %3657 = vst.msk [vmem:[#allocation3 + $0xf8] sm:$0xff] %vm3625, %v3592
      %v3658 = vrot.slane %v2491, 2
      %v3659 = vrot.slane %v2492, 2
      %v3660 = vsel %vm772, %v3658, %v3659
      %v3661 = vrot.slane %v2493, 2
      %v3662 = vsel %vm772, %v3659, %v3661
      %3663 = vrot.lane.b32.xlu0 %v2795, 64
      %v3664 = vpop.permute.xlu0 %3663
      %3665 = vrot.lane.b32.xlu0 %v2797, 64
      %v3666 = vpop.permute.xlu0 %3665
      %3667 = vrot.lane.b32.xlu0 %v2800, 64
      %v3668 = vpop.permute.xlu0 %3667
      %3669 = vrot.lane.b32.xlu0 %v2802, 64
      %v3670 = vpop.permute.xlu0 %3669
      %3671 = vrot.lane.b32.xlu0 %v2805, 64
      %v3672 = vpop.permute.xlu0 %3671
      %3673 = vrot.lane.b32.xlu0 %v2807, 64
      %v3674 = vpop.permute.xlu0 %3673
      %3675 = vrot.lane.b32.xlu0 %v2810, 64
      %v3676 = vpop.permute.xlu0 %3675
      %3677 = vrot.lane.b32.xlu0 %v2812, 64
      %v3678 = vpop.permute.xlu0 %3677
      %3679 = vrot.lane.b32.xlu0 %v2815, 64
      %v3680 = vpop.permute.xlu0 %3679
      %3681 = vrot.lane.b32.xlu0 %v2817, 64
      %v3682 = vpop.permute.xlu0 %3681
      %3683 = vrot.lane.b32.xlu0 %v2820, 64
      %v3684 = vpop.permute.xlu0 %3683
      %3685 = vrot.lane.b32.xlu0 %v2822, 64
      %v3686 = vpop.permute.xlu0 %3685
      %3687 = vrot.lane.b32.xlu0 %v2825, 64
      %v3688 = vpop.permute.xlu0 %3687
      %3689 = vrot.lane.b32.xlu0 %v2827, 64
      %v3690 = vpop.permute.xlu0 %3689
      %3691 = vrot.lane.b32.xlu0 %v2830, 64
      %v3692 = vpop.permute.xlu0 %3691
      %3693 = vrot.lane.b32.xlu0 %v2832, 64
      %v3694 = vpop.permute.xlu0 %3693
      %3695 = vrot.lane.b32.xlu0 %v2835, 64
      %v3696 = vpop.permute.xlu0 %3695
      %3697 = vrot.lane.b32.xlu0 %v2837, 64
      %v3698 = vpop.permute.xlu0 %3697
      %3699 = vrot.lane.b32.xlu0 %v2840, 64
      %v3700 = vpop.permute.xlu0 %3699
      %3701 = vrot.lane.b32.xlu0 %v2842, 64
      %v3702 = vpop.permute.xlu0 %3701
      %3703 = vrot.lane.b32.xlu0 %v2845, 64
      %v3704 = vpop.permute.xlu0 %3703
      %3705 = vrot.lane.b32.xlu0 %v2847, 64
      %v3706 = vpop.permute.xlu0 %3705
      %3707 = vrot.lane.b32.xlu0 %v2850, 64
      %v3708 = vpop.permute.xlu0 %3707
      %3709 = vrot.lane.b32.xlu0 %v2852, 64
      %v3710 = vpop.permute.xlu0 %3709
      %3711 = vrot.lane.b32.xlu0 %v2855, 64
      %v3712 = vpop.permute.xlu0 %3711
      %3713 = vrot.lane.b32.xlu0 %v2857, 64
      %v3714 = vpop.permute.xlu0 %3713
      %3715 = vrot.lane.b32.xlu0 %v2860, 64
      %v3716 = vpop.permute.xlu0 %3715
      %3717 = vrot.lane.b32.xlu0 %v2862, 64
      %v3718 = vpop.permute.xlu0 %3717
      %3719 = vrot.lane.b32.xlu0 %v3260, 64
      %v3720 = vpop.permute.xlu0 %3719
      %3721 = vrot.lane.b32.xlu0 %v3262, 64
      %v3722 = vpop.permute.xlu0 %3721
      %3723 = vrot.lane.b32.xlu0 %v3660, 64
      %v3724 = vpop.permute.xlu0 %3723
      %3725 = vrot.lane.b32.xlu0 %v3662, 64
      %v3726 = vpop.permute.xlu0 %3725
      %vm3759 = vcmask 589312
      %3760 = vst.msk [vmem:[#allocation3] sm:$0xff] %vm3759, %v3664
      %3761 = vst.msk [vmem:[#allocation3 + $0x8] sm:$0xff] %vm3759, %v3666
      %3762 = vst.msk [vmem:[#allocation3 + $0x10] sm:$0xff] %vm3759, %v3668
      %3763 = vst.msk [vmem:[#allocation3 + $0x18] sm:$0xff] %vm3759, %v3670
      %3764 = vst.msk [vmem:[#allocation3 + $0x20] sm:$0xff] %vm3759, %v3672
      %3765 = vst.msk [vmem:[#allocation3 + $0x28] sm:$0xff] %vm3759, %v3674
      %3766 = vst.msk [vmem:[#allocation3 + $0x30] sm:$0xff] %vm3759, %v3676
      %3767 = vst.msk [vmem:[#allocation3 + $0x38] sm:$0xff] %vm3759, %v3678
      %3768 = vst.msk [vmem:[#allocation3 + $0x40] sm:$0xff] %vm3759, %v3680
      %3769 = vst.msk [vmem:[#allocation3 + $0x48] sm:$0xff] %vm3759, %v3682
      %3770 = vst.msk [vmem:[#allocation3 + $0x50] sm:$0xff] %vm3759, %v3684
      %3771 = vst.msk [vmem:[#allocation3 + $0x58] sm:$0xff] %vm3759, %v3686
      %3772 = vst.msk [vmem:[#allocation3 + $0x60] sm:$0xff] %vm3759, %v3688
      %3773 = vst.msk [vmem:[#allocation3 + $0x68] sm:$0xff] %vm3759, %v3690
      %3774 = vst.msk [vmem:[#allocation3 + $0x70] sm:$0xff] %vm3759, %v3692
      %3775 = vst.msk [vmem:[#allocation3 + $0x78] sm:$0xff] %vm3759, %v3694
      %3776 = vst.msk [vmem:[#allocation3 + $0x80] sm:$0xff] %vm3759, %v3696
      %3777 = vst.msk [vmem:[#allocation3 + $0x88] sm:$0xff] %vm3759, %v3698
      %3778 = vst.msk [vmem:[#allocation3 + $0x90] sm:$0xff] %vm3759, %v3700
      %3779 = vst.msk [vmem:[#allocation3 + $0x98] sm:$0xff] %vm3759, %v3702
      %3780 = vst.msk [vmem:[#allocation3 + $0xa0] sm:$0xff] %vm3759, %v3704
      %3781 = vst.msk [vmem:[#allocation3 + $0xa8] sm:$0xff] %vm3759, %v3706
      %3782 = vst.msk [vmem:[#allocation3 + $0xb0] sm:$0xff] %vm3759, %v3708
      %3783 = vst.msk [vmem:[#allocation3 + $0xb8] sm:$0xff] %vm3759, %v3710
      %3784 = vst.msk [vmem:[#allocation3 + $0xc0] sm:$0xff] %vm3759, %v3712
      %3785 = vst.msk [vmem:[#allocation3 + $0xc8] sm:$0xff] %vm3759, %v3714
      %3786 = vst.msk [vmem:[#allocation3 + $0xd0] sm:$0xff] %vm3759, %v3716
      %3787 = vst.msk [vmem:[#allocation3 + $0xd8] sm:$0xff] %vm3759, %v3718
      %3788 = vst.msk [vmem:[#allocation3 + $0xe0] sm:$0xff] %vm3759, %v3720
      %3789 = vst.msk [vmem:[#allocation3 + $0xe8] sm:$0xff] %vm3759, %v3722
      %3790 = vst.msk [vmem:[#allocation3 + $0xf0] sm:$0xff] %vm3759, %v3724
      %3791 = vst.msk [vmem:[#allocation3 + $0xf8] sm:$0xff] %vm3759, %v3726
      %v3792 = vld [vmem:[#allocation3] sm:$0xff]
      %v3793 = vld [vmem:[#allocation3 + $0x8] sm:$0xff]
      %v3794 = vld [vmem:[#allocation3 + $0x10] sm:$0xff]
      %v3795 = vld [vmem:[#allocation3 + $0x18] sm:$0xff]
      %v3796 = vld [vmem:[#allocation3 + $0x20] sm:$0xff]
      %v3797 = vld [vmem:[#allocation3 + $0x28] sm:$0xff]
      %v3798 = vld [vmem:[#allocation3 + $0x30] sm:$0xff]
      %v3799 = vld [vmem:[#allocation3 + $0x38] sm:$0xff]
      %v3800 = vld [vmem:[#allocation3 + $0x40] sm:$0xff]
      %v3801 = vld [vmem:[#allocation3 + $0x48] sm:$0xff]
      %v3802 = vld [vmem:[#allocation3 + $0x50] sm:$0xff]
      %v3803 = vld [vmem:[#allocation3 + $0x58] sm:$0xff]
      %v3804 = vld [vmem:[#allocation3 + $0x60] sm:$0xff]
      %v3805 = vld [vmem:[#allocation3 + $0x68] sm:$0xff]
      %v3806 = vld [vmem:[#allocation3 + $0x70] sm:$0xff]
      %v3807 = vld [vmem:[#allocation3 + $0x78] sm:$0xff]
      %v3808 = vld [vmem:[#allocation3 + $0x80] sm:$0xff]
      %v3809 = vld [vmem:[#allocation3 + $0x88] sm:$0xff]
      %v3810 = vld [vmem:[#allocation3 + $0x90] sm:$0xff]
      %v3811 = vld [vmem:[#allocation3 + $0x98] sm:$0xff]
      %v3812 = vld [vmem:[#allocation3 + $0xa0] sm:$0xff]
      %v3813 = vld [vmem:[#allocation3 + $0xa8] sm:$0xff]
      %v3814 = vld [vmem:[#allocation3 + $0xb0] sm:$0xff]
      %v3815 = vld [vmem:[#allocation3 + $0xb8] sm:$0xff]
      %v3816 = vld [vmem:[#allocation3 + $0xc0] sm:$0xff]
      %v3817 = vld [vmem:[#allocation3 + $0xc8] sm:$0xff]
      %v3818 = vld [vmem:[#allocation3 + $0xd0] sm:$0xff]
      %v3819 = vld [vmem:[#allocation3 + $0xd8] sm:$0xff]
      %v3820 = vld [vmem:[#allocation3 + $0xe0] sm:$0xff]
      %v3821 = vld [vmem:[#allocation3 + $0xe8] sm:$0xff]
      %v3822 = vld [vmem:[#allocation3 + $0xf0] sm:$0xff]
      %v3823 = vld [vmem:[#allocation3 + $0xf8] sm:$0xff]
      %v3824 = vld [vmem:[%s3] sm:$0xff]
      %v3825 = vld [vmem:[%s3 + $0x8] sm:$0xff]
      %v3826 = vld [vmem:[%s3 + $0x10] sm:$0xff]
      %v3827 = vld [vmem:[%s3 + $0x18] sm:$0xff]
      %v3828 = vld [vmem:[%s3 + $0x20] sm:$0xff]
      %v3829 = vld [vmem:[%s3 + $0x28] sm:$0xff]
      %v3830 = vld [vmem:[%s3 + $0x30] sm:$0xff]
      %v3831 = vld [vmem:[%s3 + $0x38] sm:$0xff]
      %v3832 = vld [vmem:[%s3 + $0x40] sm:$0xff]
      %v3833 = vld [vmem:[%s4] sm:$0x1]
      %v3835 = vlaneseq
      %v3836 = vshrl.u32 %v3835, 7
      %v3837 = vsub.s32 0, %v3836
      %v3838 = vrot.slane %v3833, %v3837
      %vm3840 = vcmask 588800
      %v3842 = vsel %vm3840, %v3792, 0
      %v3845 = vsel %vm3840, %v3793, 0
      %v3848 = vsel %vm3840, %v3794, 0
      %v3851 = vsel %vm3840, %v3795, 0
      %v3854 = vsel %vm3840, %v3796, 0
      %v3857 = vsel %vm3840, %v3797, 0
      %v3860 = vsel %vm3840, %v3798, 0
      %v3863 = vsel %vm3840, %v3799, 0
      %v3866 = vsel %vm3840, %v3800, 0
      %v3869 = vsel %vm3840, %v3801, 0
      %v3872 = vsel %vm3840, %v3802, 0
      %v3875 = vsel %vm3840, %v3803, 0
      %v3878 = vsel %vm3840, %v3804, 0
      %v3881 = vsel %vm3840, %v3805, 0
      %v3884 = vsel %vm3840, %v3806, 0
      %v3887 = vsel %vm3840, %v3807, 0
      %v3890 = vsel %vm3840, %v3808, 0
      %v3893 = vsel %vm3840, %v3809, 0
      %v3896 = vsel %vm3840, %v3810, 0
      %v3899 = vsel %vm3840, %v3811, 0
      %v3902 = vsel %vm3840, %v3812, 0
      %v3905 = vsel %vm3840, %v3813, 0
      %v3908 = vsel %vm3840, %v3814, 0
      %v3911 = vsel %vm3840, %v3815, 0
      %v3914 = vsel %vm3840, %v3816, 0
      %v3917 = vsel %vm3840, %v3817, 0
      %v3920 = vsel %vm3840, %v3818, 0
      %v3923 = vsel %vm3840, %v3819, 0
      %v3926 = vsel %vm3840, %v3820, 0
      %v3929 = vsel %vm3840, %v3821, 0
      %v3932 = vsel %vm3840, %v3822, 0
      %v3935 = vsel %vm3840, %v3823, 0
      %3937 = vmatprep.subr.mxu0 0.0
      %3938 = vmatpush1.msra.mxu0 %v3824
      %3939 = vmatprep.subr.mxu0 0.0
      %3940 = vmatpush1.msra.mxu0 %v3825
      %3941 = vmatprep.subr.mxu0 0.0
      %3942 = vmatpush1.msra.mxu0 %v3826
      %3943 = vmatprep.subr.mxu0 0.0
      %3944 = vmatpush1.msra.mxu0 %v3827
      %3945 = vmatprep.subr.mxu0 0.0
      %3946 = vmatpush1.msra.mxu0 %v3828
      %3947 = vmatprep.subr.mxu0 0.0
      %3948 = vmatpush1.msra.mxu0 %v3829
      %3949 = vmatprep.subr.mxu0 0.0
      %3950 = vmatpush1.msra.mxu0 %v3830
      %3951 = vmatprep.subr.mxu0 0.0
      %3952 = vmatpush1.msra.mxu0 %v3831
      %3953 = vmatprep.subr.mxu0 0.0
      %3954 = vmatpush1.msra.mxu0 %v3832
      %3955 = vmatprep.subr.mxu0 0.0
      %3956 = vmatpush1.msra.mxu0 0.0
      %3957 = vmatprep.subr.mxu0 0.0
      %3958 = vmatpush1.msra.mxu0 0.0
      %3959 = vmatprep.subr.mxu0 0.0
      %3960 = vmatpush1.msra.mxu0 0.0
      %3961 = vmatprep.subr.mxu0 0.0
      %3962 = vmatpush1.msra.mxu0 0.0
      %3963 = vmatprep.subr.mxu0 0.0
      %3964 = vmatpush1.msra.mxu0 0.0
      %3965 = vmatprep.subr.mxu0 0.0
      %3966 = vmatpush1.msra.mxu0 0.0
      %3967 = vmatprep.subr.mxu0 0.0
      %3968 = vmatpush1.msra.mxu0 0.0
      %3969 = vmatprep.subr.mxu0 0.0
      %3970 = vmatpush1.msra.mxu0 0.0
      %3971 = vmatprep.subr.mxu0 0.0
      %3972 = vmatpush1.msra.mxu0 0.0
      %3973 = vmatprep.subr.mxu0 0.0
      %3974 = vmatpush1.msra.mxu0 0.0
      %3975 = vmatprep.subr.mxu0 0.0
      %3976 = vmatpush1.msra.mxu0 0.0
      %3977 = vmatprep.subr.mxu0 0.0
      %3978 = vmatpush1.msra.mxu0 0.0
      %3979 = vmatprep.subr.mxu0 0.0
      %3980 = vmatpush1.msra.mxu0 0.0
      %3981 = vmatprep.subr.mxu0 0.0
      %3982 = vmatpush1.msra.mxu0 0.0
      %3983 = vmatprep.subr.mxu0 0.0
      %3984 = vmatpush1.msra.mxu0 0.0
      %3985 = vmatprep.subr.mxu0 0.0
      %3986 = vmatpush1.msra.mxu0 0.0
      %3987 = vmatprep.subr.mxu0 0.0
      %3988 = vmatpush1.msra.mxu0 0.0
      %3989 = vmatprep.subr.mxu0 0.0
      %3990 = vmatpush1.msra.mxu0 0.0
      %3991 = vmatprep.subr.mxu0 0.0
      %3992 = vmatpush1.msra.mxu0 0.0
      %3993 = vmatprep.subr.mxu0 0.0
      %3994 = vmatpush1.msra.mxu0 0.0
      %3995 = vmatprep.subr.mxu0 0.0
      %3996 = vmatpush1.msra.mxu0 0.0
      %3997 = vmatprep.subr.mxu0 0.0
      %3998 = vmatpush1.msra.mxu0 0.0
      %3999 = vmatprep.subr.mxu0 0.0
      %4000 = vmatpush1.msra.mxu0 0.0
      %4001 = vmatprep.mubr.f32.mxu0 0.0
      %4002 = vmatmul.mubr.f32.gmra.mrb[0].mxu0 %v3842
      %v4003 = vpop.f32.mrb[0].mxu0
      %v4004 = vadd.f32 %v3838, %v4003
      %v4005 = vpop.f32.mrb[0].mxu0
      %4006 = vmatprep.mubr.f32.mxu0 0.0
      %4007 = vmatmul.mubr.f32.gmra.mrb[0].mxu0 %v3845
      %v4008 = vpop.f32.mrb[0].mxu0
      %v4009 = vadd.f32 %v3838, %v4008
      %v4010 = vpop.f32.mrb[0].mxu0
      %4011 = vmatprep.mubr.f32.mxu0 0.0
      %4012 = vmatmul.mubr.f32.gmra.mrb[0].mxu0 %v3848
      %v4013 = vpop.f32.mrb[0].mxu0
      %v4014 = vadd.f32 %v3838, %v4013
      %v4015 = vpop.f32.mrb[0].mxu0
      %4016 = vmatprep.mubr.f32.mxu0 0.0
      %4017 = vmatmul.mubr.f32.gmra.mrb[0].mxu0 %v3851
      %v4018 = vpop.f32.mrb[0].mxu0
      %v4019 = vadd.f32 %v3838, %v4018
      %v4020 = vpop.f32.mrb[0].mxu0
      %4021 = vmatprep.mubr.f32.mxu0 0.0
      %4022 = vmatmul.mubr.f32.gmra.mrb[0].mxu0 %v3854
      %v4023 = vpop.f32.mrb[0].mxu0
      %v4024 = vadd.f32 %v3838, %v4023
      %v4025 = vpop.f32.mrb[0].mxu0
      %4026 = vmatprep.mubr.f32.mxu0 0.0
      %4027 = vmatmul.mubr.f32.gmra.mrb[0].mxu0 %v3857
      %v4028 = vpop.f32.mrb[0].mxu0
      %v4029 = vadd.f32 %v3838, %v4028
      %v4030 = vpop.f32.mrb[0].mxu0
      %4031 = vmatprep.mubr.f32.mxu0 0.0
      %4032 = vmatmul.mubr.f32.gmra.mrb[0].mxu0 %v3860
      %v4033 = vpop.f32.mrb[0].mxu0
      %v4034 = vadd.f32 %v3838, %v4033
      %v4035 = vpop.f32.mrb[0].mxu0
      %4036 = vmatprep.mubr.f32.mxu0 0.0
      %4037 = vmatmul.mubr.f32.gmra.mrb[0].mxu0 %v3863
      %v4038 = vpop.f32.mrb[0].mxu0
      %v4039 = vadd.f32 %v3838, %v4038
      %v4040 = vpop.f32.mrb[0].mxu0
      %4041 = vmatprep.mubr.f32.mxu0 0.0
      %4042 = vmatmul.mubr.f32.gmra.mrb[0].mxu0 %v3866
      %v4043 = vpop.f32.mrb[0].mxu0
      %v4044 = vadd.f32 %v3838, %v4043
      %v4045 = vpop.f32.mrb[0].mxu0
      %4046 = vmatprep.mubr.f32.mxu0 0.0
      %4047 = vmatmul.mubr.f32.gmra.mrb[0].mxu0 %v3869
      %v4048 = vpop.f32.mrb[0].mxu0
      %v4049 = vadd.f32 %v3838, %v4048
      %v4050 = vpop.f32.mrb[0].mxu0
      %4051 = vmatprep.mubr.f32.mxu0 0.0
      %4052 = vmatmul.mubr.f32.gmra.mrb[0].mxu0 %v3872
      %v4053 = vpop.f32.mrb[0].mxu0
      %v4054 = vadd.f32 %v3838, %v4053
      %v4055 = vpop.f32.mrb[0].mxu0
      %4056 = vmatprep.mubr.f32.mxu0 0.0
      %4057 = vmatmul.mubr.f32.gmra.mrb[0].mxu0 %v3875
      %v4058 = vpop.f32.mrb[0].mxu0
      %v4059 = vadd.f32 %v3838, %v4058
      %v4060 = vpop.f32.mrb[0].mxu0
      %4061 = vmatprep.mubr.f32.mxu0 0.0
      %4062 = vmatmul.mubr.f32.gmra.mrb[0].mxu0 %v3878
      %v4063 = vpop.f32.mrb[0].mxu0
      %v4064 = vadd.f32 %v3838, %v4063
      %v4065 = vpop.f32.mrb[0].mxu0
      %4066 = vmatprep.mubr.f32.mxu0 0.0
      %4067 = vmatmul.mubr.f32.gmra.mrb[0].mxu0 %v3881
      %v4068 = vpop.f32.mrb[0].mxu0
      %v4069 = vadd.f32 %v3838, %v4068
      %v4070 = vpop.f32.mrb[0].mxu0
      %4071 = vmatprep.mubr.f32.mxu0 0.0
      %4072 = vmatmul.mubr.f32.gmra.mrb[0].mxu0 %v3884
      %v4073 = vpop.f32.mrb[0].mxu0
      %v4074 = vadd.f32 %v3838, %v4073
      %v4075 = vpop.f32.mrb[0].mxu0
      %4076 = vmatprep.mubr.f32.mxu0 0.0
      %4077 = vmatmul.mubr.f32.gmra.mrb[0].mxu0 %v3887
      %v4078 = vpop.f32.mrb[0].mxu0
      %v4079 = vadd.f32 %v3838, %v4078
      %v4080 = vpop.f32.mrb[0].mxu0
      %4081 = vmatprep.mubr.f32.mxu0 0.0
      %4082 = vmatmul.mubr.f32.gmra.mrb[0].mxu0 %v3890
      %v4083 = vpop.f32.mrb[0].mxu0
      %v4084 = vadd.f32 %v3838, %v4083
      %v4085 = vpop.f32.mrb[0].mxu0
      %4086 = vmatprep.mubr.f32.mxu0 0.0
      %4087 = vmatmul.mubr.f32.gmra.mrb[0].mxu0 %v3893
      %v4088 = vpop.f32.mrb[0].mxu0
      %v4089 = vadd.f32 %v3838, %v4088
      %v4090 = vpop.f32.mrb[0].mxu0
      %4091 = vmatprep.mubr.f32.mxu0 0.0
      %4092 = vmatmul.mubr.f32.gmra.mrb[0].mxu0 %v3896
      %v4093 = vpop.f32.mrb[0].mxu0
      %v4094 = vadd.f32 %v3838, %v4093
      %v4095 = vpop.f32.mrb[0].mxu0
      %4096 = vmatprep.mubr.f32.mxu0 0.0
      %4097 = vmatmul.mubr.f32.gmra.mrb[0].mxu0 %v3899
      %v4098 = vpop.f32.mrb[0].mxu0
      %v4099 = vadd.f32 %v3838, %v4098
      %v4100 = vpop.f32.mrb[0].mxu0
      %4101 = vmatprep.mubr.f32.mxu0 0.0
      %4102 = vmatmul.mubr.f32.gmra.mrb[0].mxu0 %v3902
      %v4103 = vpop.f32.mrb[0].mxu0
      %v4104 = vadd.f32 %v3838, %v4103
      %v4105 = vpop.f32.mrb[0].mxu0
      %4106 = vmatprep.mubr.f32.mxu0 0.0
      %4107 = vmatmul.mubr.f32.gmra.mrb[0].mxu0 %v3905
      %v4108 = vpop.f32.mrb[0].mxu0
      %v4109 = vadd.f32 %v3838, %v4108
      %v4110 = vpop.f32.mrb[0].mxu0
      %4111 = vmatprep.mubr.f32.mxu0 0.0
      %4112 = vmatmul.mubr.f32.gmra.mrb[0].mxu0 %v3908
      %v4113 = vpop.f32.mrb[0].mxu0
      %v4114 = vadd.f32 %v3838, %v4113
      %v4115 = vpop.f32.mrb[0].mxu0
      %4116 = vmatprep.mubr.f32.mxu0 0.0
      %4117 = vmatmul.mubr.f32.gmra.mrb[0].mxu0 %v3911
      %v4118 = vpop.f32.mrb[0].mxu0
      %v4119 = vadd.f32 %v3838, %v4118
      %v4120 = vpop.f32.mrb[0].mxu0
      %4121 = vmatprep.mubr.f32.mxu0 0.0
      %4122 = vmatmul.mubr.f32.gmra.mrb[0].mxu0 %v3914
      %v4123 = vpop.f32.mrb[0].mxu0
      %v4124 = vadd.f32 %v3838, %v4123
      %v4125 = vpop.f32.mrb[0].mxu0
      %4126 = vmatprep.mubr.f32.mxu0 0.0
      %4127 = vmatmul.mubr.f32.gmra.mrb[0].mxu0 %v3917
      %v4128 = vpop.f32.mrb[0].mxu0
      %v4129 = vadd.f32 %v3838, %v4128
      %v4130 = vpop.f32.mrb[0].mxu0
      %4131 = vmatprep.mubr.f32.mxu0 0.0
      %4132 = vmatmul.mubr.f32.gmra.mrb[0].mxu0 %v3920
      %v4133 = vpop.f32.mrb[0].mxu0
      %v4134 = vadd.f32 %v3838, %v4133
      %v4135 = vpop.f32.mrb[0].mxu0
      %4136 = vmatprep.mubr.f32.mxu0 0.0
      %4137 = vmatmul.mubr.f32.gmra.mrb[0].mxu0 %v3923
      %v4138 = vpop.f32.mrb[0].mxu0
      %v4139 = vadd.f32 %v3838, %v4138
      %v4140 = vpop.f32.mrb[0].mxu0
      %4141 = vmatprep.mubr.f32.mxu0 0.0
      %4142 = vmatmul.mubr.f32.gmra.mrb[0].mxu0 %v3926
      %v4143 = vpop.f32.mrb[0].mxu0
      %v4144 = vadd.f32 %v3838, %v4143
      %v4145 = vpop.f32.mrb[0].mxu0
      %4146 = vmatprep.mubr.f32.mxu0 0.0
      %4147 = vmatmul.mubr.f32.gmra.mrb[0].mxu0 %v3929
      %v4148 = vpop.f32.mrb[0].mxu0
      %v4149 = vadd.f32 %v3838, %v4148
      %v4150 = vpop.f32.mrb[0].mxu0
      %4151 = vmatprep.mubr.f32.mxu0 0.0
      %4152 = vmatmul.mubr.f32.gmra.mrb[0].mxu0 %v3932
      %v4153 = vpop.f32.mrb[0].mxu0
      %v4154 = vadd.f32 %v3838, %v4153
      %v4155 = vpop.f32.mrb[0].mxu0
      %4156 = vmatprep.mubr.f32.mxu0 0.0
      %4157 = vmatmul.mubr.f32.gmra.mrb[0].mxu0 %v3935
      %v4158 = vpop.f32.mrb[0].mxu0
      %v4159 = vadd.f32 %v3838, %v4158
      %v4160 = vpop.f32.mrb[0].mxu0
      %4161 = vdwg.mxu0
      %v4162 = vmin.f32 %v4004, 0.0
      %v4163 = vmin.f32 %v4009, 0.0
      %v4164 = vmin.f32 %v4014, 0.0
      %v4165 = vmin.f32 %v4019, 0.0
      %v4166 = vmin.f32 %v4024, 0.0
      %v4167 = vmin.f32 %v4029, 0.0
      %v4168 = vmin.f32 %v4034, 0.0
      %v4169 = vmin.f32 %v4039, 0.0
      %v4170 = vmin.f32 %v4044, 0.0
      %v4171 = vmin.f32 %v4049, 0.0
      %v4172 = vmin.f32 %v4054, 0.0
      %v4173 = vmin.f32 %v4059, 0.0
      %v4174 = vmin.f32 %v4064, 0.0
      %v4175 = vmin.f32 %v4069, 0.0
      %v4176 = vmin.f32 %v4074, 0.0
      %v4177 = vmin.f32 %v4079, 0.0
      %v4178 = vmin.f32 %v4084, 0.0
      %v4179 = vmin.f32 %v4089, 0.0
      %v4180 = vmin.f32 %v4094, 0.0
      %v4181 = vmin.f32 %v4099, 0.0
      %v4182 = vmin.f32 %v4104, 0.0
      %v4183 = vmin.f32 %v4109, 0.0
      %v4184 = vmin.f32 %v4114, 0.0
      %v4185 = vmin.f32 %v4119, 0.0
      %v4186 = vmin.f32 %v4124, 0.0
      %v4187 = vmin.f32 %v4129, 0.0
      %v4188 = vmin.f32 %v4134, 0.0
      %v4189 = vmin.f32 %v4139, 0.0
      %v4190 = vmin.f32 %v4144, 0.0
      %v4191 = vmin.f32 %v4149, 0.0
      %v4192 = vmin.f32 %v4154, 0.0
      %v4193 = vmin.f32 %v4159, 0.0
      %v4194 = vmul.f32 %v4162, 1.442695
      %v4195 = vpow.pop %v4194
      %v4196 = vmul.f32 %v4163, 1.442695
      %v4197 = vpow.pop %v4196
      %v4198 = vmul.f32 %v4164, 1.442695
      %v4199 = vpow.pop %v4198
      %v4200 = vmul.f32 %v4165, 1.442695
      %v4201 = vpow.pop %v4200
      %v4202 = vmul.f32 %v4166, 1.442695
      %v4203 = vpow.pop %v4202
      %v4204 = vmul.f32 %v4167, 1.442695
      %v4205 = vpow.pop %v4204
      %v4206 = vmul.f32 %v4168, 1.442695
      %v4207 = vpow.pop %v4206
      %v4208 = vmul.f32 %v4169, 1.442695
      %v4209 = vpow.pop %v4208
      %v4210 = vmul.f32 %v4170, 1.442695
      %v4211 = vpow.pop %v4210
      %v4212 = vmul.f32 %v4171, 1.442695
      %v4213 = vpow.pop %v4212
      %v4214 = vmul.f32 %v4172, 1.442695
      %v4215 = vpow.pop %v4214
      %v4216 = vmul.f32 %v4173, 1.442695
      %v4217 = vpow.pop %v4216
      %v4218 = vmul.f32 %v4174, 1.442695
      %v4219 = vpow.pop %v4218
      %v4220 = vmul.f32 %v4175, 1.442695
      %v4221 = vpow.pop %v4220
      %v4222 = vmul.f32 %v4176, 1.442695
      %v4223 = vpow.pop %v4222
      %v4224 = vmul.f32 %v4177, 1.442695
      %v4225 = vpow.pop %v4224
      %v4226 = vmul.f32 %v4178, 1.442695
      %v4227 = vpow.pop %v4226
      %v4228 = vmul.f32 %v4179, 1.442695
      %v4229 = vpow.pop %v4228
      %v4230 = vmul.f32 %v4180, 1.442695
      %v4231 = vpow.pop %v4230
      %v4232 = vmul.f32 %v4181, 1.442695
      %v4233 = vpow.pop %v4232
      %v4234 = vmul.f32 %v4182, 1.442695
      %v4235 = vpow.pop %v4234
      %v4236 = vmul.f32 %v4183, 1.442695
      %v4237 = vpow.pop %v4236
      %v4238 = vmul.f32 %v4184, 1.442695
      %v4239 = vpow.pop %v4238
      %v4240 = vmul.f32 %v4185, 1.442695
      %v4241 = vpow.pop %v4240
      %v4242 = vmul.f32 %v4186, 1.442695
      %v4243 = vpow.pop %v4242
      %v4244 = vmul.f32 %v4187, 1.442695
      %v4245 = vpow.pop %v4244
      %v4246 = vmul.f32 %v4188, 1.442695
      %v4247 = vpow.pop %v4246
      %v4248 = vmul.f32 %v4189, 1.442695
      %v4249 = vpow.pop %v4248
      %v4250 = vmul.f32 %v4190, 1.442695
      %v4251 = vpow.pop %v4250
      %v4252 = vmul.f32 %v4191, 1.442695
      %v4253 = vpow.pop %v4252
      %v4254 = vmul.f32 %v4192, 1.442695
      %v4255 = vpow.pop %v4254
      %v4256 = vmul.f32 %v4193, 1.442695
      %v4257 = vpow.pop %v4256
      %v4258 = vsub.f32 %v4195, 1.0
      %v4259 = vsub.f32 %v4197, 1.0
      %v4260 = vsub.f32 %v4199, 1.0
      %v4261 = vsub.f32 %v4201, 1.0
      %v4262 = vsub.f32 %v4203, 1.0
      %v4263 = vsub.f32 %v4205, 1.0
      %v4264 = vsub.f32 %v4207, 1.0
      %v4265 = vsub.f32 %v4209, 1.0
      %v4266 = vsub.f32 %v4211, 1.0
      %v4267 = vsub.f32 %v4213, 1.0
      %v4268 = vsub.f32 %v4215, 1.0
      %v4269 = vsub.f32 %v4217, 1.0
      %v4270 = vsub.f32 %v4219, 1.0
      %v4271 = vsub.f32 %v4221, 1.0
      %v4272 = vsub.f32 %v4223, 1.0
      %v4273 = vsub.f32 %v4225, 1.0
      %v4274 = vsub.f32 %v4227, 1.0
      %v4275 = vsub.f32 %v4229, 1.0
      %v4276 = vsub.f32 %v4231, 1.0
      %v4277 = vsub.f32 %v4233, 1.0
      %v4278 = vsub.f32 %v4235, 1.0
      %v4279 = vsub.f32 %v4237, 1.0
      %v4280 = vsub.f32 %v4239, 1.0
      %v4281 = vsub.f32 %v4241, 1.0
      %v4282 = vsub.f32 %v4243, 1.0
      %v4283 = vsub.f32 %v4245, 1.0
      %v4284 = vsub.f32 %v4247, 1.0
      %v4285 = vsub.f32 %v4249, 1.0
      %v4286 = vsub.f32 %v4251, 1.0
      %v4287 = vsub.f32 %v4253, 1.0
      %v4288 = vsub.f32 %v4255, 1.0
      %v4289 = vsub.f32 %v4257, 1.0
      %v4290 = vmul.f32 %v4258, 1.6732632
      %v4291 = vmul.f32 %v4259, 1.6732632
      %v4292 = vmul.f32 %v4260, 1.6732632
      %v4293 = vmul.f32 %v4261, 1.6732632
      %v4294 = vmul.f32 %v4262, 1.6732632
      %v4295 = vmul.f32 %v4263, 1.6732632
      %v4296 = vmul.f32 %v4264, 1.6732632
      %v4297 = vmul.f32 %v4265, 1.6732632
      %v4298 = vmul.f32 %v4266, 1.6732632
      %v4299 = vmul.f32 %v4267, 1.6732632
      %v4300 = vmul.f32 %v4268, 1.6732632
      %v4301 = vmul.f32 %v4269, 1.6732632
      %v4302 = vmul.f32 %v4270, 1.6732632
      %v4303 = vmul.f32 %v4271, 1.6732632
      %v4304 = vmul.f32 %v4272, 1.6732632
      %v4305 = vmul.f32 %v4273, 1.6732632
      %v4306 = vmul.f32 %v4274, 1.6732632
      %v4307 = vmul.f32 %v4275, 1.6732632
      %v4308 = vmul.f32 %v4276, 1.6732632
      %v4309 = vmul.f32 %v4277, 1.6732632
      %v4310 = vmul.f32 %v4278, 1.6732632
      %v4311 = vmul.f32 %v4279, 1.6732632
      %v4312 = vmul.f32 %v4280, 1.6732632
      %v4313 = vmul.f32 %v4281, 1.6732632
      %v4314 = vmul.f32 %v4282, 1.6732632
      %v4315 = vmul.f32 %v4283, 1.6732632
      %v4316 = vmul.f32 %v4284, 1.6732632
      %v4317 = vmul.f32 %v4285, 1.6732632
      %v4318 = vmul.f32 %v4286, 1.6732632
      %v4319 = vmul.f32 %v4287, 1.6732632
      %v4320 = vmul.f32 %v4288, 1.6732632
      %v4321 = vmul.f32 %v4289, 1.6732632
      %vm4322 = vcmp.gt.f32.partialorder %v4004, 0.0
      %vm4323 = vcmp.gt.f32.partialorder %v4009, 0.0
      %vm4324 = vcmp.gt.f32.partialorder %v4014, 0.0
      %vm4325 = vcmp.gt.f32.partialorder %v4019, 0.0
      %vm4326 = vcmp.gt.f32.partialorder %v4024, 0.0
      %vm4327 = vcmp.gt.f32.partialorder %v4029, 0.0
      %vm4328 = vcmp.gt.f32.partialorder %v4034, 0.0
      %vm4329 = vcmp.gt.f32.partialorder %v4039, 0.0
      %vm4330 = vcmp.gt.f32.partialorder %v4044, 0.0
      %vm4331 = vcmp.gt.f32.partialorder %v4049, 0.0
      %vm4332 = vcmp.gt.f32.partialorder %v4054, 0.0
      %vm4333 = vcmp.gt.f32.partialorder %v4059, 0.0
      %vm4334 = vcmp.gt.f32.partialorder %v4064, 0.0
      %vm4335 = vcmp.gt.f32.partialorder %v4069, 0.0
      %vm4336 = vcmp.gt.f32.partialorder %v4074, 0.0
      %vm4337 = vcmp.gt.f32.partialorder %v4079, 0.0
      %vm4338 = vcmp.gt.f32.partialorder %v4084, 0.0
      %vm4339 = vcmp.gt.f32.partialorder %v4089, 0.0
      %vm4340 = vcmp.gt.f32.partialorder %v4094, 0.0
      %vm4341 = vcmp.gt.f32.partialorder %v4099, 0.0
      %vm4342 = vcmp.gt.f32.partialorder %v4104, 0.0
      %vm4343 = vcmp.gt.f32.partialorder %v4109, 0.0
      %vm4344 = vcmp.gt.f32.partialorder %v4114, 0.0
      %vm4345 = vcmp.gt.f32.partialorder %v4119, 0.0
      %vm4346 = vcmp.gt.f32.partialorder %v4124, 0.0
      %vm4347 = vcmp.gt.f32.partialorder %v4129, 0.0
      %vm4348 = vcmp.gt.f32.partialorder %v4134, 0.0
      %vm4349 = vcmp.gt.f32.partialorder %v4139, 0.0
      %vm4350 = vcmp.gt.f32.partialorder %v4144, 0.0
      %vm4351 = vcmp.gt.f32.partialorder %v4149, 0.0
      %vm4352 = vcmp.gt.f32.partialorder %v4154, 0.0
      %vm4353 = vcmp.gt.f32.partialorder %v4159, 0.0
      %v4354 = vsel %vm4322, %v4004, %v4290
      %v4355 = vsel %vm4323, %v4009, %v4291
      %v4356 = vsel %vm4324, %v4014, %v4292
      %v4357 = vsel %vm4325, %v4019, %v4293
      %v4358 = vsel %vm4326, %v4024, %v4294
      %v4359 = vsel %vm4327, %v4029, %v4295
      %v4360 = vsel %vm4328, %v4034, %v4296
      %v4361 = vsel %vm4329, %v4039, %v4297
      %v4362 = vsel %vm4330, %v4044, %v4298
      %v4363 = vsel %vm4331, %v4049, %v4299
      %v4364 = vsel %vm4332, %v4054, %v4300
      %v4365 = vsel %vm4333, %v4059, %v4301
      %v4366 = vsel %vm4334, %v4064, %v4302
      %v4367 = vsel %vm4335, %v4069, %v4303
      %v4368 = vsel %vm4336, %v4074, %v4304
      %v4369 = vsel %vm4337, %v4079, %v4305
      %v4370 = vsel %vm4338, %v4084, %v4306
      %v4371 = vsel %vm4339, %v4089, %v4307
      %v4372 = vsel %vm4340, %v4094, %v4308
      %v4373 = vsel %vm4341, %v4099, %v4309
      %v4374 = vsel %vm4342, %v4104, %v4310
      %v4375 = vsel %vm4343, %v4109, %v4311
      %v4376 = vsel %vm4344, %v4114, %v4312
      %v4377 = vsel %vm4345, %v4119, %v4313
      %v4378 = vsel %vm4346, %v4124, %v4314
      %v4379 = vsel %vm4347, %v4129, %v4315
      %v4380 = vsel %vm4348, %v4134, %v4316
      %v4381 = vsel %vm4349, %v4139, %v4317
      %v4382 = vsel %vm4350, %v4144, %v4318
      %v4383 = vsel %vm4351, %v4149, %v4319
      %v4384 = vsel %vm4352, %v4154, %v4320
      %v4385 = vsel %vm4353, %v4159, %v4321
      %v4386 = vmul.f32 %v4354, 1.050701
      %v4387 = vmul.f32 %v4355, 1.050701
      %v4388 = vmul.f32 %v4356, 1.050701
      %v4389 = vmul.f32 %v4357, 1.050701
      %v4390 = vmul.f32 %v4358, 1.050701
      %v4391 = vmul.f32 %v4359, 1.050701
      %v4392 = vmul.f32 %v4360, 1.050701
      %v4393 = vmul.f32 %v4361, 1.050701
      %v4394 = vmul.f32 %v4362, 1.050701
      %v4395 = vmul.f32 %v4363, 1.050701
      %v4396 = vmul.f32 %v4364, 1.050701
      %v4397 = vmul.f32 %v4365, 1.050701
      %v4398 = vmul.f32 %v4366, 1.050701
      %v4399 = vmul.f32 %v4367, 1.050701
      %v4400 = vmul.f32 %v4368, 1.050701
      %v4401 = vmul.f32 %v4369, 1.050701
      %v4402 = vmul.f32 %v4370, 1.050701
      %v4403 = vmul.f32 %v4371, 1.050701
      %v4404 = vmul.f32 %v4372, 1.050701
      %v4405 = vmul.f32 %v4373, 1.050701
      %v4406 = vmul.f32 %v4374, 1.050701
      %v4407 = vmul.f32 %v4375, 1.050701
      %v4408 = vmul.f32 %v4376, 1.050701
      %v4409 = vmul.f32 %v4377, 1.050701
      %v4410 = vmul.f32 %v4378, 1.050701
      %v4411 = vmul.f32 %v4379, 1.050701
      %v4412 = vmul.f32 %v4380, 1.050701
      %v4413 = vmul.f32 %v4381, 1.050701
      %v4414 = vmul.f32 %v4382, 1.050701
      %v4415 = vmul.f32 %v4383, 1.050701
      %v4416 = vmul.f32 %v4384, 1.050701
      %v4417 = vmul.f32 %v4385, 1.050701
      %4418 = vst.msk [vmem:[#allocation2] sm:$0xff] %vm306, -1e+30
      %4419 = vst.msk [vmem:[#allocation2 + $0x8] sm:$0xff] %vm306, -1e+30
      %4420 = vst.msk [vmem:[#allocation2 + $0x10] sm:$0x3] %vm309, -1e+30
      %4421 = vst.msk [vmem:[#allocation2 + $0x18] sm:$0xff] %vm306, -1e+30
      %4422 = vst.msk [vmem:[#allocation2 + $0x20] sm:$0xff] %vm306, -1e+30
      %4423 = vst.msk [vmem:[#allocation2 + $0x28] sm:$0x3] %vm309, -1e+30
      %4424 = vst.msk [vmem:[#allocation2 + $0x30] sm:$0xff] %vm306, -1e+30
      %4425 = vst.msk [vmem:[#allocation2 + $0x38] sm:$0xff] %vm306, -1e+30
      %4426 = vst.msk [vmem:[#allocation2 + $0x40] sm:$0x3] %vm309, -1e+30
      %4427 = vst.msk [vmem:[#allocation2 + $0x48] sm:$0xff] %vm306, -1e+30
      %4428 = vst.msk [vmem:[#allocation2 + $0x50] sm:$0xff] %vm306, -1e+30
      %4429 = vst.msk [vmem:[#allocation2 + $0x58] sm:$0x3] %vm309, -1e+30
      %4430 = vst.msk [vmem:[#allocation2 + $0x60] sm:$0xff] %vm306, -1e+30
      %4431 = vst.msk [vmem:[#allocation2 + $0x68] sm:$0xff] %vm306, -1e+30
      %4432 = vst.msk [vmem:[#allocation2 + $0x70] sm:$0x3] %vm309, -1e+30
      %4433 = vst.msk [vmem:[#allocation2 + $0x78] sm:$0xff] %vm306, -1e+30
      %4434 = vst.msk [vmem:[#allocation2 + $0x80] sm:$0xff] %vm306, -1e+30
      %4435 = vst.msk [vmem:[#allocation2 + $0x88] sm:$0x3] %vm309, -1e+30
      %4436 = vst.msk [vmem:[#allocation2 + $0x90] sm:$0xff] %vm306, -1e+30
      %4437 = vst.msk [vmem:[#allocation2 + $0x98] sm:$0xff] %vm306, -1e+30
      %4438 = vst.msk [vmem:[#allocation2 + $0xa0] sm:$0x3] %vm309, -1e+30
      %4439 = vst.msk [vmem:[#allocation2 + $0xa8] sm:$0xff] %vm306, -1e+30
      %4440 = vst.msk [vmem:[#allocation2 + $0xb0] sm:$0xff] %vm306, -1e+30
      %4441 = vst.msk [vmem:[#allocation2 + $0xb8] sm:$0x3] %vm309, -1e+30
      %4442 = vst.msk [vmem:[#allocation2 + $0xc0] sm:$0xff] %vm306, -1e+30
      %4443 = vst.msk [vmem:[#allocation2 + $0xc8] sm:$0xff] %vm306, -1e+30
      %4444 = vst.msk [vmem:[#allocation2 + $0xd0] sm:$0x3] %vm309, -1e+30
      %4445 = vst.msk [vmem:[#allocation2 + $0xd8] sm:$0xff] %vm306, -1e+30
      %4446 = vst.msk [vmem:[#allocation2 + $0xe0] sm:$0xff] %vm306, -1e+30
      %4447 = vst.msk [vmem:[#allocation2 + $0xe8] sm:$0x3] %vm309, -1e+30
      %4448 = vst.msk [vmem:[#allocation2 + $0xf0] sm:$0xff] %vm306, -1e+30
      %4449 = vst.msk [vmem:[#allocation2 + $0xf8] sm:$0xff] %vm306, -1e+30
      %4450 = vst.msk [vmem:[#allocation2 + $0x100] sm:$0x3] %vm309, -1e+30
      %4451 = vst.msk [vmem:[#allocation2 + $0x108] sm:$0xff] %vm306, -1e+30
      %4452 = vst.msk [vmem:[#allocation2 + $0x110] sm:$0xff] %vm306, -1e+30
      %4453 = vst.msk [vmem:[#allocation2 + $0x118] sm:$0x3] %vm309, -1e+30
      %4454 = vst.msk [vmem:[#allocation2 + $0x120] sm:$0xff] %vm306, -1e+30
      %4455 = vst.msk [vmem:[#allocation2 + $0x128] sm:$0xff] %vm306, -1e+30
      %4456 = vst.msk [vmem:[#allocation2 + $0x130] sm:$0x3] %vm309, -1e+30
      %4457 = vst.msk [vmem:[#allocation2 + $0x138] sm:$0xff] %vm306, -1e+30
      %4458 = vst.msk [vmem:[#allocation2 + $0x140] sm:$0xff] %vm306, -1e+30
      %4459 = vst.msk [vmem:[#allocation2 + $0x148] sm:$0x3] %vm309, -1e+30
      %4460 = vst.msk [vmem:[#allocation2 + $0x150] sm:$0xff] %vm306, -1e+30
      %4461 = vst.msk [vmem:[#allocation2 + $0x158] sm:$0xff] %vm306, -1e+30
      %4462 = vst.msk [vmem:[#allocation2 + $0x160] sm:$0x3] %vm309, -1e+30
      %4463 = vst.msk [vmem:[#allocation2 + $0x168] sm:$0xff] %vm306, -1e+30
      %4464 = vst.msk [vmem:[#allocation2 + $0x170] sm:$0xff] %vm306, -1e+30
      %4465 = vst.msk [vmem:[#allocation2 + $0x178] sm:$0x3] %vm309, -1e+30
      %4466 = vst.msk [vmem:[#allocation2 + $0x180] sm:$0xff] %vm306, -1e+30
      %4467 = vst.msk [vmem:[#allocation2 + $0x188] sm:$0xff] %vm306, -1e+30
      %4468 = vst.msk [vmem:[#allocation2 + $0x190] sm:$0x3] %vm309, -1e+30
      %4469 = vst.msk [vmem:[#allocation2 + $0x198] sm:$0xff] %vm306, -1e+30
      %4470 = vst.msk [vmem:[#allocation2 + $0x1a0] sm:$0xff] %vm306, -1e+30
      %4471 = vst.msk [vmem:[#allocation2 + $0x1a8] sm:$0x3] %vm309, -1e+30
      %4472 = vst.msk [vmem:[%s394 + $0x1] sm:$0xff] %vm306, %v4386
      %4473 = vst.msk [vmem:[%s394 + $0x9] sm:$0xff] %vm306, %v4387
      %4474 = vst.msk [vmem:[%s394 + $0x19] sm:$0xff] %vm306, %v4388
      %4475 = vst.msk [vmem:[%s394 + $0x21] sm:$0xff] %vm306, %v4389
      %4476 = vst.msk [vmem:[%s394 + $0x31] sm:$0xff] %vm306, %v4390
      %4477 = vst.msk [vmem:[%s394 + $0x39] sm:$0xff] %vm306, %v4391
      %4478 = vst.msk [vmem:[%s394 + $0x49] sm:$0xff] %vm306, %v4392
      %4479 = vst.msk [vmem:[%s394 + $0x51] sm:$0xff] %vm306, %v4393
      %4480 = vst.msk [vmem:[%s394 + $0x61] sm:$0xff] %vm306, %v4394
      %4481 = vst.msk [vmem:[%s394 + $0x69] sm:$0xff] %vm306, %v4395
      %4482 = vst.msk [vmem:[%s394 + $0x79] sm:$0xff] %vm306, %v4396
      %4483 = vst.msk [vmem:[%s394 + $0x81] sm:$0xff] %vm306, %v4397
      %4484 = vst.msk [vmem:[%s394 + $0x91] sm:$0xff] %vm306, %v4398
      %4485 = vst.msk [vmem:[%s394 + $0x99] sm:$0xff] %vm306, %v4399
      %4486 = vst.msk [vmem:[%s394 + $0xa9] sm:$0xff] %vm306, %v4400
      %4487 = vst.msk [vmem:[%s394 + $0xb1] sm:$0xff] %vm306, %v4401
      %4488 = vst.msk [vmem:[%s394 + $0xc1] sm:$0xff] %vm306, %v4402
      %4489 = vst.msk [vmem:[%s394 + $0xc9] sm:$0xff] %vm306, %v4403
      %4490 = vst.msk [vmem:[%s394 + $0xd9] sm:$0xff] %vm306, %v4404
      %4491 = vst.msk [vmem:[%s394 + $0xe1] sm:$0xff] %vm306, %v4405
      %4492 = vst.msk [vmem:[%s394 + $0xf1] sm:$0xff] %vm306, %v4406
      %4493 = vst.msk [vmem:[%s394 + $0xf9] sm:$0xff] %vm306, %v4407
      %4494 = vst.msk [vmem:[%s394 + $0x109] sm:$0xff] %vm306, %v4408
      %4495 = vst.msk [vmem:[%s394 + $0x111] sm:$0xff] %vm306, %v4409
      %4496 = vst.msk [vmem:[%s394 + $0x121] sm:$0xff] %vm306, %v4410
      %4497 = vst.msk [vmem:[%s394 + $0x129] sm:$0xff] %vm306, %v4411
      %4498 = vst.msk [vmem:[%s394 + $0x139] sm:$0xff] %vm306, %v4412
      %4499 = vst.msk [vmem:[%s394 + $0x141] sm:$0xff] %vm306, %v4413
      %4500 = vst.msk [vmem:[%s394 + $0x151] sm:$0xff] %vm306, %v4414
      %4501 = vst.msk [vmem:[%s394 + $0x159] sm:$0xff] %vm306, %v4415
      %4502 = vst.msk [vmem:[%s394 + $0x169] sm:$0xff] %vm306, %v4416
      %4503 = vst.msk [vmem:[%s394 + $0x171] sm:$0xff] %vm306, %v4417
      %v4504 = vld [vmem:[#allocation2] sm:$0xff]
      %v4505 = vld [vmem:[#allocation2 + $0x8] sm:$0xff]
      %v4506 = vld [vmem:[#allocation2 + $0x10] sm:$0x3]
      %v4507 = vld [vmem:[#allocation2 + $0x18] sm:$0xff]
      %v4508 = vld [vmem:[#allocation2 + $0x20] sm:$0xff]
      %v4509 = vld [vmem:[#allocation2 + $0x28] sm:$0x3]
      %v4510 = vld [vmem:[#allocation2 + $0x30] sm:$0xff]
      %v4511 = vld [vmem:[#allocation2 + $0x38] sm:$0xff]
      %v4512 = vld [vmem:[#allocation2 + $0x40] sm:$0x3]
      %v4513 = vld [vmem:[#allocation2 + $0x48] sm:$0xff]
      %v4514 = vld [vmem:[#allocation2 + $0x50] sm:$0xff]
      %v4515 = vld [vmem:[#allocation2 + $0x58] sm:$0x3]
      %v4516 = vld [vmem:[#allocation2 + $0x60] sm:$0xff]
      %v4517 = vld [vmem:[#allocation2 + $0x68] sm:$0xff]
      %v4518 = vld [vmem:[#allocation2 + $0x70] sm:$0x3]
      %v4519 = vld [vmem:[#allocation2 + $0x78] sm:$0xff]
      %v4520 = vld [vmem:[#allocation2 + $0x80] sm:$0xff]
      %v4521 = vld [vmem:[#allocation2 + $0x88] sm:$0x3]
      %v4522 = vld [vmem:[#allocation2 + $0x90] sm:$0xff]
      %v4523 = vld [vmem:[#allocation2 + $0x98] sm:$0xff]
      %v4524 = vld [vmem:[#allocation2 + $0xa0] sm:$0x3]
      %v4525 = vld [vmem:[#allocation2 + $0xa8] sm:$0xff]
      %v4526 = vld [vmem:[#allocation2 + $0xb0] sm:$0xff]
      %v4527 = vld [vmem:[#allocation2 + $0xb8] sm:$0x3]
      %v4528 = vld [vmem:[#allocation2 + $0xc0] sm:$0xff]
      %v4529 = vld [vmem:[#allocation2 + $0xc8] sm:$0xff]
      %v4530 = vld [vmem:[#allocation2 + $0xd0] sm:$0x3]
      %v4531 = vld [vmem:[#allocation2 + $0xd8] sm:$0xff]
      %v4532 = vld [vmem:[#allocation2 + $0xe0] sm:$0xff]
      %v4533 = vld [vmem:[#allocation2 + $0xe8] sm:$0x3]
      %v4534 = vld [vmem:[#allocation2 + $0xf0] sm:$0xff]
      %v4535 = vld [vmem:[#allocation2 + $0xf8] sm:$0xff]
      %v4536 = vld [vmem:[#allocation2 + $0x100] sm:$0x3]
      %v4537 = vld [vmem:[#allocation2 + $0x108] sm:$0xff]
      %v4538 = vld [vmem:[#allocation2 + $0x110] sm:$0xff]
      %v4539 = vld [vmem:[#allocation2 + $0x118] sm:$0x3]
      %v4540 = vld [vmem:[#allocation2 + $0x120] sm:$0xff]
      %v4541 = vld [vmem:[#allocation2 + $0x128] sm:$0xff]
      %v4542 = vld [vmem:[#allocation2 + $0x130] sm:$0x3]
      %v4543 = vld [vmem:[#allocation2 + $0x138] sm:$0xff]
      %v4544 = vld [vmem:[#allocation2 + $0x140] sm:$0xff]
      %v4545 = vld [vmem:[#allocation2 + $0x148] sm:$0x3]
      %v4546 = vld [vmem:[#allocation2 + $0x150] sm:$0xff]
      %v4547 = vld [vmem:[#allocation2 + $0x158] sm:$0xff]
      %v4548 = vld [vmem:[#allocation2 + $0x160] sm:$0x3]
      %v4549 = vld [vmem:[#allocation2 + $0x168] sm:$0xff]
      %v4550 = vld [vmem:[#allocation2 + $0x170] sm:$0xff]
      %v4551 = vld [vmem:[#allocation2 + $0x178] sm:$0x3]
      %v4552 = vld [vmem:[#allocation2 + $0x180] sm:$0xff]
      %v4553 = vld [vmem:[#allocation2 + $0x188] sm:$0xff]
      %v4554 = vld [vmem:[#allocation2 + $0x190] sm:$0x3]
      %v4555 = vld [vmem:[#allocation2 + $0x198] sm:$0xff]
      %v4556 = vld [vmem:[#allocation2 + $0x1a0] sm:$0xff]
      %v4557 = vld [vmem:[#allocation2 + $0x1a8] sm:$0x3]
      %v4606 = vrot.slane %v4504, 1
      %v4607 = vrot.slane %v4505, 1
      %v4608 = vsel %vm562, %v4606, %v4607
      %v4609 = vrot.slane %v4506, 1
      %v4610 = vsel %vm562, %v4607, %v4609
      %v4611 = vrot.slane %v4507, 1
      %v4612 = vrot.slane %v4508, 1
      %v4613 = vsel %vm562, %v4611, %v4612
      %v4614 = vrot.slane %v4509, 1
      %v4615 = vsel %vm562, %v4612, %v4614
      %v4616 = vrot.slane %v4510, 1
      %v4617 = vrot.slane %v4511, 1
      %v4618 = vsel %vm562, %v4616, %v4617
      %v4619 = vrot.slane %v4512, 1
      %v4620 = vsel %vm562, %v4617, %v4619
      %v4621 = vrot.slane %v4513, 1
      %v4622 = vrot.slane %v4514, 1
      %v4623 = vsel %vm562, %v4621, %v4622
      %v4624 = vrot.slane %v4515, 1
      %v4625 = vsel %vm562, %v4622, %v4624
      %v4626 = vrot.slane %v4516, 1
      %v4627 = vrot.slane %v4517, 1
      %v4628 = vsel %vm562, %v4626, %v4627
      %v4629 = vrot.slane %v4518, 1
      %v4630 = vsel %vm562, %v4627, %v4629
      %v4631 = vrot.slane %v4519, 1
      %v4632 = vrot.slane %v4520, 1
      %v4633 = vsel %vm562, %v4631, %v4632
      %v4634 = vrot.slane %v4521, 1
      %v4635 = vsel %vm562, %v4632, %v4634
      %v4636 = vrot.slane %v4522, 1
      %v4637 = vrot.slane %v4523, 1
      %v4638 = vsel %vm562, %v4636, %v4637
      %v4639 = vrot.slane %v4524, 1
      %v4640 = vsel %vm562, %v4637, %v4639
      %v4641 = vrot.slane %v4525, 1
      %v4642 = vrot.slane %v4526, 1
      %v4643 = vsel %vm562, %v4641, %v4642
      %v4644 = vrot.slane %v4527, 1
      %v4645 = vsel %vm562, %v4642, %v4644
      %v4646 = vrot.slane %v4528, 1
      %v4647 = vrot.slane %v4529, 1
      %v4648 = vsel %vm562, %v4646, %v4647
      %v4649 = vrot.slane %v4530, 1
      %v4650 = vsel %vm562, %v4647, %v4649
      %v4651 = vrot.slane %v4531, 1
      %v4652 = vrot.slane %v4532, 1
      %v4653 = vsel %vm562, %v4651, %v4652
      %v4654 = vrot.slane %v4533, 1
      %v4655 = vsel %vm562, %v4652, %v4654
      %v4656 = vrot.slane %v4534, 1
      %v4657 = vrot.slane %v4535, 1
      %v4658 = vsel %vm562, %v4656, %v4657
      %v4659 = vrot.slane %v4536, 1
      %v4660 = vsel %vm562, %v4657, %v4659
      %v4661 = vrot.slane %v4537, 1
      %v4662 = vrot.slane %v4538, 1
      %v4663 = vsel %vm562, %v4661, %v4662
      %v4664 = vrot.slane %v4539, 1
      %v4665 = vsel %vm562, %v4662, %v4664
      %v4666 = vrot.slane %v4540, 1
      %v4667 = vrot.slane %v4541, 1
      %v4668 = vsel %vm562, %v4666, %v4667
      %v4669 = vrot.slane %v4542, 1
      %v4670 = vsel %vm562, %v4667, %v4669
      %v4671 = vrot.slane %v4543, 1
      %v4672 = vrot.slane %v4544, 1
      %v4673 = vsel %vm562, %v4671, %v4672
      %v4674 = vrot.slane %v4545, 1
      %v4675 = vsel %vm562, %v4672, %v4674
      %v4676 = vrot.slane %v4546, 1
      %v4677 = vrot.slane %v4547, 1
      %v4678 = vsel %vm562, %v4676, %v4677
      %v4679 = vrot.slane %v4548, 1
      %v4680 = vsel %vm562, %v4677, %v4679
      %v4681 = vrot.slane %v4549, 1
      %v4682 = vrot.slane %v4550, 1
      %v4683 = vsel %vm562, %v4681, %v4682
      %v4684 = vrot.slane %v4551, 1
      %v4685 = vsel %vm562, %v4682, %v4684
      %v4718 = vmax.f32 %v4504, %v4608
      %v4719 = vmax.f32 %v4505, %v4610
      %v4720 = vmax.f32 %v4507, %v4613
      %v4721 = vmax.f32 %v4508, %v4615
      %v4722 = vmax.f32 %v4510, %v4618
      %v4723 = vmax.f32 %v4511, %v4620
      %v4724 = vmax.f32 %v4513, %v4623
      %v4725 = vmax.f32 %v4514, %v4625
      %v4726 = vmax.f32 %v4516, %v4628
      %v4727 = vmax.f32 %v4517, %v4630
      %v4728 = vmax.f32 %v4519, %v4633
      %v4729 = vmax.f32 %v4520, %v4635
      %v4730 = vmax.f32 %v4522, %v4638
      %v4731 = vmax.f32 %v4523, %v4640
      %v4732 = vmax.f32 %v4525, %v4643
      %v4733 = vmax.f32 %v4526, %v4645
      %v4734 = vmax.f32 %v4528, %v4648
      %v4735 = vmax.f32 %v4529, %v4650
      %v4736 = vmax.f32 %v4531, %v4653
      %v4737 = vmax.f32 %v4532, %v4655
      %v4738 = vmax.f32 %v4534, %v4658
      %v4739 = vmax.f32 %v4535, %v4660
      %v4740 = vmax.f32 %v4537, %v4663
      %v4741 = vmax.f32 %v4538, %v4665
      %v4742 = vmax.f32 %v4540, %v4668
      %v4743 = vmax.f32 %v4541, %v4670
      %v4744 = vmax.f32 %v4543, %v4673
      %v4745 = vmax.f32 %v4544, %v4675
      %v4746 = vmax.f32 %v4546, %v4678
      %v4747 = vmax.f32 %v4547, %v4680
      %v4748 = vmax.f32 %v4549, %v4683
      %v4749 = vmax.f32 %v4550, %v4685
      %v4750 = vrot.slane %v4504, 2
      %v4751 = vrot.slane %v4505, 2
      %v4752 = vsel %vm772, %v4750, %v4751
      %v4753 = vrot.slane %v4506, 2
      %v4754 = vsel %vm772, %v4751, %v4753
      %v4755 = vrot.slane %v4507, 2
      %v4756 = vrot.slane %v4508, 2
      %v4757 = vsel %vm772, %v4755, %v4756
      %v4758 = vrot.slane %v4509, 2
      %v4759 = vsel %vm772, %v4756, %v4758
      %v4760 = vrot.slane %v4510, 2
      %v4761 = vrot.slane %v4511, 2
      %v4762 = vsel %vm772, %v4760, %v4761
      %v4763 = vrot.slane %v4512, 2
      %v4764 = vsel %vm772, %v4761, %v4763
      %v4765 = vrot.slane %v4513, 2
      %v4766 = vrot.slane %v4514, 2
      %v4767 = vsel %vm772, %v4765, %v4766
      %v4768 = vrot.slane %v4515, 2
      %v4769 = vsel %vm772, %v4766, %v4768
      %v4770 = vrot.slane %v4516, 2
      %v4771 = vrot.slane %v4517, 2
      %v4772 = vsel %vm772, %v4770, %v4771
      %v4773 = vrot.slane %v4518, 2
      %v4774 = vsel %vm772, %v4771, %v4773
      %v4775 = vrot.slane %v4519, 2
      %v4776 = vrot.slane %v4520, 2
      %v4777 = vsel %vm772, %v4775, %v4776
      %v4778 = vrot.slane %v4521, 2
      %v4779 = vsel %vm772, %v4776, %v4778
      %v4780 = vrot.slane %v4522, 2
      %v4781 = vrot.slane %v4523, 2
      %v4782 = vsel %vm772, %v4780, %v4781
      %v4783 = vrot.slane %v4524, 2
      %v4784 = vsel %vm772, %v4781, %v4783
      %v4785 = vrot.slane %v4525, 2
      %v4786 = vrot.slane %v4526, 2
      %v4787 = vsel %vm772, %v4785, %v4786
      %v4788 = vrot.slane %v4527, 2
      %v4789 = vsel %vm772, %v4786, %v4788
      %v4790 = vrot.slane %v4528, 2
      %v4791 = vrot.slane %v4529, 2
      %v4792 = vsel %vm772, %v4790, %v4791
      %v4793 = vrot.slane %v4530, 2
      %v4794 = vsel %vm772, %v4791, %v4793
      %v4795 = vrot.slane %v4531, 2
      %v4796 = vrot.slane %v4532, 2
      %v4797 = vsel %vm772, %v4795, %v4796
      %v4798 = vrot.slane %v4533, 2
      %v4799 = vsel %vm772, %v4796, %v4798
      %v4800 = vrot.slane %v4534, 2
      %v4801 = vrot.slane %v4535, 2
      %v4802 = vsel %vm772, %v4800, %v4801
      %v4803 = vrot.slane %v4536, 2
      %v4804 = vsel %vm772, %v4801, %v4803
      %v4805 = vrot.slane %v4537, 2
      %v4806 = vrot.slane %v4538, 2
      %v4807 = vsel %vm772, %v4805, %v4806
      %v4808 = vrot.slane %v4539, 2
      %v4809 = vsel %vm772, %v4806, %v4808
      %v4810 = vrot.slane %v4540, 2
      %v4811 = vrot.slane %v4541, 2
      %v4812 = vsel %vm772, %v4810, %v4811
      %v4813 = vrot.slane %v4542, 2
      %v4814 = vsel %vm772, %v4811, %v4813
      %v4815 = vrot.slane %v4543, 2
      %v4816 = vrot.slane %v4544, 2
      %v4817 = vsel %vm772, %v4815, %v4816
      %v4818 = vrot.slane %v4545, 2
      %v4819 = vsel %vm772, %v4816, %v4818
      %v4820 = vrot.slane %v4546, 2
      %v4821 = vrot.slane %v4547, 2
      %v4822 = vsel %vm772, %v4820, %v4821
      %v4823 = vrot.slane %v4548, 2
      %v4824 = vsel %vm772, %v4821, %v4823
      %v4825 = vrot.slane %v4549, 2
      %v4826 = vrot.slane %v4550, 2
      %v4827 = vsel %vm772, %v4825, %v4826
      %v4828 = vrot.slane %v4551, 2
      %v4829 = vsel %vm772, %v4826, %v4828
      %v4862 = vmax.f32 %v4718, %v4752
      %v4863 = vmax.f32 %v4719, %v4754
      %v4864 = vmax.f32 %v4720, %v4757
      %v4865 = vmax.f32 %v4721, %v4759
      %v4866 = vmax.f32 %v4722, %v4762
      %v4867 = vmax.f32 %v4723, %v4764
      %v4868 = vmax.f32 %v4724, %v4767
      %v4869 = vmax.f32 %v4725, %v4769
      %v4870 = vmax.f32 %v4726, %v4772
      %v4871 = vmax.f32 %v4727, %v4774
      %v4872 = vmax.f32 %v4728, %v4777
      %v4873 = vmax.f32 %v4729, %v4779
      %v4874 = vmax.f32 %v4730, %v4782
      %v4875 = vmax.f32 %v4731, %v4784
      %v4876 = vmax.f32 %v4732, %v4787
      %v4877 = vmax.f32 %v4733, %v4789
      %v4878 = vmax.f32 %v4734, %v4792
      %v4879 = vmax.f32 %v4735, %v4794
      %v4880 = vmax.f32 %v4736, %v4797
      %v4881 = vmax.f32 %v4737, %v4799
      %v4882 = vmax.f32 %v4738, %v4802
      %v4883 = vmax.f32 %v4739, %v4804
      %v4884 = vmax.f32 %v4740, %v4807
      %v4885 = vmax.f32 %v4741, %v4809
      %v4886 = vmax.f32 %v4742, %v4812
      %v4887 = vmax.f32 %v4743, %v4814
      %v4888 = vmax.f32 %v4744, %v4817
      %v4889 = vmax.f32 %v4745, %v4819
      %v4890 = vmax.f32 %v4746, %v4822
      %v4891 = vmax.f32 %v4747, %v4824
      %v4892 = vmax.f32 %v4748, %v4827
      %v4893 = vmax.f32 %v4749, %v4829
      %v4894 = vmax.f32 %v4862, %v4507
      %v4895 = vmax.f32 %v4863, %v4508
      %v4896 = vmax.f32 %v4864, %v4510
      %v4897 = vmax.f32 %v4865, %v4511
      %v4898 = vmax.f32 %v4866, %v4513
      %v4899 = vmax.f32 %v4867, %v4514
      %v4900 = vmax.f32 %v4868, %v4516
      %v4901 = vmax.f32 %v4869, %v4517
      %v4902 = vmax.f32 %v4870, %v4519
      %v4903 = vmax.f32 %v4871, %v4520
      %v4904 = vmax.f32 %v4872, %v4522
      %v4905 = vmax.f32 %v4873, %v4523
      %v4906 = vmax.f32 %v4874, %v4525
      %v4907 = vmax.f32 %v4875, %v4526
      %v4908 = vmax.f32 %v4876, %v4528
      %v4909 = vmax.f32 %v4877, %v4529
      %v4910 = vmax.f32 %v4878, %v4531
      %v4911 = vmax.f32 %v4879, %v4532
      %v4912 = vmax.f32 %v4880, %v4534
      %v4913 = vmax.f32 %v4881, %v4535
      %v4914 = vmax.f32 %v4882, %v4537
      %v4915 = vmax.f32 %v4883, %v4538
      %v4916 = vmax.f32 %v4884, %v4540
      %v4917 = vmax.f32 %v4885, %v4541
      %v4918 = vmax.f32 %v4886, %v4543
      %v4919 = vmax.f32 %v4887, %v4544
      %v4920 = vmax.f32 %v4888, %v4546
      %v4921 = vmax.f32 %v4889, %v4547
      %v4922 = vmax.f32 %v4890, %v4549
      %v4923 = vmax.f32 %v4891, %v4550
      %v4924 = vmax.f32 %v4892, %v4552
      %v4925 = vmax.f32 %v4893, %v4553
      %v4929 = vrot.slane %v4552, 1
      %v4930 = vrot.slane %v4553, 1
      %v4931 = vsel %vm562, %v4929, %v4930
      %v4932 = vrot.slane %v4554, 1
      %v4933 = vsel %vm562, %v4930, %v4932
      %v4936 = vmax.f32 %v4894, %v4613
      %v4937 = vmax.f32 %v4895, %v4615
      %v4938 = vmax.f32 %v4896, %v4618
      %v4939 = vmax.f32 %v4897, %v4620
      %v4940 = vmax.f32 %v4898, %v4623
      %v4941 = vmax.f32 %v4899, %v4625
      %v4942 = vmax.f32 %v4900, %v4628
      %v4943 = vmax.f32 %v4901, %v4630
      %v4944 = vmax.f32 %v4902, %v4633
      %v4945 = vmax.f32 %v4903, %v4635
      %v4946 = vmax.f32 %v4904, %v4638
      %v4947 = vmax.f32 %v4905, %v4640
      %v4948 = vmax.f32 %v4906, %v4643
      %v4949 = vmax.f32 %v4907, %v4645
      %v4950 = vmax.f32 %v4908, %v4648
      %v4951 = vmax.f32 %v4909, %v4650
      %v4952 = vmax.f32 %v4910, %v4653
      %v4953 = vmax.f32 %v4911, %v4655
      %v4954 = vmax.f32 %v4912, %v4658
      %v4955 = vmax.f32 %v4913, %v4660
      %v4956 = vmax.f32 %v4914, %v4663
      %v4957 = vmax.f32 %v4915, %v4665
      %v4958 = vmax.f32 %v4916, %v4668
      %v4959 = vmax.f32 %v4917, %v4670
      %v4960 = vmax.f32 %v4918, %v4673
      %v4961 = vmax.f32 %v4919, %v4675
      %v4962 = vmax.f32 %v4920, %v4678
      %v4963 = vmax.f32 %v4921, %v4680
      %v4964 = vmax.f32 %v4922, %v4683
      %v4965 = vmax.f32 %v4923, %v4685
      %v4966 = vmax.f32 %v4924, %v4931
      %v4967 = vmax.f32 %v4925, %v4933
      %v4968 = vrot.slane %v4552, 2
      %v4969 = vrot.slane %v4553, 2
      %v4970 = vsel %vm772, %v4968, %v4969
      %v4971 = vrot.slane %v4554, 2
      %v4972 = vsel %vm772, %v4969, %v4971
      %v4975 = vmax.f32 %v4936, %v4757
      %v4976 = vmax.f32 %v4937, %v4759
      %v4977 = vmax.f32 %v4938, %v4762
      %v4978 = vmax.f32 %v4939, %v4764
      %v4979 = vmax.f32 %v4940, %v4767
      %v4980 = vmax.f32 %v4941, %v4769
      %v4981 = vmax.f32 %v4942, %v4772
      %v4982 = vmax.f32 %v4943, %v4774
      %v4983 = vmax.f32 %v4944, %v4777
      %v4984 = vmax.f32 %v4945, %v4779
      %v4985 = vmax.f32 %v4946, %v4782
      %v4986 = vmax.f32 %v4947, %v4784
      %v4987 = vmax.f32 %v4948, %v4787
      %v4988 = vmax.f32 %v4949, %v4789
      %v4989 = vmax.f32 %v4950, %v4792
      %v4990 = vmax.f32 %v4951, %v4794
      %v4991 = vmax.f32 %v4952, %v4797
      %v4992 = vmax.f32 %v4953, %v4799
      %v4993 = vmax.f32 %v4954, %v4802
      %v4994 = vmax.f32 %v4955, %v4804
      %v4995 = vmax.f32 %v4956, %v4807
      %v4996 = vmax.f32 %v4957, %v4809
      %v4997 = vmax.f32 %v4958, %v4812
      %v4998 = vmax.f32 %v4959, %v4814
      %v4999 = vmax.f32 %v4960, %v4817
      %v5000 = vmax.f32 %v4961, %v4819
      %v5001 = vmax.f32 %v4962, %v4822
      %v5002 = vmax.f32 %v4963, %v4824
      %v5003 = vmax.f32 %v4964, %v4827
      %v5004 = vmax.f32 %v4965, %v4829
      %v5005 = vmax.f32 %v4966, %v4970
      %v5006 = vmax.f32 %v4967, %v4972
      %v5007 = vmax.f32 %v4975, %v4510
      %v5008 = vmax.f32 %v4976, %v4511
      %v5009 = vmax.f32 %v4977, %v4513
      %v5010 = vmax.f32 %v4978, %v4514
      %v5011 = vmax.f32 %v4979, %v4516
      %v5012 = vmax.f32 %v4980, %v4517
      %v5013 = vmax.f32 %v4981, %v4519
      %v5014 = vmax.f32 %v4982, %v4520
      %v5015 = vmax.f32 %v4983, %v4522
      %v5016 = vmax.f32 %v4984, %v4523
      %v5017 = vmax.f32 %v4985, %v4525
      %v5018 = vmax.f32 %v4986, %v4526
      %v5019 = vmax.f32 %v4987, %v4528
      %v5020 = vmax.f32 %v4988, %v4529
      %v5021 = vmax.f32 %v4989, %v4531
      %v5022 = vmax.f32 %v4990, %v4532
      %v5023 = vmax.f32 %v4991, %v4534
      %v5024 = vmax.f32 %v4992, %v4535
      %v5025 = vmax.f32 %v4993, %v4537
      %v5026 = vmax.f32 %v4994, %v4538
      %v5027 = vmax.f32 %v4995, %v4540
      %v5028 = vmax.f32 %v4996, %v4541
      %v5029 = vmax.f32 %v4997, %v4543
      %v5030 = vmax.f32 %v4998, %v4544
      %v5031 = vmax.f32 %v4999, %v4546
      %v5032 = vmax.f32 %v5000, %v4547
      %v5033 = vmax.f32 %v5001, %v4549
      %v5034 = vmax.f32 %v5002, %v4550
      %v5035 = vmax.f32 %v5003, %v4552
      %v5036 = vmax.f32 %v5004, %v4553
      %v5037 = vmax.f32 %v5005, %v4555
      %v5038 = vmax.f32 %v5006, %v4556
      %v5042 = vrot.slane %v4555, 1
      %v5043 = vrot.slane %v4556, 1
      %v5044 = vsel %vm562, %v5042, %v5043
      %v5045 = vrot.slane %v4557, 1
      %v5046 = vsel %vm562, %v5043, %v5045
      %v5049 = vmax.f32 %v5007, %v4618
      %v5050 = vmax.f32 %v5008, %v4620
      %v5051 = vmax.f32 %v5009, %v4623
      %v5052 = vmax.f32 %v5010, %v4625
      %v5053 = vmax.f32 %v5011, %v4628
      %v5054 = vmax.f32 %v5012, %v4630
      %v5055 = vmax.f32 %v5013, %v4633
      %v5056 = vmax.f32 %v5014, %v4635
      %v5057 = vmax.f32 %v5015, %v4638
      %v5058 = vmax.f32 %v5016, %v4640
      %v5059 = vmax.f32 %v5017, %v4643
      %v5060 = vmax.f32 %v5018, %v4645
      %v5061 = vmax.f32 %v5019, %v4648
      %v5062 = vmax.f32 %v5020, %v4650
      %v5063 = vmax.f32 %v5021, %v4653
      %v5064 = vmax.f32 %v5022, %v4655
      %v5065 = vmax.f32 %v5023, %v4658
      %v5066 = vmax.f32 %v5024, %v4660
      %v5067 = vmax.f32 %v5025, %v4663
      %v5068 = vmax.f32 %v5026, %v4665
      %v5069 = vmax.f32 %v5027, %v4668
      %v5070 = vmax.f32 %v5028, %v4670
      %v5071 = vmax.f32 %v5029, %v4673
      %v5072 = vmax.f32 %v5030, %v4675
      %v5073 = vmax.f32 %v5031, %v4678
      %v5074 = vmax.f32 %v5032, %v4680
      %v5075 = vmax.f32 %v5033, %v4683
      %v5076 = vmax.f32 %v5034, %v4685
      %v5077 = vmax.f32 %v5035, %v4931
      %v5078 = vmax.f32 %v5036, %v4933
      %v5079 = vmax.f32 %v5037, %v5044
      %v5080 = vmax.f32 %v5038, %v5046
      %v5081 = vrot.slane %v4555, 2
      %v5082 = vrot.slane %v4556, 2
      %v5083 = vsel %vm772, %v5081, %v5082
      %v5084 = vrot.slane %v4557, 2
      %v5085 = vsel %vm772, %v5082, %v5084
      %v5088 = vmax.f32 %v5049, %v4762
      %v5089 = vmax.f32 %v5050, %v4764
      %v5090 = vmax.f32 %v5051, %v4767
      %v5091 = vmax.f32 %v5052, %v4769
      %v5092 = vmax.f32 %v5053, %v4772
      %v5093 = vmax.f32 %v5054, %v4774
      %v5094 = vmax.f32 %v5055, %v4777
      %v5095 = vmax.f32 %v5056, %v4779
      %v5096 = vmax.f32 %v5057, %v4782
      %v5097 = vmax.f32 %v5058, %v4784
      %v5098 = vmax.f32 %v5059, %v4787
      %v5099 = vmax.f32 %v5060, %v4789
      %v5100 = vmax.f32 %v5061, %v4792
      %v5101 = vmax.f32 %v5062, %v4794
      %v5102 = vmax.f32 %v5063, %v4797
      %v5103 = vmax.f32 %v5064, %v4799
      %v5104 = vmax.f32 %v5065, %v4802
      %v5105 = vmax.f32 %v5066, %v4804
      %v5106 = vmax.f32 %v5067, %v4807
      %v5107 = vmax.f32 %v5068, %v4809
      %v5108 = vmax.f32 %v5069, %v4812
      %v5109 = vmax.f32 %v5070, %v4814
      %v5110 = vmax.f32 %v5071, %v4817
      %v5111 = vmax.f32 %v5072, %v4819
      %v5112 = vmax.f32 %v5073, %v4822
      %v5113 = vmax.f32 %v5074, %v4824
      %v5114 = vmax.f32 %v5075, %v4827
      %v5115 = vmax.f32 %v5076, %v4829
      %v5116 = vmax.f32 %v5077, %v4970
      %v5117 = vmax.f32 %v5078, %v4972
      %v5118 = vmax.f32 %v5079, %v5083
      %v5119 = vmax.f32 %v5080, %v5085
      %v5120 = vld [vmem:[%s5] sm:$0xff]
      %v5121 = vld [vmem:[%s5 + $0x8] sm:$0xff]
      %v5122 = vld [vmem:[%s5 + $0x10] sm:$0xff]
      %v5123 = vld [vmem:[%s5 + $0x18] sm:$0xff]
      %v5124 = vld [vmem:[%s5 + $0x20] sm:$0xff]
      %v5125 = vld [vmem:[%s5 + $0x28] sm:$0xff]
      %v5126 = vld [vmem:[%s5 + $0x30] sm:$0xff]
      %v5127 = vld [vmem:[%s5 + $0x38] sm:$0xff]
      %v5128 = vld [vmem:[%s5 + $0x40] sm:$0xff]
      %v5129 = vld [vmem:[%s5 + $0x48] sm:$0xff]
      %v5130 = vld [vmem:[%s5 + $0x50] sm:$0xff]
      %v5131 = vld [vmem:[%s5 + $0x58] sm:$0xff]
      %v5132 = vld [vmem:[%s5 + $0x60] sm:$0xff]
      %v5133 = vld [vmem:[%s5 + $0x68] sm:$0xff]
      %v5134 = vld [vmem:[%s5 + $0x70] sm:$0xff]
      %v5135 = vld [vmem:[%s5 + $0x78] sm:$0xff]
      %v5136 = vld [vmem:[%s300] sm:$0xff]
      %v5137 = vld [vmem:[%s300 + $0x8] sm:$0xff]
      %v5138 = vld [vmem:[%s300 + $0x10] sm:$0xff]
      %v5139 = vld [vmem:[%s300 + $0x18] sm:$0xff]
      %v5140 = vld [vmem:[%s300 + $0x20] sm:$0xff]
      %v5141 = vld [vmem:[%s300 + $0x28] sm:$0xff]
      %v5142 = vld [vmem:[%s300 + $0x30] sm:$0xff]
      %v5143 = vld [vmem:[%s300 + $0x38] sm:$0xff]
      %v5144 = vld [vmem:[%s300 + $0x40] sm:$0xff]
      %v5145 = vld [vmem:[%s300 + $0x48] sm:$0xff]
      %v5146 = vld [vmem:[%s300 + $0x50] sm:$0xff]
      %v5147 = vld [vmem:[%s300 + $0x58] sm:$0xff]
      %v5148 = vld [vmem:[%s300 + $0x60] sm:$0xff]
      %v5149 = vld [vmem:[%s300 + $0x68] sm:$0xff]
      %v5150 = vld [vmem:[%s300 + $0x70] sm:$0xff]
      %v5151 = vld [vmem:[%s300 + $0x78] sm:$0xff]
      %v5152 = vld [vmem:[%s300 + $0x80] sm:$0xff]
      %v5153 = vld [vmem:[%s300 + $0x88] sm:$0xff]
      %v5154 = vld [vmem:[%s300 + $0x90] sm:$0xff]
      %v5155 = vld [vmem:[%s300 + $0x98] sm:$0xff]
      %v5156 = vld [vmem:[%s300 + $0xa0] sm:$0xff]
      %v5157 = vld [vmem:[%s300 + $0xa8] sm:$0xff]
      %v5158 = vld [vmem:[%s300 + $0xb0] sm:$0xff]
      %v5159 = vld [vmem:[%s300 + $0xb8] sm:$0xff]
      %v5160 = vld [vmem:[%s300 + $0xc0] sm:$0xff]
      %v5161 = vld [vmem:[%s300 + $0xc8] sm:$0xff]
      %v5162 = vld [vmem:[%s300 + $0xd0] sm:$0xff]
      %v5163 = vld [vmem:[%s300 + $0xd8] sm:$0xff]
      %v5164 = vld [vmem:[%s300 + $0xe0] sm:$0xff]
      %v5165 = vld [vmem:[%s300 + $0xe8] sm:$0xff]
      %v5166 = vld [vmem:[%s300 + $0xf0] sm:$0xff]
      %v5167 = vld [vmem:[%s300 + $0xf8] sm:$0xff]
      %v5168 = vld [vmem:[%s6] sm:$0xff]
      %v5169 = vld [vmem:[%s6 + $0x8] sm:$0xff]
      %v5170 = vld [vmem:[%s6 + $0x10] sm:$0xff]
      %v5171 = vld [vmem:[%s6 + $0x18] sm:$0xff]
      %v5172 = vld [vmem:[%s6 + $0x20] sm:$0xff]
      %v5173 = vld [vmem:[%s6 + $0x28] sm:$0xff]
      %v5174 = vld [vmem:[%s6 + $0x30] sm:$0xff]
      %v5175 = vld [vmem:[%s6 + $0x38] sm:$0xff]
      %v5176 = vld [vmem:[%s6 + $0x40] sm:$0xff]
      %v5177 = vld [vmem:[%s6 + $0x48] sm:$0xff]
      %v5178 = vld [vmem:[%s6 + $0x50] sm:$0xff]
      %v5179 = vld [vmem:[%s6 + $0x58] sm:$0xff]
      %v5180 = vld [vmem:[%s6 + $0x60] sm:$0xff]
      %v5181 = vld [vmem:[%s6 + $0x68] sm:$0xff]
      %v5182 = vld [vmem:[%s6 + $0x70] sm:$0xff]
      %v5183 = vld [vmem:[%s6 + $0x78] sm:$0xff]
      %5184 = vmatprep.subr.mxu0 0.0
      %5185 = vmatpush1.msra.mxu0 %v5136
      %5186 = vmatprep.subr.mxu0 0.0
      %5187 = vmatpush1.msra.mxu0 %v5137
      %5188 = vmatprep.subr.mxu0 0.0
      %5189 = vmatpush1.msra.mxu0 %v5138
      %5190 = vmatprep.subr.mxu0 0.0
      %5191 = vmatpush1.msra.mxu0 %v5139
      %5192 = vmatprep.subr.mxu0 0.0
      %5193 = vmatpush1.msra.mxu0 %v5140
      %5194 = vmatprep.subr.mxu0 0.0
      %5195 = vmatpush1.msra.mxu0 %v5141
      %5196 = vmatprep.subr.mxu0 0.0
      %5197 = vmatpush1.msra.mxu0 %v5142
      %5198 = vmatprep.subr.mxu0 0.0
      %5199 = vmatpush1.msra.mxu0 %v5143
      %5200 = vmatprep.subr.mxu0 0.0
      %5201 = vmatpush1.msra.mxu0 %v5144
      %5202 = vmatprep.subr.mxu0 0.0
      %5203 = vmatpush1.msra.mxu0 %v5145
      %5204 = vmatprep.subr.mxu0 0.0
      %5205 = vmatpush1.msra.mxu0 %v5146
      %5206 = vmatprep.subr.mxu0 0.0
      %5207 = vmatpush1.msra.mxu0 %v5147
      %5208 = vmatprep.subr.mxu0 0.0
      %5209 = vmatpush1.msra.mxu0 %v5148
      %5210 = vmatprep.subr.mxu0 0.0
      %5211 = vmatpush1.msra.mxu0 %v5149
      %5212 = vmatprep.subr.mxu0 0.0
      %5213 = vmatpush1.msra.mxu0 %v5150
      %5214 = vmatprep.subr.mxu0 0.0
      %5215 = vmatpush1.msra.mxu0 %v5151
      %5216 = vmatprep.subr.mxu0 0.0
      %5217 = vmatpush1.msra.mxu0 %v5152
      %5218 = vmatprep.subr.mxu0 0.0
      %5219 = vmatpush1.msra.mxu0 %v5153
      %5220 = vmatprep.subr.mxu0 0.0
      %5221 = vmatpush1.msra.mxu0 %v5154
      %5222 = vmatprep.subr.mxu0 0.0
      %5223 = vmatpush1.msra.mxu0 %v5155
      %5224 = vmatprep.subr.mxu0 0.0
      %5225 = vmatpush1.msra.mxu0 %v5156
      %5226 = vmatprep.subr.mxu0 0.0
      %5227 = vmatpush1.msra.mxu0 %v5157
      %5228 = vmatprep.subr.mxu0 0.0
      %5229 = vmatpush1.msra.mxu0 %v5158
      %5230 = vmatprep.subr.mxu0 0.0
      %5231 = vmatpush1.msra.mxu0 %v5159
      %5232 = vmatprep.subr.mxu0 0.0
      %5233 = vmatpush1.msra.mxu0 %v5160
      %5234 = vmatprep.subr.mxu0 0.0
      %5235 = vmatpush1.msra.mxu0 %v5161
      %5236 = vmatprep.subr.mxu0 0.0
      %5237 = vmatpush1.msra.mxu0 %v5162
      %5238 = vmatprep.subr.mxu0 0.0
      %5239 = vmatpush1.msra.mxu0 %v5163
      %5240 = vmatprep.subr.mxu0 0.0
      %5241 = vmatpush1.msra.mxu0 %v5164
      %5242 = vmatprep.subr.mxu0 0.0
      %5243 = vmatpush1.msra.mxu0 %v5165
      %5244 = vmatprep.subr.mxu0 0.0
      %5245 = vmatpush1.msra.mxu0 %v5166
      %5246 = vmatprep.subr.mxu0 0.0
      %5247 = vmatpush1.msra.mxu0 %v5167
      %5248 = vmatprep.mubr.f32.mxu0 %v5169
      %5249 = vmatmul.mubr.f32.gmra.mrb[0].mxu0 %v5168
      %v5250 = vpop.f32.mrb[0].mxu0
      %v5251 = vadd.f32 0.0, %v5250
      %v5252 = vpop.f32.mrb[0].mxu0
      %5253 = vmatprep.mubr.f32.mxu0 %v5171
      %5254 = vmatmul.mubr.f32.gmra.mrb[0].mxu0 %v5170
      %v5255 = vpop.f32.mrb[0].mxu0
      %v5256 = vadd.f32 0.0, %v5255
      %v5257 = vpop.f32.mrb[0].mxu0
      %5258 = vmatprep.mubr.f32.mxu0 %v5173
      %5259 = vmatmul.mubr.f32.gmra.mrb[0].mxu0 %v5172
      %v5260 = vpop.f32.mrb[0].mxu0
      %v5261 = vadd.f32 0.0, %v5260
      %v5262 = vpop.f32.mrb[0].mxu0
      %5263 = vmatprep.mubr.f32.mxu0 %v5175
      %5264 = vmatmul.mubr.f32.gmra.mrb[0].mxu0 %v5174
      %v5265 = vpop.f32.mrb[0].mxu0
      %v5266 = vadd.f32 0.0, %v5265
      %v5267 = vpop.f32.mrb[0].mxu0
      %5268 = vmatprep.mubr.f32.mxu0 %v5177
      %5269 = vmatmul.mubr.f32.gmra.mrb[0].mxu0 %v5176
      %v5270 = vpop.f32.mrb[0].mxu0
      %v5271 = vadd.f32 0.0, %v5270
      %v5272 = vpop.f32.mrb[0].mxu0
      %5273 = vmatprep.mubr.f32.mxu0 %v5179
      %5274 = vmatmul.mubr.f32.gmra.mrb[0].mxu0 %v5178
      %v5275 = vpop.f32.mrb[0].mxu0
      %v5276 = vadd.f32 0.0, %v5275
      %v5277 = vpop.f32.mrb[0].mxu0
      %5278 = vmatprep.mubr.f32.mxu0 %v5181
      %5279 = vmatmul.mubr.f32.gmra.mrb[0].mxu0 %v5180
      %v5280 = vpop.f32.mrb[0].mxu0
      %v5281 = vadd.f32 0.0, %v5280
      %v5282 = vpop.f32.mrb[0].mxu0
      %5283 = vmatprep.mubr.f32.mxu0 %v5183
      %5284 = vmatmul.mubr.f32.gmra.mrb[0].mxu0 %v5182
      %v5285 = vpop.f32.mrb[0].mxu0
      %v5286 = vadd.f32 0.0, %v5285
      %v5287 = vpop.f32.mrb[0].mxu0
      %5288 = vdwg.mxu0
      %v5289 = vld [vmem:[%s7] sm:$0xf]
      %v5291 = vsel %vm395, %v5251, 0
      %v5294 = vsel %vm395, %v5256, 0
      %v5297 = vsel %vm395, %v5261, 0
      %v5300 = vsel %vm395, %v5266, 0
      %v5303 = vsel %vm395, %v5271, 0
      %v5306 = vsel %vm395, %v5276, 0
      %v5309 = vsel %vm395, %v5281, 0
      %v5312 = vsel %vm395, %v5286, 0
      %v5315 = vsel %vm1923, %v5289, 0
      %5317 = vmatprep.subr.mxu0 0.0
      %5318 = vmatpush1.msra.mxu0 %v5315
      %5319 = vmatprep.subr.mxu0 0.0
      %5320 = vmatpush1.msra.mxu0 0.0
      %5321 = vmatprep.subr.mxu0 0.0
      %5322 = vmatpush1.msra.mxu0 0.0
      %5323 = vmatprep.subr.mxu0 0.0
      %5324 = vmatpush1.msra.mxu0 0.0
      %5325 = vmatprep.subr.mxu0 0.0
      %5326 = vmatpush1.msra.mxu0 0.0
      %5327 = vmatprep.subr.mxu0 0.0
      %5328 = vmatpush1.msra.mxu0 0.0
      %5329 = vmatprep.subr.mxu0 0.0
      %5330 = vmatpush1.msra.mxu0 0.0
      %5331 = vmatprep.subr.mxu0 0.0
      %5332 = vmatpush1.msra.mxu0 0.0
      %5333 = vmatprep.subr.mxu0 0.0
      %5334 = vmatpush1.msra.mxu0 0.0
      %5335 = vmatprep.subr.mxu0 0.0
      %5336 = vmatpush1.msra.mxu0 0.0
      %5337 = vmatprep.subr.mxu0 0.0
      %5338 = vmatpush1.msra.mxu0 0.0
      %5339 = vmatprep.subr.mxu0 0.0
      %5340 = vmatpush1.msra.mxu0 0.0
      %5341 = vmatprep.subr.mxu0 0.0
      %5342 = vmatpush1.msra.mxu0 0.0
      %5343 = vmatprep.subr.mxu0 0.0
      %5344 = vmatpush1.msra.mxu0 0.0
      %5345 = vmatprep.subr.mxu0 0.0
      %5346 = vmatpush1.msra.mxu0 0.0
      %5347 = vmatprep.subr.mxu0 0.0
      %5348 = vmatpush1.msra.mxu0 0.0
      %5349 = vmatprep.subr.mxu0 0.0
      %5350 = vmatpush1.msra.mxu0 0.0
      %5351 = vmatprep.subr.mxu0 0.0
      %5352 = vmatpush1.msra.mxu0 0.0
      %5353 = vmatprep.subr.mxu0 0.0
      %5354 = vmatpush1.msra.mxu0 0.0
      %5355 = vmatprep.subr.mxu0 0.0
      %5356 = vmatpush1.msra.mxu0 0.0
      %5357 = vmatprep.subr.mxu0 0.0
      %5358 = vmatpush1.msra.mxu0 0.0
      %5359 = vmatprep.subr.mxu0 0.0
      %5360 = vmatpush1.msra.mxu0 0.0
      %5361 = vmatprep.subr.mxu0 0.0
      %5362 = vmatpush1.msra.mxu0 0.0
      %5363 = vmatprep.subr.mxu0 0.0
      %5364 = vmatpush1.msra.mxu0 0.0
      %5365 = vmatprep.subr.mxu0 0.0
      %5366 = vmatpush1.msra.mxu0 0.0
      %5367 = vmatprep.subr.mxu0 0.0
      %5368 = vmatpush1.msra.mxu0 0.0
      %5369 = vmatprep.subr.mxu0 0.0
      %5370 = vmatpush1.msra.mxu0 0.0
      %5371 = vmatprep.subr.mxu0 0.0
      %5372 = vmatpush1.msra.mxu0 0.0
      %5373 = vmatprep.subr.mxu0 0.0
      %5374 = vmatpush1.msra.mxu0 0.0
      %5375 = vmatprep.subr.mxu0 0.0
      %5376 = vmatpush1.msra.mxu0 0.0
      %5377 = vmatprep.subr.mxu0 0.0
      %5378 = vmatpush1.msra.mxu0 0.0
      %5379 = vmatprep.subr.mxu0 0.0
      %5380 = vmatpush1.msra.mxu0 0.0
      %5381 = vmatprep.mubr.f32.mxu0 0.0
      %5382 = vmatmul.mubr.f32.gmra.mrb[0].mxu0 %v5291
      %v5383 = vpop.f32.mrb[0].mxu0
      %v5384 = vadd.f32 0.0, %v5383
      %v5385 = vpop.f32.mrb[0].mxu0
      %5386 = vmatprep.mubr.f32.mxu0 0.0
      %5387 = vmatmul.mubr.f32.gmra.mrb[0].mxu0 %v5294
      %v5388 = vpop.f32.mrb[0].mxu0
      %v5389 = vadd.f32 0.0, %v5388
      %v5390 = vpop.f32.mrb[0].mxu0
      %5391 = vmatprep.mubr.f32.mxu0 0.0
      %5392 = vmatmul.mubr.f32.gmra.mrb[0].mxu0 %v5297
      %v5393 = vpop.f32.mrb[0].mxu0
      %v5394 = vadd.f32 0.0, %v5393
      %v5395 = vpop.f32.mrb[0].mxu0
      %5396 = vmatprep.mubr.f32.mxu0 0.0
      %5397 = vmatmul.mubr.f32.gmra.mrb[0].mxu0 %v5300
      %v5398 = vpop.f32.mrb[0].mxu0
      %v5399 = vadd.f32 0.0, %v5398
      %v5400 = vpop.f32.mrb[0].mxu0
      %5401 = vmatprep.mubr.f32.mxu0 0.0
      %5402 = vmatmul.mubr.f32.gmra.mrb[0].mxu0 %v5303
      %v5403 = vpop.f32.mrb[0].mxu0
      %v5404 = vadd.f32 0.0, %v5403
      %v5405 = vpop.f32.mrb[0].mxu0
      %5406 = vmatprep.mubr.f32.mxu0 0.0
      %5407 = vmatmul.mubr.f32.gmra.mrb[0].mxu0 %v5306
      %v5408 = vpop.f32.mrb[0].mxu0
      %v5409 = vadd.f32 0.0, %v5408
      %v5410 = vpop.f32.mrb[0].mxu0
      %5411 = vmatprep.mubr.f32.mxu0 0.0
      %5412 = vmatmul.mubr.f32.gmra.mrb[0].mxu0 %v5309
      %v5413 = vpop.f32.mrb[0].mxu0
      %v5414 = vadd.f32 0.0, %v5413
      %v5415 = vpop.f32.mrb[0].mxu0
      %5416 = vmatprep.mubr.f32.mxu0 0.0
      %5417 = vmatmul.mubr.f32.gmra.mrb[0].mxu0 %v5312
      %v5418 = vpop.f32.mrb[0].mxu0
      %v5419 = vadd.f32 0.0, %v5418
      %v5420 = vpop.f32.mrb[0].mxu0
      %5421 = vdwg.mxu0
      %5422 = vmatprep.subr.mxu0 0.0
      %5423 = vmatpush1.msra.mxu0 %v5088
      %5424 = vmatprep.subr.mxu0 0.0
      %5425 = vmatpush1.msra.mxu0 %v5089
      %5426 = vmatprep.subr.mxu0 0.0
      %5427 = vmatpush1.msra.mxu0 %v5090
      %5428 = vmatprep.subr.mxu0 0.0
      %5429 = vmatpush1.msra.mxu0 %v5091
      %5430 = vmatprep.subr.mxu0 0.0
      %5431 = vmatpush1.msra.mxu0 %v5092
      %5432 = vmatprep.subr.mxu0 0.0
      %5433 = vmatpush1.msra.mxu0 %v5093
      %5434 = vmatprep.subr.mxu0 0.0
      %5435 = vmatpush1.msra.mxu0 %v5094
      %5436 = vmatprep.subr.mxu0 0.0
      %5437 = vmatpush1.msra.mxu0 %v5095
      %5438 = vmatprep.subr.mxu0 0.0
      %5439 = vmatpush1.msra.mxu0 %v5096
      %5440 = vmatprep.subr.mxu0 0.0
      %5441 = vmatpush1.msra.mxu0 %v5097
      %5442 = vmatprep.subr.mxu0 0.0
      %5443 = vmatpush1.msra.mxu0 %v5098
      %5444 = vmatprep.subr.mxu0 0.0
      %5445 = vmatpush1.msra.mxu0 %v5099
      %5446 = vmatprep.subr.mxu0 0.0
      %5447 = vmatpush1.msra.mxu0 %v5100
      %5448 = vmatprep.subr.mxu0 0.0
      %5449 = vmatpush1.msra.mxu0 %v5101
      %5450 = vmatprep.subr.mxu0 0.0
      %5451 = vmatpush1.msra.mxu0 %v5102
      %5452 = vmatprep.subr.mxu0 0.0
      %5453 = vmatpush1.msra.mxu0 %v5103
      %5454 = vmatprep.subr.mxu0 0.0
      %5455 = vmatpush1.msra.mxu0 %v5104
      %5456 = vmatprep.subr.mxu0 0.0
      %5457 = vmatpush1.msra.mxu0 %v5105
      %5458 = vmatprep.subr.mxu0 0.0
      %5459 = vmatpush1.msra.mxu0 %v5106
      %5460 = vmatprep.subr.mxu0 0.0
      %5461 = vmatpush1.msra.mxu0 %v5107
      %5462 = vmatprep.subr.mxu0 0.0
      %5463 = vmatpush1.msra.mxu0 %v5108
      %5464 = vmatprep.subr.mxu0 0.0
      %5465 = vmatpush1.msra.mxu0 %v5109
      %5466 = vmatprep.subr.mxu0 0.0
      %5467 = vmatpush1.msra.mxu0 %v5110
      %5468 = vmatprep.subr.mxu0 0.0
      %5469 = vmatpush1.msra.mxu0 %v5111
      %5470 = vmatprep.subr.mxu0 0.0
      %5471 = vmatpush1.msra.mxu0 %v5112
      %5472 = vmatprep.subr.mxu0 0.0
      %5473 = vmatpush1.msra.mxu0 %v5113
      %5474 = vmatprep.subr.mxu0 0.0
      %5475 = vmatpush1.msra.mxu0 %v5114
      %5476 = vmatprep.subr.mxu0 0.0
      %5477 = vmatpush1.msra.mxu0 %v5115
      %5478 = vmatprep.subr.mxu0 0.0
      %5479 = vmatpush1.msra.mxu0 %v5116
      %5480 = vmatprep.subr.mxu0 0.0
      %5481 = vmatpush1.msra.mxu0 %v5117
      %5482 = vmatprep.subr.mxu0 0.0
      %5483 = vmatpush1.msra.mxu0 %v5118
      %5484 = vmatprep.subr.mxu0 0.0
      %5485 = vmatpush1.msra.mxu0 %v5119
      %5486 = vmatprep.mubr.f32.mxu0 %v5121
      %5487 = vmatmul.mubr.f32.gmra.mrb[0].mxu0 %v5120
      %v5488 = vpop.f32.mrb[0].mxu0
      %v5489 = vadd.f32 %v5384, %v5488
      %v5490 = vpop.f32.mrb[0].mxu0
      %5491 = vmatprep.mubr.f32.mxu0 %v5123
      %5492 = vmatmul.mubr.f32.gmra.mrb[0].mxu0 %v5122
      %v5493 = vpop.f32.mrb[0].mxu0
      %v5494 = vadd.f32 %v5389, %v5493
      %v5495 = vpop.f32.mrb[0].mxu0
      %5496 = vmatprep.mubr.f32.mxu0 %v5125
      %5497 = vmatmul.mubr.f32.gmra.mrb[0].mxu0 %v5124
      %v5498 = vpop.f32.mrb[0].mxu0
      %v5499 = vadd.f32 %v5394, %v5498
      %v5500 = vpop.f32.mrb[0].mxu0
      %5501 = vmatprep.mubr.f32.mxu0 %v5127
      %5502 = vmatmul.mubr.f32.gmra.mrb[0].mxu0 %v5126
      %v5503 = vpop.f32.mrb[0].mxu0
      %v5504 = vadd.f32 %v5399, %v5503
      %v5505 = vpop.f32.mrb[0].mxu0
      %5506 = vmatprep.mubr.f32.mxu0 %v5129
      %5507 = vmatmul.mubr.f32.gmra.mrb[0].mxu0 %v5128
      %v5508 = vpop.f32.mrb[0].mxu0
      %v5509 = vadd.f32 %v5404, %v5508
      %v5510 = vpop.f32.mrb[0].mxu0
      %5511 = vmatprep.mubr.f32.mxu0 %v5131
      %5512 = vmatmul.mubr.f32.gmra.mrb[0].mxu0 %v5130
      %v5513 = vpop.f32.mrb[0].mxu0
      %v5514 = vadd.f32 %v5409, %v5513
      %v5515 = vpop.f32.mrb[0].mxu0
      %5516 = vmatprep.mubr.f32.mxu0 %v5133
      %5517 = vmatmul.mubr.f32.gmra.mrb[0].mxu0 %v5132
      %v5518 = vpop.f32.mrb[0].mxu0
      %v5519 = vadd.f32 %v5414, %v5518
      %v5520 = vpop.f32.mrb[0].mxu0
      %5521 = vmatprep.mubr.f32.mxu0 %v5135
      %5522 = vmatmul.mubr.f32.gmra.mrb[0].mxu0 %v5134
      %v5523 = vpop.f32.mrb[0].mxu0
      %v5524 = vadd.f32 %v5419, %v5523
      %v5525 = vpop.f32.mrb[0].mxu0
      %5526 = vdwg.mxu0
      %v5527 = vmin.f32 %v5489, 0.0
      %v5528 = vmin.f32 %v5494, 0.0
      %v5529 = vmin.f32 %v5499, 0.0
      %v5530 = vmin.f32 %v5504, 0.0
      %v5531 = vmin.f32 %v5509, 0.0
      %v5532 = vmin.f32 %v5514, 0.0
      %v5533 = vmin.f32 %v5519, 0.0
      %v5534 = vmin.f32 %v5524, 0.0
      %v5535 = vmul.f32 %v5527, 1.442695
      %v5536 = vpow.pop %v5535
      %v5537 = vmul.f32 %v5528, 1.442695
      %v5538 = vpow.pop %v5537
      %v5539 = vmul.f32 %v5529, 1.442695
      %v5540 = vpow.pop %v5539
      %v5541 = vmul.f32 %v5530, 1.442695
      %v5542 = vpow.pop %v5541
      %v5543 = vmul.f32 %v5531, 1.442695
      %v5544 = vpow.pop %v5543
      %v5545 = vmul.f32 %v5532, 1.442695
      %v5546 = vpow.pop %v5545
      %v5547 = vmul.f32 %v5533, 1.442695
      %v5548 = vpow.pop %v5547
      %v5549 = vmul.f32 %v5534, 1.442695
      %v5550 = vpow.pop %v5549
      %v5551 = vsub.f32 %v5536, 1.0
      %v5552 = vsub.f32 %v5538, 1.0
      %v5553 = vsub.f32 %v5540, 1.0
      %v5554 = vsub.f32 %v5542, 1.0
      %v5555 = vsub.f32 %v5544, 1.0
      %v5556 = vsub.f32 %v5546, 1.0
      %v5557 = vsub.f32 %v5548, 1.0
      %v5558 = vsub.f32 %v5550, 1.0
      %v5559 = vmul.f32 %v5551, 1.6732632
      %v5560 = vmul.f32 %v5552, 1.6732632
      %v5561 = vmul.f32 %v5553, 1.6732632
      %v5562 = vmul.f32 %v5554, 1.6732632
      %v5563 = vmul.f32 %v5555, 1.6732632
      %v5564 = vmul.f32 %v5556, 1.6732632
      %v5565 = vmul.f32 %v5557, 1.6732632
      %v5566 = vmul.f32 %v5558, 1.6732632
      %vm5567 = vcmp.gt.f32.partialorder %v5489, 0.0
      %vm5568 = vcmp.gt.f32.partialorder %v5494, 0.0
      %vm5569 = vcmp.gt.f32.partialorder %v5499, 0.0
      %vm5570 = vcmp.gt.f32.partialorder %v5504, 0.0
      %vm5571 = vcmp.gt.f32.partialorder %v5509, 0.0
      %vm5572 = vcmp.gt.f32.partialorder %v5514, 0.0
      %vm5573 = vcmp.gt.f32.partialorder %v5519, 0.0
      %vm5574 = vcmp.gt.f32.partialorder %v5524, 0.0
      %v5575 = vsel %vm5567, %v5489, %v5559
      %v5576 = vsel %vm5568, %v5494, %v5560
      %v5577 = vsel %vm5569, %v5499, %v5561
      %v5578 = vsel %vm5570, %v5504, %v5562
      %v5579 = vsel %vm5571, %v5509, %v5563
      %v5580 = vsel %vm5572, %v5514, %v5564
      %v5581 = vsel %vm5573, %v5519, %v5565
      %v5582 = vsel %vm5574, %v5524, %v5566
      %v5583 = vmul.f32 %v5575, 1.050701
      %v5584 = vmul.f32 %v5576, 1.050701
      %v5585 = vmul.f32 %v5577, 1.050701
      %v5586 = vmul.f32 %v5578, 1.050701
      %v5587 = vmul.f32 %v5579, 1.050701
      %v5588 = vmul.f32 %v5580, 1.050701
      %v5589 = vmul.f32 %v5581, 1.050701
      %v5590 = vmul.f32 %v5582, 1.050701
      %5591 = vst.msk [vmem:[%s305] sm:$0xff] %vm306, %v5583
      %5592 = vst.msk [vmem:[%s305 + $0x8] sm:$0xff] %vm306, %v5584
      %5593 = vst.msk [vmem:[%s305 + $0x10] sm:$0xff] %vm306, %v5585
      %5594 = vst.msk [vmem:[%s305 + $0x18] sm:$0xff] %vm306, %v5586
      %5595 = vst.msk [vmem:[%s305 + $0x20] sm:$0xff] %vm306, %v5587
      %5596 = vst.msk [vmem:[%s305 + $0x28] sm:$0xff] %vm306, %v5588
      %5597 = vst.msk [vmem:[%s305 + $0x30] sm:$0xff] %vm306, %v5589
      %5598 = vst.msk [vmem:[%s305 + $0x38] sm:$0xff] %vm306, %v5590
      %p5599 = scmp.lt.s32.totalorder %s19, 1
      %s5600 = scalar_select %p5599, %s19, 1
      %s5601 = smul.addr %s5600, 8
      %s5602 = smul.addr %s5601, 8
      %s5603 = scalar_lea.vmem %s8, %s5602
      // Predicated region
      $region53: #{tpu_custom_call.1} parent=51 // pred_check
        %p5604 = pneg %p210
      $region54: #{tpu_custom_call.1} parent=51 // pred_check_branch
        %5606 = sbr.rel (%p5604) target = $region56
      $region55: #{tpu_custom_call.1} parent=51 // pred_region
        _
      $region56: #{tpu_custom_call.1} parent=51 // pred_fallthru
        _
    $region52: #{tpu_custom_call.1} parent=5 // pred_fallthru
      _
    %p5607 = scmp.le.s32.totalorder 2, %s14
    // Predicated region
    $region57: #{tpu_custom_call.1} parent=5 // pred_check
      %p5608 = pneg %p5607
    $region58: #{tpu_custom_call.1} parent=5 // pred_check_branch
      %5610 = sbr.rel (%p5608) target = $region60
    $region59: #{tpu_custom_call.1} parent=5 // pred_region
      %s5611 = ssub.s32 %s14, 2
      // Predicated region
      $region61: #{tpu_custom_call.1} parent=59 // pred_check
        %p5612 = pneg %p216
      $region62: #{tpu_custom_call.1} parent=59 // pred_check_branch
        %5614 = sbr.rel (%p5612) target = $region64
      $region63: #{tpu_custom_call.1} parent=59 // pred_region
        %p5615 = scmp.lt.s32.totalorder %s20, 1
        %s5616 = scalar_select %p5615, %s20, 1
        %s5617 = smul.addr %s5616, 8
        %s5618 = smul.addr %s5617, 8
        %s5619 = scalar_lea.vmem %s8, %s5618
      $region64: #{tpu_custom_call.1} parent=59 // pred_fallthru
        _
    $region60: #{tpu_custom_call.1} parent=5 // pred_fallthru
      _
  $region6: #{tpu_custom_call.1} parent=0 // loop_footer
    %s18 = sadd.s32 1, %s14
  $region7: #{tpu_custom_call.1} parent=0 // loop_footer_branch
    %13 = sbr.rel target = $region3
  $region8: #{tpu_custom_call.1} parent=0 // loop_exit
    _

</llo_original>
